<compile_context>
chip_gen: v6e
topology: v6e:2x2x1
jax: 0.10.0
libtpu: 0.0.40
codegen_flags: <defaults>
</compile_context>

<pallas_src>
import functools

import jax
import jax.numpy as jnp
from jax.experimental import pallas as pl
from jax.experimental.pallas import tpu as pltpu


# ---------------------------------------------------------------------------
# Generation-dependent configuration
# ---------------------------------------------------------------------------

_CHIP_CFG = None            # (vmem_limit_bytes, row_tile_target)
_SINGLE_BUFFER_OK = False   # resolved eagerly in resolve_single_buffering()


def _chip_cfg():
    """128 MiB-VMEM chips (v5e/v6e/v5p) get a bigger cap + row tiles;
    v7x (64 MiB per TC) and unknown chips stay conservative."""
    global _CHIP_CFG
    if _CHIP_CFG is None:
        try:
            kind = jax.devices()[0].device_kind.lower()
        except Exception:
            kind = ""
        if ("v5" in kind) or ("v6" in kind):
            _CHIP_CFG = (96 * 1024 * 1024, 512)
        else:
            _CHIP_CFG = (48 * 1024 * 1024, 256)
    return _CHIP_CFG


def _compiler_params(dimension_semantics):
    vmem, _ = _chip_cfg()
    return pltpu.CompilerParams(dimension_semantics=dimension_semantics,
                                vmem_limit_bytes=vmem)


def _row_tile(m):
    _, target = _chip_cfg()
    return m if m <= target else target


def _col_tile(k, n):
    """Tile the output (N) dim only when a full-N bf16 weight block would be
    too big for the VMEM budget (v7x-class, large-width models)."""
    vmem, _ = _chip_cfg()
    limit = vmem // 4
    if n <= 1024 or k * n * 2 <= limit:
        return n
    tn = 2048
    while tn > 512 and k * tn * 2 > limit:
        tn //= 2
    return min(tn, n)


def _hidden_chunk(hidden):
    """Chunk size for the MLP hidden (reduction) axis; must divide evenly so
    no padded garbage enters the accumulator."""
    for hc in (1024, 512, 256):
        if hidden > hc and hidden % hc == 0:
            return hc
    return hidden


def _spec(shape, index_map, *, constant=False):
    """BlockSpec; blocks whose index never changes are single-buffered when
    supported (halves weight VMEM footprint)."""
    if constant and _SINGLE_BUFFER_OK:
        return pl.BlockSpec(shape, index_map, pipeline_mode=pl.Buffered(1))
    return pl.BlockSpec(shape, index_map)


def resolve_single_buffering():
    """Probe (eagerly, OUTSIDE any jit trace) whether pipeline_mode=
    pl.Buffered(1) compiles and is numerically sound; otherwise fall back to
    default double-buffered BlockSpecs."""
    global _SINGLE_BUFFER_OK
    ok = False
    try:
        if hasattr(pl, "Buffered"):
            def _probe_kernel(c_ref, x_ref, o_ref):
                o_ref[...] = x_ref[...] + c_ref[...]

            c = jnp.ones((8, 128), jnp.float32)
            x = jnp.arange(16 * 128, dtype=jnp.float32).reshape(16, 128)
            y = pl.pallas_call(
                _probe_kernel,
                out_shape=jax.ShapeDtypeStruct((16, 128), jnp.float32),
                grid=(2,),
                in_specs=[pl.BlockSpec((8, 128), lambda i: (0, 0),
                                       pipeline_mode=pl.Buffered(1)),
                          pl.BlockSpec((8, 128), lambda i: (i, 0))],
                out_specs=pl.BlockSpec((8, 128), lambda i: (i, 0)),
            )(c, x)
            ok = bool(jnp.allclose(jax.block_until_ready(y), x + 1.0))
    except Exception:
        ok = False
    _SINGLE_BUFFER_OK = ok
    return ok


# ---------------------------------------------------------------------------
# Pallas kernels
# ---------------------------------------------------------------------------

def _linear_kernel(*refs, activation, has_residual):
    """y = x @ w + b [; quick_gelu] [; + residual]  (f32 accumulate)."""
    if has_residual:
        x_ref, w_ref, b_ref, r_ref, o_ref = refs
    else:
        x_ref, w_ref, b_ref, o_ref = refs
        r_ref = None
    y = jnp.dot(x_ref[...], w_ref[...], preferred_element_type=jnp.float32)
    y = y + b_ref[...].astype(jnp.float32)
    if activation == "quick_gelu":              # CLIP QuickGELU: x*sigmoid(1.702x)
        y = y * jax.nn.sigmoid(1.702 * y)
    if r_ref is not None:
        y = y + r_ref[...].astype(jnp.float32)
    o_ref[...] = y.astype(o_ref.dtype)


def _ln_linear_kernel(x_ref, g_ref, b_ref, w_ref, wb_ref, o_ref, *, activation):
    """Fused LayerNorm (f32 stats) + matmul (+ optional QuickGELU)."""
    x = x_ref[...].astype(jnp.float32)
    mean = jnp.mean(x, axis=-1, keepdims=True)
    xc = x - mean
    var = jnp.mean(xc * xc, axis=-1, keepdims=True)
    xn = xc * jax.lax.rsqrt(var + 1e-5)
    xn = xn * g_ref[...].astype(jnp.float32) + b_ref[...].astype(jnp.float32)
    y = jnp.dot(xn.astype(w_ref.dtype), w_ref[...],
                preferred_element_type=jnp.float32)
    y = y + wb_ref[...].astype(jnp.float32)
    if activation == "quick_gelu":
        y = y * jax.nn.sigmoid(1.702 * y)
    o_ref[...] = y.astype(o_ref.dtype)


def _add_pos_ln_kernel(x_ref, p_ref, g_ref, b_ref, o_ref):
    """Fused (x + positional_embedding) -> LayerNorm."""
    x = x_ref[0].astype(jnp.float32) + p_ref[...].astype(jnp.float32)
    mean = jnp.mean(x, axis=-1, keepdims=True)
    xc = x - mean
    var = jnp.mean(xc * xc, axis=-1, keepdims=True)
    y = xc * jax.lax.rsqrt(var + 1e-5)
    y = y * g_ref[...].astype(jnp.float32) + b_ref[...].astype(jnp.float32)
    o_ref[0] = y.astype(o_ref.dtype)


def _mlp_kernel(x_ref, g_ref, b_ref, wfc_ref, bfc_ref, wp_ref, bp_ref, o_ref,
                xn_ref, acc_ref):
    """Fused pre-LN MLP block: out = x + proj(quick_gelu(fc(ln_2(x)))).
    Grid axis 1 runs over hidden-dim chunks (reduction, last, "arbitrary")."""
    j = pl.program_id(1)

    @pl.when(j == 0)
    def _():
        x = x_ref[...].astype(jnp.float32)
        mean = jnp.mean(x, axis=-1, keepdims=True)
        xc = x - mean
        var = jnp.mean(xc * xc, axis=-1, keepdims=True)
        xn = xc * jax.lax.rsqrt(var + 1e-5)
        xn = xn * g_ref[...].astype(jnp.float32) + b_ref[...].astype(jnp.float32)
        xn_ref[...] = xn.astype(xn_ref.dtype)
        acc_ref[...] = jnp.zeros_like(acc_ref)

    h = jnp.dot(xn_ref[...], wfc_ref[...], preferred_element_type=jnp.float32)
    h = h + bfc_ref[...].astype(jnp.float32)
    h = h * jax.nn.sigmoid(1.702 * h)                       # QuickGELU (f32)
    acc_ref[...] += jnp.dot(h.astype(wp_ref.dtype), wp_ref[...],
                            preferred_element_type=jnp.float32)

    @pl.when(j == pl.num_programs(1) - 1)
    def _():
        y = (acc_ref[...] + bp_ref[...].astype(jnp.float32)
             + x_ref[...].astype(jnp.float32))              # residual add
        o_ref[...] = y.astype(o_ref.dtype)


def _attn_kernel(q_ref, k_ref, v_ref, o_ref, *, hps, head_dim, scale):
    """One (batch, head-group) step.  Blocks: (1, L, hps*Dh).  No mask."""
    L = q_ref.shape[1]
    q = q_ref[0] * scale                      # bf16, pre-scaled (L*Dh work)
    k = k_ref[0]
    v = v_ref[0]
    if hps == 1:                              # fully 2-D fast path
        s = jax.lax.dot_general(q, k, (((1,), (1,)), ((), ())),
                                preferred_element_type=jnp.float32)   # (L, L)
        s = s - jnp.max(s, axis=-1, keepdims=True)
        p = jnp.exp(s)
        p = p * pl.reciprocal(jnp.sum(p, axis=-1, keepdims=True), approx=True)
        o = jnp.dot(p.astype(v.dtype), v, preferred_element_type=jnp.float32)
        o_ref[0] = o.astype(o_ref.dtype)
    else:                                     # small head-group (e.g. 2 heads)
        q = q.reshape(L, hps, head_dim)
        k = k.reshape(L, hps, head_dim)
        v = v.reshape(L, hps, head_dim)
        s = jnp.einsum("qhd,khd->hqk", q, k, preferred_element_type=jnp.float32)
        s = s - jnp.max(s, axis=-1, keepdims=True)
        p = jnp.exp(s)
        p = p * pl.reciprocal(jnp.sum(p, axis=-1, keepdims=True), approx=True)
        o = jnp.einsum("hqk,khd->qhd", p.astype(v.dtype), v,
                       preferred_element_type=jnp.float32)
        o_ref[0] = o.reshape(L, hps * head_dim).astype(o_ref.dtype)


# ---------------------------------------------------------------------------
# pallas_call wrappers
# ---------------------------------------------------------------------------

def linear(x, w, b, *, residual=None, activation=None, out_dtype=None):
    M, K = x.shape
    N = w.shape[1]
    out_dtype = x.dtype if out_dtype is None else out_dtype
    TM = _row_tile(M)
    TN = _col_tile(K, N)
    nt = pl.cdiv(N, TN)
    const_w = nt == 1
    in_specs = [
        pl.BlockSpec((TM, K), lambda i, j: (i, 0)),
        _spec((K, TN), lambda i, j: (0, j), constant=const_w),
        _spec((1, TN), lambda i, j: (0, j), constant=const_w),
    ]
    args = [x, w, b.reshape(1, N)]
    if residual is not None:
        in_specs.append(pl.BlockSpec((TM, TN), lambda i, j: (i, j)))
        args.append(residual)
    kern = functools.partial(_linear_kernel, activation=activation,
                             has_residual=residual is not None)
    return pl.pallas_call(
        kern,
        out_shape=jax.ShapeDtypeStruct((M, N), out_dtype),
        grid=(pl.cdiv(M, TM), nt),
        in_specs=in_specs,
        out_specs=pl.BlockSpec((TM, TN), lambda i, j: (i, j)),
        compiler_params=_compiler_params(("parallel", "parallel")),
    )(*args)


def ln_linear(x, g, b, w, wb, *, activation=None, out_dtype=None):
    M, K = x.shape
    N = w.shape[1]
    out_dtype = x.dtype if out_dtype is None else out_dtype
    TM = _row_tile(M)
    TN = _col_tile(K, N)
    nt = pl.cdiv(N, TN)
    const_w = nt == 1
    kern = functools.partial(_ln_linear_kernel, activation=activation)
    return pl.pallas_call(
        kern,
        out_shape=jax.ShapeDtypeStruct((M, N), out_dtype),
        grid=(pl.cdiv(M, TM), nt),
        in_specs=[
            pl.BlockSpec((TM, K), lambda i, j: (i, 0)),
            _spec((1, K), lambda i, j: (0, 0), constant=True),
            _spec((1, K), lambda i, j: (0, 0), constant=True),
            _spec((K, TN), lambda i, j: (0, j), constant=const_w),
            _spec((1, TN), lambda i, j: (0, j), constant=const_w),
        ],
        out_specs=pl.BlockSpec((TM, TN), lambda i, j: (i, j)),
        compiler_params=_compiler_params(("parallel", "parallel")),
    )(x, g.reshape(1, K), b.reshape(1, K), w, wb.reshape(1, N))


def add_pos_layernorm(x, pos, g, b):
    """(x + positional_embedding) -> ln_pre, fused.  x: (B, L, D), pos: (L, D)."""
    B, L, D = x.shape
    TL = _row_tile(L)
    return pl.pallas_call(
        _add_pos_ln_kernel,
        out_shape=jax.ShapeDtypeStruct((B, L, D), x.dtype),
        grid=(B, pl.cdiv(L, TL)),
        in_specs=[
            pl.BlockSpec((1, TL, D), lambda bb, l: (bb, l, 0)),
            pl.BlockSpec((TL, D), lambda bb, l: (l, 0)),
            _spec((1, D), lambda bb, l: (0, 0), constant=True),
            _spec((1, D), lambda bb, l: (0, 0), constant=True),
        ],
        out_specs=pl.BlockSpec((1, TL, D), lambda bb, l: (bb, l, 0)),
        compiler_params=_compiler_params(("parallel", "parallel")),
    )(x, pos, g.reshape(1, D), b.reshape(1, D))


def mlp_block(x, g, b, w_fc, b_fc, w_proj, b_proj):
    """x + proj(quick_gelu(fc(ln_2(x)))) in a single pallas_call (no HBM
    round trip of the (M, 4D) hidden activation)."""
    M, K = x.shape
    hidden = w_fc.shape[1]
    D = w_proj.shape[1]
    TM = _row_tile(M)
    HC = _hidden_chunk(hidden)
    ht = hidden // HC
    const_w = ht == 1
    return pl.pallas_call(
        _mlp_kernel,
        out_shape=jax.ShapeDtypeStruct((M, D), x.dtype),
        grid=(pl.cdiv(M, TM), ht),
        in_specs=[
            pl.BlockSpec((TM, K), lambda i, j: (i, 0)),
            _spec((1, K), lambda i, j: (0, 0), constant=True),
            _spec((1, K), lambda i, j: (0, 0), constant=True),
            _spec((K, HC), lambda i, j: (0, j), constant=const_w),
            _spec((1, HC), lambda i, j: (0, j), constant=const_w),
            _spec((HC, D), lambda i, j: (j, 0), constant=const_w),
            _spec((1, D), lambda i, j: (0, 0), constant=True),
        ],
        out_specs=pl.BlockSpec((TM, D), lambda i, j: (i, 0)),
        scratch_shapes=[pltpu.VMEM((TM, K), x.dtype),       # ln_2(x) (bf16, MXU lhs)
                        pltpu.VMEM((TM, D), jnp.float32)],  # f32 accumulator
        compiler_params=_compiler_params(("parallel", "arbitrary")),
    )(x, g.reshape(1, K), b.reshape(1, K), w_fc, b_fc.reshape(1, hidden),
      w_proj, b_proj.reshape(1, D))


def _heads_per_step(n_heads, head_dim):
    """Smallest head-group that makes the block last-dim a multiple of 128."""
    for hps in range(1, n_heads + 1):
        if n_heads % hps == 0 and (hps * head_dim) % 128 == 0:
            return hps
    return n_heads


def attention(qkv, *, n_heads, scale):
    """qkv: (B, L, 3D) fused projection -> (B, L, D) attention output
    (heads concatenated along the feature dim, ready for the out-proj).
    Grid over (batch, head-groups); per-head Q/K/V column slices are DMA'd
    via three in_specs on the same qkv array."""
    B, L, three_d = qkv.shape
    D = three_d // 3
    Dh = D // n_heads
    hps = _heads_per_step(n_heads, Dh)
    ng = n_heads // hps
    blk = hps * Dh
    kern = functools.partial(_attn_kernel, hps=hps, head_dim=Dh, scale=scale)
    return pl.pallas_call(
        kern,
        out_shape=jax.ShapeDtypeStruct((B, L, D), qkv.dtype),
        grid=(B, ng),
        in_specs=[
            pl.BlockSpec((1, L, blk), lambda bb, h: (bb, 0, h)),
            pl.BlockSpec((1, L, blk), lambda bb, h: (bb, 0, ng + h)),
            pl.BlockSpec((1, L, blk), lambda bb, h: (bb, 0, 2 * ng + h)),
        ],
        out_specs=pl.BlockSpec((1, L, blk), lambda bb, h: (bb, 0, h)),
        compiler_params=_compiler_params(("parallel", "parallel")),
    )(qkv, qkv, qkv)


# ---------------------------------------------------------------------------
# encode_image forward pass (glue: patch layout, class token)
# ---------------------------------------------------------------------------

def encode_image(params, image, *, n_heads, patch_size):
    B, C, Himg, Wimg = image.shape
    P = patch_size
    Gh, Gw = Himg // P, Wimg // P
    D = params["class_embedding"].shape[0]
    Dh = D // n_heads                          # static python ints
    scale = 1.0 / float(Dh) ** 0.5
    wdtype = params["conv_w"].dtype

    # --- conv1 patch embedding: stride-P conv, no bias == im2col + matmul.
    #     Cast to bf16 BEFORE the 6-D transpose; pad K to a multiple of 128.
    patches = image.astype(wdtype).reshape(B, C, Gh, P, Gw, P)
    patches = patches.transpose(0, 2, 4, 1, 3, 5).reshape(B * Gh * Gw, C * P * P)
    conv_w = params["conv_w"]
    K = C * P * P
    Kp = ((K + 127) // 128) * 128
    if Kp != K:
        patches = jnp.pad(patches, ((0, 0), (0, Kp - K)))
        conv_w = jnp.pad(conv_w, ((0, Kp - K), (0, 0)))
    zero_d = jnp.zeros((D,), wdtype)
    tok = linear(patches, conv_w, zero_d).reshape(B, Gh * Gw, D)

    # --- prepend class embedding; positional add is fused into ln_pre.
    cls = jnp.broadcast_to(params["class_embedding"].reshape(1, 1, D), (B, 1, D))
    x = jnp.concatenate([cls.astype(tok.dtype), tok], axis=1)       # (B, L, D)
    L = Gh * Gw + 1

    # --- fused (x + pos_emb) -> ln_pre
    x2 = add_pos_layernorm(x, params["positional_embedding"],
                           params["ln_pre_g"], params["ln_pre_b"])
    x2 = x2.reshape(B * L, D)

    # --- transformer (pre-LN residual blocks, no attention mask)
    for layer in params["layers"]:
        # x = x + attn(ln_1(x)): fused LN1+QKV, head-group attention,
        # out-proj fused with the residual add.
        qkv = ln_linear(x2, layer["ln1_g"], layer["ln1_b"],
                        layer["w_qkv"], layer["b_qkv"])             # (B*L, 3D)
        o = attention(qkv.reshape(B, L, 3 * D), n_heads=n_heads, scale=scale)
        x2 = linear(o.reshape(B * L, D), layer["wo"], layer["bo"], residual=x2)

        # x = x + mlp(ln_2(x)): single fused kernel (ln_2+fc+QuickGELU+proj+res).
        x2 = mlp_block(x2, layer["ln2_g"], layer["ln2_b"],
                       layer["w_fc"], layer["b_fc"],
                       layer["w_proj"], layer["b_proj"])

    # --- ln_post on the class token, then @ proj (fused LN + matmul)
    x_cls = x2.reshape(B, L, D)[:, 0, :]                            # (B, D)
    zero_e = jnp.zeros((params["proj"].shape[1],), jnp.float32)
    return ln_linear(x_cls, params["ln_post_g"], params["ln_post_b"],
                     params["proj"], zero_e, out_dtype=jnp.float32)  # (B, embed)


# ---------------------------------------------------------------------------
# Deterministic synthetic parameters (bf16 matmul operands)
# ---------------------------------------------------------------------------

def init_params(key, *, image_size, patch_size, width, n_heads, n_layers,
                embed_dim, in_ch=3, dtype=jnp.bfloat16):
    grid = image_size // patch_size
    seq = grid * grid + 1
    keys = iter(jax.random.split(key, 8 + 8 * n_layers))

    def nrm(shape, std=0.02):
        return (std * jax.random.normal(next(keys), shape)).astype(dtype)

    layers = []
    for _ in range(n_layers):
        layers.append(dict(
            ln1_g=jnp.ones((width,), jnp.float32),
            ln1_b=jnp.zeros((width,), jnp.float32),
            # fused QKV projection: columns ordered [q | k | v]
            w_qkv=nrm((width, 3 * width)), b_qkv=jnp.zeros((3 * width,), dtype),
            wo=nrm((width, width)), bo=jnp.zeros((width,), dtype),
            ln2_g=jnp.ones((width,), jnp.float32),
            ln2_b=jnp.zeros((width,), jnp.float32),
            w_fc=nrm((width, 4 * width)), b_fc=jnp.zeros((4 * width,), dtype),
            w_proj=nrm((4 * width, width)), b_proj=jnp.zeros((width,), dtype),
        ))

    return dict(
        # conv1 weight flattened to im2col layout (C*P*P, width); conv has no bias
        conv_w=nrm((in_ch * patch_size * patch_size, width)),
        class_embedding=nrm((width,)),
        positional_embedding=nrm((seq, width), std=0.01),
        ln_pre_g=jnp.ones((width,), jnp.float32),
        ln_pre_b=jnp.zeros((width,), jnp.float32),
        layers=layers,
        ln_post_g=jnp.ones((width,), jnp.float32),
        ln_post_b=jnp.zeros((width,), jnp.float32),
        proj=nrm((width, embed_dim)),
    )


# ---------------------------------------------------------------------------
if __name__ == "__main__":
    # Small shapes; width/heads chosen so the per-head attention blocks are
    # lane-aligned (head_dim = 128) while staying tiny overall.
    B, C, IMG, P = 2, 3, 16, 8          # batch, channels, image size, patch size
    D, H, NL, E = 256, 2, 2, 128        # width, heads, layers, embed dim

    resolve_single_buffering()          # eager probe (outside any jit trace)

    key = jax.random.PRNGKey(0)
    k_param, k_img = jax.random.split(key)
    params = init_params(k_param, image_size=IMG, patch_size=P, width=D,
                         n_heads=H, n_layers=NL, embed_dim=E)
    image = jax.random.normal(k_img, (B, C, IMG, IMG), jnp.float32)

    # n_heads / patch_size are static Python ints (closed over, not traced).
    fwd = jax.jit(functools.partial(encode_image, n_heads=H, patch_size=P))
    out = fwd(params, image)
    jax.block_until_ready(out)

    assert out.shape == (B, E) and out.dtype == jnp.float32
    print("KERNEL_OK")
</pallas_src>

<mosaic_0001>
module attributes {stable_mosaic.version = 11 : i64} {
  func.func @_probe_kernel(%arg0: i32, %arg1: memref<8x128xf32, #tpu.memory_space<vmem>>, %arg2: memref<8x128xf32, #tpu.memory_space<vmem>>, %arg3: memref<8x128xf32, #tpu.memory_space<vmem>>) attributes {dimension_semantics = [#tpu.dimension_semantics<arbitrary>], iteration_bounds = array<i64: 2>, scalar_prefetch = 0 : i64, scratch_operands = 0 : i64, tpu.core_type = #tpu.core_type<tc>, window_params = [{pipeline_mode = #tpu.pipeline_mode<synchronous>, transform_indices = @transform_0, window_bounds = array<i64: 8, 128>}, {transform_indices = @transform_1, window_bounds = array<i64: 8, 128>}, {transform_indices = @transform_2, window_bounds = array<i64: 8, 128>}]} {
    %c0 = arith.constant 0 : index
    %c0_0 = arith.constant 0 : index
    %0 = vector.load %arg2[%c0, %c0_0] : memref<8x128xf32, #tpu.memory_space<vmem>>, vector<8x128xf32>
    %c0_1 = arith.constant 0 : index
    %c0_2 = arith.constant 0 : index
    %1 = vector.load %arg1[%c0_1, %c0_2] : memref<8x128xf32, #tpu.memory_space<vmem>>, vector<8x128xf32>
    %2 = arith.addf %0, %1 : vector<8x128xf32>
    %c0_3 = arith.constant 0 : index
    %c0_4 = arith.constant 0 : index
    %3 = vector.load %arg3[%c0_3, %c0_4] : memref<8x128xf32, #tpu.memory_space<vmem>>, vector<8x128xf32>
    tpu.vector_store %arg3[%c0_3, %c0_4], %2 {strides = array<i32>} : memref<8x128xf32, #tpu.memory_space<vmem>>, vector<8x128xf32>,
    return
  }
  func.func @transform_0(%arg0: i32) -> (i32, i32) {
    %c0_i32 = arith.constant 0 : i32
    %c0_i32_0 = arith.constant 0 : i32
    %c0_i32_1 = arith.constant 0 : i32
    return %c0_i32, %c0_i32_0 : i32, i32
  }
  func.func @transform_1(%arg0: i32) -> (i32, i32) {
    %c0_i32 = arith.constant 0 : i32
    %c0_i32_0 = arith.constant 0 : i32
    return %arg0, %c0_i32 : i32, i32
  }
  func.func @transform_2(%arg0: i32) -> (i32, i32) {
    %c0_i32 = arith.constant 0 : i32
    %c0_i32_0 = arith.constant 0 : i32
    return %arg0, %c0_i32 : i32, i32
  }
}

module attributes {stable_mosaic.version = 11 : i64} {
  func.func @_ln_linear_kernel(%arg0: i32, %arg1: i32, %arg2: memref<10x256xbf16, #tpu.memory_space<vmem>>, %arg3: memref<1x256xf32, #tpu.memory_space<vmem>>, %arg4: memref<1x256xf32, #tpu.memory_space<vmem>>, %arg5: memref<256x768xbf16, #tpu.memory_space<vmem>>, %arg6: memref<1x768xbf16, #tpu.memory_space<vmem>>, %arg7: memref<10x768xbf16, #tpu.memory_space<vmem>>) attributes {dimension_semantics = [#tpu.dimension_semantics<parallel>, #tpu.dimension_semantics<parallel>], iteration_bounds = array<i64: 1, 1>, scalar_prefetch = 0 : i64, scratch_operands = 0 : i64, tpu.core_type = #tpu.core_type<tc>, window_params = [{transform_indices = @transform_0, window_bounds = array<i64: 10, 256>}, {pipeline_mode = #tpu.pipeline_mode<synchronous>, transform_indices = @transform_1, window_bounds = array<i64: 1, 256>}, {pipeline_mode = #tpu.pipeline_mode<synchronous>, transform_indices = @transform_2, window_bounds = array<i64: 1, 256>}, {transform_indices = @transform_3, window_bounds = array<i64: 256, 768>}, {transform_indices = @transform_4, window_bounds = array<i64: 1, 768>}, {transform_indices = @transform_5, window_bounds = array<i64: 10, 768>}]} {
    %c0 = arith.constant 0 : index
    %c0_0 = arith.constant 0 : index
    %0 = vector.load %arg2[%c0, %c0_0] : memref<10x256xbf16, #tpu.memory_space<vmem>>, vector<10x256xbf16>
    %1 = arith.extf %0 : vector<10x256xbf16> to vector<10x256xf32>
    %cst = arith.constant dense<0.000000e+00> : vector<10xf32>
    %2 = vector.multi_reduction <add>, %1, %cst [1] : vector<10x256xf32> to vector<10xf32>
    %3 = vector.shape_cast %2 : vector<10xf32> to vector<10x1xf32>
    %cst_1 = arith.constant 2.560000e+02 : f32
    %4 = vector.broadcast %cst_1 : f32 to vector<10x1xf32>
    %5 = arith.divf %3, %4 : vector<10x1xf32>
    %6 = vector.broadcast %5 : vector<10x1xf32> to vector<10x256xf32>
    %7 = arith.subf %1, %6 : vector<10x256xf32>
    %8 = arith.mulf %7, %7 : vector<10x256xf32>
    %cst_2 = arith.constant dense<0.000000e+00> : vector<10xf32>
    %9 = vector.multi_reduction <add>, %8, %cst_2 [1] : vector<10x256xf32> to vector<10xf32>
    %10 = vector.shape_cast %9 : vector<10xf32> to vector<10x1xf32>
    %cst_3 = arith.constant 2.560000e+02 : f32
    %11 = vector.broadcast %cst_3 : f32 to vector<10x1xf32>
    %12 = arith.divf %10, %11 : vector<10x1xf32>
    %cst_4 = arith.constant 9.99999974E-6 : f32
    %13 = vector.broadcast %cst_4 : f32 to vector<10x1xf32>
    %14 = arith.addf %12, %13 : vector<10x1xf32>
    %15 = math.rsqrt %14 : vector<10x1xf32>
    %16 = vector.broadcast %15 : vector<10x1xf32> to vector<10x256xf32>
    %17 = arith.mulf %7, %16 : vector<10x256xf32>
    %c0_5 = arith.constant 0 : index
    %c0_6 = arith.constant 0 : index
    %18 = vector.load %arg3[%c0_5, %c0_6] : memref<1x256xf32, #tpu.memory_space<vmem>>, vector<1x256xf32>
    %19 = vector.broadcast %18 : vector<1x256xf32> to vector<10x256xf32>
    %20 = arith.mulf %17, %19 : vector<10x256xf32>
    %c0_7 = arith.constant 0 : index
    %c0_8 = arith.constant 0 : index
    %21 = vector.load %arg4[%c0_7, %c0_8] : memref<1x256xf32, #tpu.memory_space<vmem>>, vector<1x256xf32>
    %22 = vector.broadcast %21 : vector<1x256xf32> to vector<10x256xf32>
    %23 = arith.addf %20, %22 : vector<10x256xf32>
    %24 = arith.truncf %23 : vector<10x256xf32> to vector<10x256xbf16>
    %c0_9 = arith.constant 0 : index
    %c0_10 = arith.constant 0 : index
    %25 = vector.load %arg5[%c0_9, %c0_10] : memref<256x768xbf16, #tpu.memory_space<vmem>>, vector<256x768xbf16>
    %cst_11 = arith.constant dense<0.000000e+00> : vector<10x768xf32>
    %26 = tpu.matmul %24, %25, %cst_11 {dimension_numbers = #tpu.dot_dimension_numbers<[1], [0], [0], [1], [0, 0, 1, 1], [], []>} : vector<10x256xbf16>, vector<256x768xbf16>, vector<10x768xf32> -> vector<10x768xf32>
    %c0_12 = arith.constant 0 : index
    %c0_13 = arith.constant 0 : index
    %27 = vector.load %arg6[%c0_12, %c0_13] : memref<1x768xbf16, #tpu.memory_space<vmem>>, vector<1x768xbf16>
    %28 = arith.extf %27 : vector<1x768xbf16> to vector<1x768xf32>
    %29 = vector.broadcast %28 : vector<1x768xf32> to vector<10x768xf32>
    %30 = arith.addf %26, %29 : vector<10x768xf32>
    %31 = arith.truncf %30 : vector<10x768xf32> to vector<10x768xbf16>
    %c0_14 = arith.constant 0 : index
    %c0_15 = arith.constant 0 : index
    %32 = vector.load %arg7[%c0_14, %c0_15] : memref<10x768xbf16, #tpu.memory_space<vmem>>, vector<10x768xbf16>
    tpu.vector_store %arg7[%c0_14, %c0_15], %31 {strides = array<i32>} : memref<10x768xbf16, #tpu.memory_space<vmem>>, vector<10x768xbf16>,
    return
  }
  func.func @transform_0(%arg0: i32, %arg1: i32) -> (i32, i32) {
    %c0_i32 = arith.constant 0 : i32
    %c0_i32_0 = arith.constant 0 : i32
    return %arg0, %c0_i32 : i32, i32
  }
  func.func @transform_1(%arg0: i32, %arg1: i32) -> (i32, i32) {
    %c0_i32 = arith.constant 0 : i32
    %c0_i32_0 = arith.constant 0 : i32
    %c0_i32_1 = arith.constant 0 : i32
    return %c0_i32, %c0_i32_0 : i32, i32
  }
  func.func @transform_2(%arg0: i32, %arg1: i32) -> (i32, i32) {
    %c0_i32 = arith.constant 0 : i32
    %c0_i32_0 = arith.constant 0 : i32
    %c0_i32_1 = arith.constant 0 : i32
    return %c0_i32, %c0_i32_0 : i32, i32
  }
  func.func @transform_3(%arg0: i32, %arg1: i32) -> (i32, i32) {
    %c0_i32 = arith.constant 0 : i32
    %c0_i32_0 = arith.constant 0 : i32
    return %c0_i32, %arg1 : i32, i32
  }
  func.func @transform_4(%arg0: i32, %arg1: i32) -> (i32, i32) {
    %c0_i32 = arith.constant 0 : i32
    %c0_i32_0 = arith.constant 0 : i32
    return %c0_i32, %arg1 : i32, i32
  }
  func.func @transform_5(%arg0: i32, %arg1: i32) -> (i32, i32) {
    %c0_i32 = arith.constant 0 : i32
    return %arg0, %arg1 : i32, i32
  }
}

module attributes {stable_mosaic.version = 11 : i64} {
  func.func @_linear_kernel(%arg0: i32, %arg1: i32, %arg2: memref<8x256xbf16, #tpu.memory_space<vmem>>, %arg3: memref<256x256xbf16, #tpu.memory_space<vmem>>, %arg4: memref<1x256xbf16, #tpu.memory_space<vmem>>, %arg5: memref<8x256xbf16, #tpu.memory_space<vmem>>) attributes {dimension_semantics = [#tpu.dimension_semantics<parallel>, #tpu.dimension_semantics<parallel>], iteration_bounds = array<i64: 1, 1>, scalar_prefetch = 0 : i64, scratch_operands = 0 : i64, tpu.core_type = #tpu.core_type<tc>, window_params = [{transform_indices = @transform_0, window_bounds = array<i64: 8, 256>}, {transform_indices = @transform_1, window_bounds = array<i64: 256, 256>}, {transform_indices = @transform_2, window_bounds = array<i64: 1, 256>}, {transform_indices = @transform_3, window_bounds = array<i64: 8, 256>}]} {
    %c0 = arith.constant 0 : index
    %c0_0 = arith.constant 0 : index
    %0 = vector.load %arg2[%c0, %c0_0] : memref<8x256xbf16, #tpu.memory_space<vmem>>, vector<8x256xbf16>
    %c0_1 = arith.constant 0 : index
    %c0_2 = arith.constant 0 : index
    %1 = vector.load %arg3[%c0_1, %c0_2] : memref<256x256xbf16, #tpu.memory_space<vmem>>, vector<256x256xbf16>
    %cst = arith.constant dense<0.000000e+00> : vector<8x256xf32>
    %2 = tpu.matmul %0, %1, %cst {dimension_numbers = #tpu.dot_dimension_numbers<[1], [0], [0], [1], [0, 0, 1, 1], [], []>} : vector<8x256xbf16>, vector<256x256xbf16>, vector<8x256xf32> -> vector<8x256xf32>
    %c0_3 = arith.constant 0 : index
    %c0_4 = arith.constant 0 : index
    %3 = vector.load %arg4[%c0_3, %c0_4] : memref<1x256xbf16, #tpu.memory_space<vmem>>, vector<1x256xbf16>
    %4 = arith.extf %3 : vector<1x256xbf16> to vector<1x256xf32>
    %5 = vector.broadcast %4 : vector<1x256xf32> to vector<8x256xf32>
    %6 = arith.addf %2, %5 : vector<8x256xf32>
    %7 = arith.truncf %6 : vector<8x256xf32> to vector<8x256xbf16>
    %c0_5 = arith.constant 0 : index
    %c0_6 = arith.constant 0 : index
    %8 = vector.load %arg5[%c0_5, %c0_6] : memref<8x256xbf16, #tpu.memory_space<vmem>>, vector<8x256xbf16>
    tpu.vector_store %arg5[%c0_5, %c0_6], %7 {strides = array<i32>} : memref<8x256xbf16, #tpu.memory_space<vmem>>, vector<8x256xbf16>,
    return
  }
  func.func @transform_0(%arg0: i32, %arg1: i32) -> (i32, i32) {
    %c0_i32 = arith.constant 0 : i32
    %c0_i32_0 = arith.constant 0 : i32
    return %arg0, %c0_i32 : i32, i32
  }
  func.func @transform_1(%arg0: i32, %arg1: i32) -> (i32, i32) {
    %c0_i32 = arith.constant 0 : i32
    %c0_i32_0 = arith.constant 0 : i32
    return %c0_i32, %arg1 : i32, i32
  }
  func.func @transform_2(%arg0: i32, %arg1: i32) -> (i32, i32) {
    %c0_i32 = arith.constant 0 : i32
    %c0_i32_0 = arith.constant 0 : i32
    return %c0_i32, %arg1 : i32, i32
  }
  func.func @transform_3(%arg0: i32, %arg1: i32) -> (i32, i32) {
    %c0_i32 = arith.constant 0 : i32
    return %arg0, %arg1 : i32, i32
  }
}

module attributes {stable_mosaic.version = 11 : i64} {
  func.func @_add_pos_ln_kernel(%arg0: i32, %arg1: i32, %arg2: memref<1x5x256xbf16, #tpu.memory_space<vmem>>, %arg3: memref<5x256xbf16, #tpu.memory_space<vmem>>, %arg4: memref<1x256xf32, #tpu.memory_space<vmem>>, %arg5: memref<1x256xf32, #tpu.memory_space<vmem>>, %arg6: memref<1x5x256xbf16, #tpu.memory_space<vmem>>) attributes {dimension_semantics = [#tpu.dimension_semantics<parallel>, #tpu.dimension_semantics<parallel>], iteration_bounds = array<i64: 2, 1>, scalar_prefetch = 0 : i64, scratch_operands = 0 : i64, tpu.core_type = #tpu.core_type<tc>, window_params = [{transform_indices = @transform_0, window_bounds = array<i64: 1, 5, 256>}, {transform_indices = @transform_1, window_bounds = array<i64: 5, 256>}, {pipeline_mode = #tpu.pipeline_mode<synchronous>, transform_indices = @transform_2, window_bounds = array<i64: 1, 256>}, {pipeline_mode = #tpu.pipeline_mode<synchronous>, transform_indices = @transform_3, window_bounds = array<i64: 1, 256>}, {transform_indices = @transform_4, window_bounds = array<i64: 1, 5, 256>}]} {
    %c0 = arith.constant 0 : index
    %c0_0 = arith.constant 0 : index
    %c0_1 = arith.constant 0 : index
    %0 = vector.load %arg2[%c0, %c0_0, %c0_1] : memref<1x5x256xbf16, #tpu.memory_space<vmem>>, vector<1x5x256xbf16>
    %1 = vector.shape_cast %0 : vector<1x5x256xbf16> to vector<5x256xbf16>
    %2 = arith.extf %1 : vector<5x256xbf16> to vector<5x256xf32>
    %c0_2 = arith.constant 0 : index
    %c0_3 = arith.constant 0 : index
    %3 = vector.load %arg3[%c0_2, %c0_3] : memref<5x256xbf16, #tpu.memory_space<vmem>>, vector<5x256xbf16>
    %4 = arith.extf %3 : vector<5x256xbf16> to vector<5x256xf32>
    %5 = arith.addf %2, %4 : vector<5x256xf32>
    %cst = arith.constant dense<0.000000e+00> : vector<5xf32>
    %6 = vector.multi_reduction <add>, %5, %cst [1] : vector<5x256xf32> to vector<5xf32>
    %7 = vector.shape_cast %6 : vector<5xf32> to vector<5x1xf32>
    %cst_4 = arith.constant 2.560000e+02 : f32
    %8 = vector.broadcast %cst_4 : f32 to vector<5x1xf32>
    %9 = arith.divf %7, %8 : vector<5x1xf32>
    %10 = vector.broadcast %9 : vector<5x1xf32> to vector<5x256xf32>
    %11 = arith.subf %5, %10 : vector<5x256xf32>
    %12 = arith.mulf %11, %11 : vector<5x256xf32>
    %cst_5 = arith.constant dense<0.000000e+00> : vector<5xf32>
    %13 = vector.multi_reduction <add>, %12, %cst_5 [1] : vector<5x256xf32> to vector<5xf32>
    %14 = vector.shape_cast %13 : vector<5xf32> to vector<5x1xf32>
    %cst_6 = arith.constant 2.560000e+02 : f32
    %15 = vector.broadcast %cst_6 : f32 to vector<5x1xf32>
    %16 = arith.divf %14, %15 : vector<5x1xf32>
    %cst_7 = arith.constant 9.99999974E-6 : f32
    %17 = vector.broadcast %cst_7 : f32 to vector<5x1xf32>
    %18 = arith.addf %16, %17 : vector<5x1xf32>
    %19 = math.rsqrt %18 : vector<5x1xf32>
    %20 = vector.broadcast %19 : vector<5x1xf32> to vector<5x256xf32>
    %21 = arith.mulf %11, %20 : vector<5x256xf32>
    %c0_8 = arith.constant 0 : index
    %c0_9 = arith.constant 0 : index
    %22 = vector.load %arg4[%c0_8, %c0_9] : memref<1x256xf32, #tpu.memory_space<vmem>>, vector<1x256xf32>
    %23 = vector.broadcast %22 : vector<1x256xf32> to vector<5x256xf32>
    %24 = arith.mulf %21, %23 : vector<5x256xf32>
    %c0_10 = arith.constant 0 : index
    %c0_11 = arith.constant 0 : index
    %25 = vector.load %arg5[%c0_10, %c0_11] : memref<1x256xf32, #tpu.memory_space<vmem>>, vector<1x256xf32>
    %26 = vector.broadcast %25 : vector<1x256xf32> to vector<5x256xf32>
    %27 = arith.addf %24, %26 : vector<5x256xf32>
    %28 = arith.truncf %27 : vector<5x256xf32> to vector<5x256xbf16>
    %c0_12 = arith.constant 0 : index
    %c0_13 = arith.constant 0 : index
    %c0_14 = arith.constant 0 : index
    %29 = vector.load %arg6[%c0_12, %c0_13, %c0_14] : memref<1x5x256xbf16, #tpu.memory_space<vmem>>, vector<1x5x256xbf16>
    %30 = vector.shape_cast %29 : vector<1x5x256xbf16> to vector<5x256xbf16>
    %31 = vector.shape_cast %28 : vector<5x256xbf16> to vector<1x5x256xbf16>
    tpu.vector_store %arg6[%c0_12, %c0_13, %c0_14], %31 {strides = array<i32>} : memref<1x5x256xbf16, #tpu.memory_space<vmem>>, vector<1x5x256xbf16>,
    return
  }
  func.func @transform_0(%arg0: i32, %arg1: i32) -> (i32, i32, i32) {
    %c0_i32 = arith.constant 0 : i32
    %c0_i32_0 = arith.constant 0 : i32
    return %arg0, %arg1, %c0_i32 : i32, i32, i32
  }
  func.func @transform_1(%arg0: i32, %arg1: i32) -> (i32, i32) {
    %c0_i32 = arith.constant 0 : i32
    %c0_i32_0 = arith.constant 0 : i32
    return %arg1, %c0_i32 : i32, i32
  }
  func.func @transform_2(%arg0: i32, %arg1: i32) -> (i32, i32) {
    %c0_i32 = arith.constant 0 : i32
    %c0_i32_0 = arith.constant 0 : i32
    %c0_i32_1 = arith.constant 0 : i32
    return %c0_i32, %c0_i32_0 : i32, i32
  }
  func.func @transform_3(%arg0: i32, %arg1: i32) -> (i32, i32) {
    %c0_i32 = arith.constant 0 : i32
    %c0_i32_0 = arith.constant 0 : i32
    %c0_i32_1 = arith.constant 0 : i32
    return %c0_i32, %c0_i32_0 : i32, i32
  }
  func.func @transform_4(%arg0: i32, %arg1: i32) -> (i32, i32, i32) {
    %c0_i32 = arith.constant 0 : i32
    %c0_i32_0 = arith.constant 0 : i32
    return %arg0, %arg1, %c0_i32 : i32, i32, i32
  }
}

module attributes {stable_mosaic.version = 11 : i64} {
  func.func @_attn_kernel(%arg0: i32, %arg1: i32, %arg2: memref<1x5x128xbf16, #tpu.memory_space<vmem>>, %arg3: memref<1x5x128xbf16, #tpu.memory_space<vmem>>, %arg4: memref<1x5x128xbf16, #tpu.memory_space<vmem>>, %arg5: memref<1x5x128xbf16, #tpu.memory_space<vmem>>) attributes {dimension_semantics = [#tpu.dimension_semantics<parallel>, #tpu.dimension_semantics<parallel>], iteration_bounds = array<i64: 2, 2>, scalar_prefetch = 0 : i64, scratch_operands = 0 : i64, tpu.core_type = #tpu.core_type<tc>, window_params = [{transform_indices = @transform_0, window_bounds = array<i64: 1, 5, 128>}, {transform_indices = @transform_1, window_bounds = array<i64: 1, 5, 128>}, {transform_indices = @transform_2, window_bounds = array<i64: 1, 5, 128>}, {transform_indices = @transform_3, window_bounds = array<i64: 1, 5, 128>}]} {
    %c0 = arith.constant 0 : index
    %c0_0 = arith.constant 0 : index
    %c0_1 = arith.constant 0 : index
    %0 = vector.load %arg2[%c0, %c0_0, %c0_1] : memref<1x5x128xbf16, #tpu.memory_space<vmem>>, vector<1x5x128xbf16>
    %1 = vector.shape_cast %0 : vector<1x5x128xbf16> to vector<5x128xbf16>
    %cst = arith.constant 8.837890e-02 : bf16
    %2 = vector.broadcast %cst : bf16 to vector<5x128xbf16>
    %3 = arith.mulf %1, %2 : vector<5x128xbf16>
    %c0_2 = arith.constant 0 : index
    %c0_3 = arith.constant 0 : index
    %c0_4 = arith.constant 0 : index
    %4 = vector.load %arg3[%c0_2, %c0_3, %c0_4] : memref<1x5x128xbf16, #tpu.memory_space<vmem>>, vector<1x5x128xbf16>
    %5 = vector.shape_cast %4 : vector<1x5x128xbf16> to vector<5x128xbf16>
    %c0_5 = arith.constant 0 : index
    %c0_6 = arith.constant 0 : index
    %c0_7 = arith.constant 0 : index
    %6 = vector.load %arg4[%c0_5, %c0_6, %c0_7] : memref<1x5x128xbf16, #tpu.memory_space<vmem>>, vector<1x5x128xbf16>
    %7 = vector.shape_cast %6 : vector<1x5x128xbf16> to vector<5x128xbf16>
    %cst_8 = arith.constant dense<0.000000e+00> : vector<5x5xf32>
    %8 = tpu.matmul %3, %5, %cst_8 {dimension_numbers = #tpu.dot_dimension_numbers<[1], [1], [0], [0], [0, 0, 1, 0], [], []>} : vector<5x128xbf16>, vector<5x128xbf16>, vector<5x5xf32> -> vector<5x5xf32>
    %cst_9 = arith.constant dense<0xFF800000> : vector<5xf32>
    %9 = vector.multi_reduction <maximumf>, %8, %cst_9 [1] : vector<5x5xf32> to vector<5xf32>
    %10 = vector.shape_cast %9 : vector<5xf32> to vector<5x1xf32>
    %11 = vector.broadcast %10 : vector<5x1xf32> to vector<5x5xf32>
    %12 = arith.subf %8, %11 : vector<5x5xf32>
    %13 = math.exp %12 : vector<5x5xf32>
    %cst_10 = arith.constant dense<0.000000e+00> : vector<5xf32>
    %14 = vector.multi_reduction <add>, %13, %cst_10 [1] : vector<5x5xf32> to vector<5xf32>
    %15 = vector.shape_cast %14 : vector<5xf32> to vector<5x1xf32>
    %16 = tpu.reciprocal %15 {approx = true} : vector<5x1xf32> -> vector<5x1xf32>
    %17 = vector.broadcast %16 : vector<5x1xf32> to vector<5x5xf32>
    %18 = arith.mulf %13, %17 : vector<5x5xf32>
    %19 = arith.truncf %18 : vector<5x5xf32> to vector<5x5xbf16>
    %cst_11 = arith.constant dense<0.000000e+00> : vector<5x128xf32>
    %20 = tpu.matmul %19, %7, %cst_11 {dimension_numbers = #tpu.dot_dimension_numbers<[1], [0], [0], [1], [0, 0, 1, 1], [], []>} : vector<5x5xbf16>, vector<5x128xbf16>, vector<5x128xf32> -> vector<5x128xf32>
    %21 = arith.truncf %20 : vector<5x128xf32> to vector<5x128xbf16>
    %c0_12 = arith.constant 0 : index
    %c0_13 = arith.constant 0 : index
    %c0_14 = arith.constant 0 : index
    %22 = vector.load %arg5[%c0_12, %c0_13, %c0_14] : memref<1x5x128xbf16, #tpu.memory_space<vmem>>, vector<1x5x128xbf16>
    %23 = vector.shape_cast %22 : vector<1x5x128xbf16> to vector<5x128xbf16>
    %24 = vector.shape_cast %21 : vector<5x128xbf16> to vector<1x5x128xbf16>
    tpu.vector_store %arg5[%c0_12, %c0_13, %c0_14], %24 {strides = array<i32>} : memref<1x5x128xbf16, #tpu.memory_space<vmem>>, vector<1x5x128xbf16>,
    return
  }
  func.func @transform_0(%arg0: i32, %arg1: i32) -> (i32, i32, i32) {
    %c0_i32 = arith.constant 0 : i32
    %c0_i32_0 = arith.constant 0 : i32
    return %arg0, %c0_i32, %arg1 : i32, i32, i32
  }
  func.func @transform_1(%arg0: i32, %arg1: i32) -> (i32, i32, i32) {
    %c2_i32 = arith.constant 2 : i32
    %0 = arith.addi %c2_i32, %arg1 : i32
    %c0_i32 = arith.constant 0 : i32
    %c0_i32_0 = arith.constant 0 : i32
    return %arg0, %c0_i32, %0 : i32, i32, i32
  }
  func.func @transform_2(%arg0: i32, %arg1: i32) -> (i32, i32, i32) {
    %c4_i32 = arith.constant 4 : i32
    %0 = arith.addi %c4_i32, %arg1 : i32
    %c0_i32 = arith.constant 0 : i32
    %c0_i32_0 = arith.constant 0 : i32
    return %arg0, %c0_i32, %0 : i32, i32, i32
  }
  func.func @transform_3(%arg0: i32, %arg1: i32) -> (i32, i32, i32) {
    %c0_i32 = arith.constant 0 : i32
    %c0_i32_0 = arith.constant 0 : i32
    return %arg0, %c0_i32, %arg1 : i32, i32, i32
  }
}

module attributes {stable_mosaic.version = 11 : i64} {
  func.func @_linear_kernel(%arg0: i32, %arg1: i32, %arg2: memref<10x256xbf16, #tpu.memory_space<vmem>>, %arg3: memref<256x256xbf16, #tpu.memory_space<vmem>>, %arg4: memref<1x256xbf16, #tpu.memory_space<vmem>>, %arg5: memref<10x256xbf16, #tpu.memory_space<vmem>>, %arg6: memref<10x256xbf16, #tpu.memory_space<vmem>>) attributes {dimension_semantics = [#tpu.dimension_semantics<parallel>, #tpu.dimension_semantics<parallel>], iteration_bounds = array<i64: 1, 1>, scalar_prefetch = 0 : i64, scratch_operands = 0 : i64, tpu.core_type = #tpu.core_type<tc>, window_params = [{transform_indices = @transform_0, window_bounds = array<i64: 10, 256>}, {transform_indices = @transform_1, window_bounds = array<i64: 256, 256>}, {transform_indices = @transform_2, window_bounds = array<i64: 1, 256>}, {transform_indices = @transform_3, window_bounds = array<i64: 10, 256>}, {transform_indices = @transform_4, window_bounds = array<i64: 10, 256>}]} {
    %c0 = arith.constant 0 : index
    %c0_0 = arith.constant 0 : index
    %0 = vector.load %arg2[%c0, %c0_0] : memref<10x256xbf16, #tpu.memory_space<vmem>>, vector<10x256xbf16>
    %c0_1 = arith.constant 0 : index
    %c0_2 = arith.constant 0 : index
    %1 = vector.load %arg3[%c0_1, %c0_2] : memref<256x256xbf16, #tpu.memory_space<vmem>>, vector<256x256xbf16>
    %cst = arith.constant dense<0.000000e+00> : vector<10x256xf32>
    %2 = tpu.matmul %0, %1, %cst {dimension_numbers = #tpu.dot_dimension_numbers<[1], [0], [0], [1], [0, 0, 1, 1], [], []>} : vector<10x256xbf16>, vector<256x256xbf16>, vector<10x256xf32> -> vector<10x256xf32>
    %c0_3 = arith.constant 0 : index
    %c0_4 = arith.constant 0 : index
    %3 = vector.load %arg4[%c0_3, %c0_4] : memref<1x256xbf16, #tpu.memory_space<vmem>>, vector<1x256xbf16>
    %4 = arith.extf %3 : vector<1x256xbf16> to vector<1x256xf32>
    %5 = vector.broadcast %4 : vector<1x256xf32> to vector<10x256xf32>
    %6 = arith.addf %2, %5 : vector<10x256xf32>
    %c0_5 = arith.constant 0 : index
    %c0_6 = arith.constant 0 : index
    %7 = vector.load %arg5[%c0_5, %c0_6] : memref<10x256xbf16, #tpu.memory_space<vmem>>, vector<10x256xbf16>
    %8 = arith.extf %7 : vector<10x256xbf16> to vector<10x256xf32>
    %9 = arith.addf %6, %8 : vector<10x256xf32>
    %10 = arith.truncf %9 : vector<10x256xf32> to vector<10x256xbf16>
    %c0_7 = arith.constant 0 : index
    %c0_8 = arith.constant 0 : index
    %11 = vector.load %arg6[%c0_7, %c0_8] : memref<10x256xbf16, #tpu.memory_space<vmem>>, vector<10x256xbf16>
    tpu.vector_store %arg6[%c0_7, %c0_8], %10 {strides = array<i32>} : memref<10x256xbf16, #tpu.memory_space<vmem>>, vector<10x256xbf16>,
    return
  }
  func.func @transform_0(%arg0: i32, %arg1: i32) -> (i32, i32) {
    %c0_i32 = arith.constant 0 : i32
    %c0_i32_0 = arith.constant 0 : i32
    return %arg0, %c0_i32 : i32, i32
  }
  func.func @transform_1(%arg0: i32, %arg1: i32) -> (i32, i32) {
    %c0_i32 = arith.constant 0 : i32
    %c0_i32_0 = arith.constant 0 : i32
    return %c0_i32, %arg1 : i32, i32
  }
  func.func @transform_2(%arg0: i32, %arg1: i32) -> (i32, i32) {
    %c0_i32 = arith.constant 0 : i32
    %c0_i32_0 = arith.constant 0 : i32
    return %c0_i32, %arg1 : i32, i32
  }
  func.func @transform_3(%arg0: i32, %arg1: i32) -> (i32, i32) {
    %c0_i32 = arith.constant 0 : i32
    return %arg0, %arg1 : i32, i32
  }
  func.func @transform_4(%arg0: i32, %arg1: i32) -> (i32, i32) {
    %c0_i32 = arith.constant 0 : i32
    return %arg0, %arg1 : i32, i32
  }
}

module attributes {stable_mosaic.version = 11 : i64} {
  func.func @_mlp_kernel(%arg0: i32, %arg1: i32, %arg2: memref<10x256xbf16, #tpu.memory_space<vmem>>, %arg3: memref<1x256xf32, #tpu.memory_space<vmem>>, %arg4: memref<1x256xf32, #tpu.memory_space<vmem>>, %arg5: memref<256x512xbf16, #tpu.memory_space<vmem>>, %arg6: memref<1x512xbf16, #tpu.memory_space<vmem>>, %arg7: memref<512x256xbf16, #tpu.memory_space<vmem>>, %arg8: memref<1x256xbf16, #tpu.memory_space<vmem>>, %arg9: memref<10x256xbf16, #tpu.memory_space<vmem>>, %arg10: memref<10x256xbf16, #tpu.memory_space<vmem>>, %arg11: memref<10x256xf32, #tpu.memory_space<vmem>>) attributes {dimension_semantics = [#tpu.dimension_semantics<parallel>, #tpu.dimension_semantics<arbitrary>], iteration_bounds = array<i64: 1, 2>, scalar_prefetch = 0 : i64, scratch_operands = 2 : i64, tpu.core_type = #tpu.core_type<tc>, window_params = [{transform_indices = @transform_0, window_bounds = array<i64: 10, 256>}, {pipeline_mode = #tpu.pipeline_mode<synchronous>, transform_indices = @transform_1, window_bounds = array<i64: 1, 256>}, {pipeline_mode = #tpu.pipeline_mode<synchronous>, transform_indices = @transform_2, window_bounds = array<i64: 1, 256>}, {transform_indices = @transform_3, window_bounds = array<i64: 256, 512>}, {transform_indices = @transform_4, window_bounds = array<i64: 1, 512>}, {transform_indices = @transform_5, window_bounds = array<i64: 512, 256>}, {pipeline_mode = #tpu.pipeline_mode<synchronous>, transform_indices = @transform_6, window_bounds = array<i64: 1, 256>}, {transform_indices = @transform_7, window_bounds = array<i64: 10, 256>}]} {
    %c0_i32 = arith.constant 0 : i32
    %0 = arith.cmpi eq, %arg1, %c0_i32 : i32
    %1 = arith.extui %0 : i1 to i32
    %c0_i32_0 = arith.constant 0 : i32
    %2 = arith.cmpi ne, %1, %c0_i32_0 : i32
    scf.if %2 {
      %c0_16 = arith.constant 0 : index
      %c0_17 = arith.constant 0 : index
      %27 = vector.load %arg2[%c0_16, %c0_17] : memref<10x256xbf16, #tpu.memory_space<vmem>>, vector<10x256xbf16>
      %28 = arith.extf %27 : vector<10x256xbf16> to vector<10x256xf32>
      %cst_18 = arith.constant dense<0.000000e+00> : vector<10xf32>
      %29 = vector.multi_reduction <add>, %28, %cst_18 [1] : vector<10x256xf32> to vector<10xf32>
      %30 = vector.shape_cast %29 : vector<10xf32> to vector<10x1xf32>
      %cst_19 = arith.constant 2.560000e+02 : f32
      %31 = vector.broadcast %cst_19 : f32 to vector<10x1xf32>
      %32 = arith.divf %30, %31 : vector<10x1xf32>
      %33 = vector.broadcast %32 : vector<10x1xf32> to vector<10x256xf32>
      %34 = arith.subf %28, %33 : vector<10x256xf32>
      %35 = arith.mulf %34, %34 : vector<10x256xf32>
      %cst_20 = arith.constant dense<0.000000e+00> : vector<10xf32>
      %36 = vector.multi_reduction <add>, %35, %cst_20 [1] : vector<10x256xf32> to vector<10xf32>
      %37 = vector.shape_cast %36 : vector<10xf32> to vector<10x1xf32>
      %cst_21 = arith.constant 2.560000e+02 : f32
      %38 = vector.broadcast %cst_21 : f32 to vector<10x1xf32>
      %39 = arith.divf %37, %38 : vector<10x1xf32>
      %cst_22 = arith.constant 9.99999974E-6 : f32
      %40 = vector.broadcast %cst_22 : f32 to vector<10x1xf32>
      %41 = arith.addf %39, %40 : vector<10x1xf32>
      %42 = math.rsqrt %41 : vector<10x1xf32>
      %43 = vector.broadcast %42 : vector<10x1xf32> to vector<10x256xf32>
      %44 = arith.mulf %34, %43 : vector<10x256xf32>
      %c0_23 = arith.constant 0 : index
      %c0_24 = arith.constant 0 : index
      %45 = vector.load %arg3[%c0_23, %c0_24] : memref<1x256xf32, #tpu.memory_space<vmem>>, vector<1x256xf32>
      %46 = vector.broadcast %45 : vector<1x256xf32> to vector<10x256xf32>
      %47 = arith.mulf %44, %46 : vector<10x256xf32>
      %c0_25 = arith.constant 0 : index
      %c0_26 = arith.constant 0 : index
      %48 = vector.load %arg4[%c0_25, %c0_26] : memref<1x256xf32, #tpu.memory_space<vmem>>, vector<1x256xf32>
      %49 = vector.broadcast %48 : vector<1x256xf32> to vector<10x256xf32>
      %50 = arith.addf %47, %49 : vector<10x256xf32>
      %51 = arith.truncf %50 : vector<10x256xf32> to vector<10x256xbf16>
      %c0_27 = arith.constant 0 : index
      %c0_28 = arith.constant 0 : index
      %52 = vector.load %arg10[%c0_27, %c0_28] : memref<10x256xbf16, #tpu.memory_space<vmem>>, vector<10x256xbf16>
      tpu.vector_store %arg10[%c0_27, %c0_28], %51 {strides = array<i32>} : memref<10x256xbf16, #tpu.memory_space<vmem>>, vector<10x256xbf16>,
      %cst_29 = arith.constant 0.000000e+00 : f32
      %53 = vector.broadcast %cst_29 : f32 to vector<10x256xf32>
      %c0_30 = arith.constant 0 : index
      %c0_31 = arith.constant 0 : index
      %54 = vector.load %arg11[%c0_30, %c0_31] : memref<10x256xf32, #tpu.memory_space<vmem>>, vector<10x256xf32>
      tpu.vector_store %arg11[%c0_30, %c0_31], %53 {strides = array<i32>} : memref<10x256xf32, #tpu.memory_space<vmem>>, vector<10x256xf32>,
    } else {
    }
    %c0 = arith.constant 0 : index
    %c0_1 = arith.constant 0 : index
    %3 = vector.load %arg10[%c0, %c0_1] : memref<10x256xbf16, #tpu.memory_space<vmem>>, vector<10x256xbf16>
    %c0_2 = arith.constant 0 : index
    %c0_3 = arith.constant 0 : index
    %4 = vector.load %arg5[%c0_2, %c0_3] : memref<256x512xbf16, #tpu.memory_space<vmem>>, vector<256x512xbf16>
    %cst = arith.constant dense<0.000000e+00> : vector<10x512xf32>
    %5 = tpu.matmul %3, %4, %cst {dimension_numbers = #tpu.dot_dimension_numbers<[1], [0], [0], [1], [0, 0, 1, 1], [], []>} : vector<10x256xbf16>, vector<256x512xbf16>, vector<10x512xf32> -> vector<10x512xf32>
    %c0_4 = arith.constant 0 : index
    %c0_5 = arith.constant 0 : index
    %6 = vector.load %arg6[%c0_4, %c0_5] : memref<1x512xbf16, #tpu.memory_space<vmem>>, vector<1x512xbf16>
    %7 = arith.extf %6 : vector<1x512xbf16> to vector<1x512xf32>
    %8 = vector.broadcast %7 : vector<1x512xf32> to vector<10x512xf32>
    %9 = arith.addf %5, %8 : vector<10x512xf32>
    %cst_6 = arith.constant 1.702000e+00 : f32
    %10 = vector.broadcast %cst_6 : f32 to vector<10x512xf32>
    %11 = arith.mulf %10, %9 : vector<10x512xf32>
    %12 = arith.negf %11 : vector<10x512xf32>
    %13 = math.exp %12 : vector<10x512xf32>
    %cst_7 = arith.constant 1.000000e+00 : f32
    %14 = vector.broadcast %cst_7 : f32 to vector<10x512xf32>
    %15 = arith.addf %14, %13 : vector<10x512xf32>
    %16 = arith.divf %14, %15 : vector<10x512xf32>
    %17 = arith.mulf %9, %16 : vector<10x512xf32>
    %c0_8 = arith.constant 0 : index
    %c0_9 = arith.constant 0 : index
    %18 = vector.load %arg11[%c0_8, %c0_9] : memref<10x256xf32, #tpu.memory_space<vmem>>, vector<10x256xf32>
    %19 = arith.truncf %17 : vector<10x512xf32> to vector<10x512xbf16>
    %c0_10 = arith.constant 0 : index
    %c0_11 = arith.constant 0 : index
    %20 = vector.load %arg7[%c0_10, %c0_11] : memref<512x256xbf16, #tpu.memory_space<vmem>>, vector<512x256xbf16>
    %cst_12 = arith.constant dense<0.000000e+00> : vector<10x256xf32>
    %21 = tpu.matmul %19, %20, %cst_12 {dimension_numbers = #tpu.dot_dimension_numbers<[1], [0], [0], [1], [0, 0, 1, 1], [], []>} : vector<10x512xbf16>, vector<512x256xbf16>, vector<10x256xf32> -> vector<10x256xf32>
    %22 = arith.addf %18, %21 : vector<10x256xf32>
    %c0_13 = arith.constant 0 : index
    %c0_14 = arith.constant 0 : index
    %23 = vector.load %arg11[%c0_13, %c0_14] : memref<10x256xf32, #tpu.memory_space<vmem>>, vector<10x256xf32>
    tpu.vector_store %arg11[%c0_13, %c0_14], %22 {strides = array<i32>} : memref<10x256xf32, #tpu.memory_space<vmem>>, vector<10x256xf32>,
    %c1_i32 = arith.constant 1 : i32
    %24 = arith.cmpi eq, %arg1, %c1_i32 : i32
    %25 = arith.extui %24 : i1 to i32
    %c0_i32_15 = arith.constant 0 : i32
    %26 = arith.cmpi ne, %25, %c0_i32_15 : i32
    scf.if %26 {
      %c0_16 = arith.constant 0 : index
      %c0_17 = arith.constant 0 : index
      %27 = vector.load %arg11[%c0_16, %c0_17] : memref<10x256xf32, #tpu.memory_space<vmem>>, vector<10x256xf32>
      %c0_18 = arith.constant 0 : index
      %c0_19 = arith.constant 0 : index
      %28 = vector.load %arg8[%c0_18, %c0_19] : memref<1x256xbf16, #tpu.memory_space<vmem>>, vector<1x256xbf16>
      %29 = arith.extf %28 : vector<1x256xbf16> to vector<1x256xf32>
      %30 = vector.broadcast %29 : vector<1x256xf32> to vector<10x256xf32>
      %31 = arith.addf %27, %30 : vector<10x256xf32>
      %c0_20 = arith.constant 0 : index
      %c0_21 = arith.constant 0 : index
      %32 = vector.load %arg2[%c0_20, %c0_21] : memref<10x256xbf16, #tpu.memory_space<vmem>>, vector<10x256xbf16>
      %33 = arith.extf %32 : vector<10x256xbf16> to vector<10x256xf32>
      %34 = arith.addf %31, %33 : vector<10x256xf32>
      %35 = arith.truncf %34 : vector<10x256xf32> to vector<10x256xbf16>
      %c0_22 = arith.constant 0 : index
      %c0_23 = arith.constant 0 : index
      %36 = vector.load %arg9[%c0_22, %c0_23] : memref<10x256xbf16, #tpu.memory_space<vmem>>, vector<10x256xbf16>
      tpu.vector_store %arg9[%c0_22, %c0_23], %35 {strides = array<i32>} : memref<10x256xbf16, #tpu.memory_space<vmem>>, vector<10x256xbf16>,
    } else {
    }
    return
  }
  func.func @transform_0(%arg0: i32, %arg1: i32) -> (i32, i32) {
    %c0_i32 = arith.constant 0 : i32
    %c0_i32_0 = arith.constant 0 : i32
    return %arg0, %c0_i32 : i32, i32
  }
  func.func @transform_1(%arg0: i32, %arg1: i32) -> (i32, i32) {
    %c0_i32 = arith.constant 0 : i32
    %c0_i32_0 = arith.constant 0 : i32
    %c0_i32_1 = arith.constant 0 : i32
    return %c0_i32, %c0_i32_0 : i32, i32
  }
  func.func @transform_2(%arg0: i32, %arg1: i32) -> (i32, i32) {
    %c0_i32 = arith.constant 0 : i32
    %c0_i32_0 = arith.constant 0 : i32
    %c0_i32_1 = arith.constant 0 : i32
    return %c0_i32, %c0_i32_0 : i32, i32
  }
  func.func @transform_3(%arg0: i32, %arg1: i32) -> (i32, i32) {
    %c0_i32 = arith.constant 0 : i32
    %c0_i32_0 = arith.constant 0 : i32
    return %c0_i32, %arg1 : i32, i32
  }
  func.func @transform_4(%arg0: i32, %arg1: i32) -> (i32, i32) {
    %c0_i32 = arith.constant 0 : i32
    %c0_i32_0 = arith.constant 0 : i32
    return %c0_i32, %arg1 : i32, i32
  }
  func.func @transform_5(%arg0: i32, %arg1: i32) -> (i32, i32) {
    %c0_i32 = arith.constant 0 : i32
    %c0_i32_0 = arith.constant 0 : i32
    return %arg1, %c0_i32 : i32, i32
  }
  func.func @transform_6(%arg0: i32, %arg1: i32) -> (i32, i32) {
    %c0_i32 = arith.constant 0 : i32
    %c0_i32_0 = arith.constant 0 : i32
    %c0_i32_1 = arith.constant 0 : i32
    return %c0_i32, %c0_i32_0 : i32, i32
  }
  func.func @transform_7(%arg0: i32, %arg1: i32) -> (i32, i32) {
    %c0_i32 = arith.constant 0 : i32
    %c0_i32_0 = arith.constant 0 : i32
    return %arg0, %c0_i32 : i32, i32
  }
}

module attributes {stable_mosaic.version = 11 : i64} {
  func.func @_linear_kernel(%arg0: i32, %arg1: i32, %arg2: memref<10x256xbf16, #tpu.memory_space<vmem>>, %arg3: memref<256x256xbf16, #tpu.memory_space<vmem>>, %arg4: memref<1x256xbf16, #tpu.memory_space<vmem>>, %arg5: memref<10x256xbf16, #tpu.memory_space<vmem>>, %arg6: memref<10x256xbf16, #tpu.memory_space<vmem>>) attributes {dimension_semantics = [#tpu.dimension_semantics<parallel>, #tpu.dimension_semantics<parallel>], iteration_bounds = array<i64: 1, 1>, scalar_prefetch = 0 : i64, scratch_operands = 0 : i64, tpu.core_type = #tpu.core_type<tc>, window_params = [{transform_indices = @transform_0, window_bounds = array<i64: 10, 256>}, {transform_indices = @transform_1, window_bounds = array<i64: 256, 256>}, {transform_indices = @transform_2, window_bounds = array<i64: 1, 256>}, {transform_indices = @transform_3, window_bounds = array<i64: 10, 256>}, {transform_indices = @transform_4, window_bounds = array<i64: 10, 256>}]} {
    %c0 = arith.constant 0 : index
    %c0_0 = arith.constant 0 : index
    %0 = vector.load %arg2[%c0, %c0_0] : memref<10x256xbf16, #tpu.memory_space<vmem>>, vector<10x256xbf16>
    %c0_1 = arith.constant 0 : index
    %c0_2 = arith.constant 0 : index
    %1 = vector.load %arg3[%c0_1, %c0_2] : memref<256x256xbf16, #tpu.memory_space<vmem>>, vector<256x256xbf16>
    %cst = arith.constant dense<0.000000e+00> : vector<10x256xf32>
    %2 = tpu.matmul %0, %1, %cst {dimension_numbers = #tpu.dot_dimension_numbers<[1], [0], [0], [1], [0, 0, 1, 1], [], []>} : vector<10x256xbf16>, vector<256x256xbf16>, vector<10x256xf32> -> vector<10x256xf32>
    %c0_3 = arith.constant 0 : index
    %c0_4 = arith.constant 0 : index
    %3 = vector.load %arg4[%c0_3, %c0_4] : memref<1x256xbf16, #tpu.memory_space<vmem>>, vector<1x256xbf16>
    %4 = arith.extf %3 : vector<1x256xbf16> to vector<1x256xf32>
    %5 = vector.broadcast %4 : vector<1x256xf32> to vector<10x256xf32>
    %6 = arith.addf %2, %5 : vector<10x256xf32>
    %c0_5 = arith.constant 0 : index
    %c0_6 = arith.constant 0 : index
    %7 = vector.load %arg5[%c0_5, %c0_6] : memref<10x256xbf16, #tpu.memory_space<vmem>>, vector<10x256xbf16>
    %8 = arith.extf %7 : vector<10x256xbf16> to vector<10x256xf32>
    %9 = arith.addf %6, %8 : vector<10x256xf32>
    %10 = arith.truncf %9 : vector<10x256xf32> to vector<10x256xbf16>
    %c0_7 = arith.constant 0 : index
    %c0_8 = arith.constant 0 : index
    %11 = vector.load %arg6[%c0_7, %c0_8] : memref<10x256xbf16, #tpu.memory_space<vmem>>, vector<10x256xbf16>
    tpu.vector_store %arg6[%c0_7, %c0_8], %10 {strides = array<i32>} : memref<10x256xbf16, #tpu.memory_space<vmem>>, vector<10x256xbf16>,
    return
  }
  func.func @transform_0(%arg0: i32, %arg1: i32) -> (i32, i32) {
    %c0_i32 = arith.constant 0 : i32
    %c0_i32_0 = arith.constant 0 : i32
    return %arg0, %c0_i32 : i32, i32
  }
  func.func @transform_1(%arg0: i32, %arg1: i32) -> (i32, i32) {
    %c0_i32 = arith.constant 0 : i32
    %c0_i32_0 = arith.constant 0 : i32
    return %c0_i32, %arg1 : i32, i32
  }
  func.func @transform_2(%arg0: i32, %arg1: i32) -> (i32, i32) {
    %c0_i32 = arith.constant 0 : i32
    %c0_i32_0 = arith.constant 0 : i32
    return %c0_i32, %arg1 : i32, i32
  }
  func.func @transform_3(%arg0: i32, %arg1: i32) -> (i32, i32) {
    %c0_i32 = arith.constant 0 : i32
    return %arg0, %arg1 : i32, i32
  }
  func.func @transform_4(%arg0: i32, %arg1: i32) -> (i32, i32) {
    %c0_i32 = arith.constant 0 : i32
    return %arg0, %arg1 : i32, i32
  }
}

module attributes {stable_mosaic.version = 11 : i64} {
  func.func @_ln_linear_kernel(%arg0: i32, %arg1: i32, %arg2: memref<2x256xbf16, #tpu.memory_space<vmem>>, %arg3: memref<1x256xf32, #tpu.memory_space<vmem>>, %arg4: memref<1x256xf32, #tpu.memory_space<vmem>>, %arg5: memref<256x128xbf16, #tpu.memory_space<vmem>>, %arg6: memref<1x128xf32, #tpu.memory_space<vmem>>, %arg7: memref<2x128xf32, #tpu.memory_space<vmem>>) attributes {dimension_semantics = [#tpu.dimension_semantics<parallel>, #tpu.dimension_semantics<parallel>], iteration_bounds = array<i64: 1, 1>, scalar_prefetch = 0 : i64, scratch_operands = 0 : i64, tpu.core_type = #tpu.core_type<tc>, window_params = [{transform_indices = @transform_0, window_bounds = array<i64: 2, 256>}, {pipeline_mode = #tpu.pipeline_mode<synchronous>, transform_indices = @transform_1, window_bounds = array<i64: 1, 256>}, {pipeline_mode = #tpu.pipeline_mode<synchronous>, transform_indices = @transform_2, window_bounds = array<i64: 1, 256>}, {transform_indices = @transform_3, window_bounds = array<i64: 256, 128>}, {transform_indices = @transform_4, window_bounds = array<i64: 1, 128>}, {transform_indices = @transform_5, window_bounds = array<i64: 2, 128>}]} {
    %c0 = arith.constant 0 : index
    %c0_0 = arith.constant 0 : index
    %0 = vector.load %arg2[%c0, %c0_0] : memref<2x256xbf16, #tpu.memory_space<vmem>>, vector<2x256xbf16>
    %1 = arith.extf %0 : vector<2x256xbf16> to vector<2x256xf32>
    %cst = arith.constant dense<0.000000e+00> : vector<2xf32>
    %2 = vector.multi_reduction <add>, %1, %cst [1] : vector<2x256xf32> to vector<2xf32>
    %3 = vector.shape_cast %2 : vector<2xf32> to vector<2x1xf32>
    %cst_1 = arith.constant 2.560000e+02 : f32
    %4 = vector.broadcast %cst_1 : f32 to vector<2x1xf32>
    %5 = arith.divf %3, %4 : vector<2x1xf32>
    %6 = vector.broadcast %5 : vector<2x1xf32> to vector<2x256xf32>
    %7 = arith.subf %1, %6 : vector<2x256xf32>
    %8 = arith.mulf %7, %7 : vector<2x256xf32>
    %cst_2 = arith.constant dense<0.000000e+00> : vector<2xf32>
    %9 = vector.multi_reduction <add>, %8, %cst_2 [1] : vector<2x256xf32> to vector<2xf32>
    %10 = vector.shape_cast %9 : vector<2xf32> to vector<2x1xf32>
    %cst_3 = arith.constant 2.560000e+02 : f32
    %11 = vector.broadcast %cst_3 : f32 to vector<2x1xf32>
    %12 = arith.divf %10, %11 : vector<2x1xf32>
    %cst_4 = arith.constant 9.99999974E-6 : f32
    %13 = vector.broadcast %cst_4 : f32 to vector<2x1xf32>
    %14 = arith.addf %12, %13 : vector<2x1xf32>
    %15 = math.rsqrt %14 : vector<2x1xf32>
    %16 = vector.broadcast %15 : vector<2x1xf32> to vector<2x256xf32>
    %17 = arith.mulf %7, %16 : vector<2x256xf32>
    %c0_5 = arith.constant 0 : index
    %c0_6 = arith.constant 0 : index
    %18 = vector.load %arg3[%c0_5, %c0_6] : memref<1x256xf32, #tpu.memory_space<vmem>>, vector<1x256xf32>
    %19 = vector.broadcast %18 : vector<1x256xf32> to vector<2x256xf32>
    %20 = arith.mulf %17, %19 : vector<2x256xf32>
    %c0_7 = arith.constant 0 : index
    %c0_8 = arith.constant 0 : index
    %21 = vector.load %arg4[%c0_7, %c0_8] : memref<1x256xf32, #tpu.memory_space<vmem>>, vector<1x256xf32>
    %22 = vector.broadcast %21 : vector<1x256xf32> to vector<2x256xf32>
    %23 = arith.addf %20, %22 : vector<2x256xf32>
    %24 = arith.truncf %23 : vector<2x256xf32> to vector<2x256xbf16>
    %c0_9 = arith.constant 0 : index
    %c0_10 = arith.constant 0 : index
    %25 = vector.load %arg5[%c0_9, %c0_10] : memref<256x128xbf16, #tpu.memory_space<vmem>>, vector<256x128xbf16>
    %cst_11 = arith.constant dense<0.000000e+00> : vector<2x128xf32>
    %26 = tpu.matmul %24, %25, %cst_11 {dimension_numbers = #tpu.dot_dimension_numbers<[1], [0], [0], [1], [0, 0, 1, 1], [], []>} : vector<2x256xbf16>, vector<256x128xbf16>, vector<2x128xf32> -> vector<2x128xf32>
    %c0_12 = arith.constant 0 : index
    %c0_13 = arith.constant 0 : index
    %27 = vector.load %arg6[%c0_12, %c0_13] : memref<1x128xf32, #tpu.memory_space<vmem>>, vector<1x128xf32>
    %28 = vector.broadcast %27 : vector<1x128xf32> to vector<2x128xf32>
    %29 = arith.addf %26, %28 : vector<2x128xf32>
    %c0_14 = arith.constant 0 : index
    %c0_15 = arith.constant 0 : index
    %30 = vector.load %arg7[%c0_14, %c0_15] : memref<2x128xf32, #tpu.memory_space<vmem>>, vector<2x128xf32>
    tpu.vector_store %arg7[%c0_14, %c0_15], %29 {strides = array<i32>} : memref<2x128xf32, #tpu.memory_space<vmem>>, vector<2x128xf32>,
    return
  }
  func.func @transform_0(%arg0: i32, %arg1: i32) -> (i32, i32) {
    %c0_i32 = arith.constant 0 : i32
    %c0_i32_0 = arith.constant 0 : i32
    return %arg0, %c0_i32 : i32, i32
  }
  func.func @transform_1(%arg0: i32, %arg1: i32) -> (i32, i32) {
    %c0_i32 = arith.constant 0 : i32
    %c0_i32_0 = arith.constant 0 : i32
    %c0_i32_1 = arith.constant 0 : i32
    return %c0_i32, %c0_i32_0 : i32, i32
  }
  func.func @transform_2(%arg0: i32, %arg1: i32) -> (i32, i32) {
    %c0_i32 = arith.constant 0 : i32
    %c0_i32_0 = arith.constant 0 : i32
    %c0_i32_1 = arith.constant 0 : i32
    return %c0_i32, %c0_i32_0 : i32, i32
  }
  func.func @transform_3(%arg0: i32, %arg1: i32) -> (i32, i32) {
    %c0_i32 = arith.constant 0 : i32
    %c0_i32_0 = arith.constant 0 : i32
    return %c0_i32, %arg1 : i32, i32
  }
  func.func @transform_4(%arg0: i32, %arg1: i32) -> (i32, i32) {
    %c0_i32 = arith.constant 0 : i32
    %c0_i32_0 = arith.constant 0 : i32
    return %c0_i32, %arg1 : i32, i32
  }
  func.func @transform_5(%arg0: i32, %arg1: i32) -> (i32, i32) {
    %c0_i32 = arith.constant 0 : i32
    return %arg0, %arg1 : i32, i32
  }
}

</mosaic_0001>

<llo_original>
// kernel: tpu_custom_call.1
$region0: #{tpu_custom_call.1}
  #allocation0 [shape = 'u32[]', space=smem, size = 0x4, offset = 0x4, fixed_abs, tag = 'smem constant byte address 0x4 - core index']
  #allocation1 [shape = 'u32[144,128]{1,0:T(1,128)}', space=vmem, size = 0x12000, scoped, tag = 'internal scratch']
  %s0 = inlined_call_operand.hbm [shape: f32[8,128], index: 0, kind: input, shape index: {}]
  %s1 = inlined_call_operand.hbm [shape: f32[16,128], index: 1, kind: input, shape index: {}]
  %s2 = inlined_call_operand.hbm [shape: f32[16,128], index: 2, kind: output, shape index: {}]
  %s3 = sld [smem:[#allocation0]]
  $region49: #{tpu_custom_call.1} parent=0
    _
  %s5 = ssub.s32 1, %s3
  %s6 = scalar_select 0, %s5, %s3
  $region1: #{tpu_custom_call.1} parent=0
    #allocation2 [shape = 'u8[4096]{0}', space=vmem, size = 0x1000, scoped, tag = 'input window, operand 0, single buffered']
    #allocation3 [shape = 's32[2]{0}', space=sflag, size = 0x8, scoped, tag = 'scoped memory for tpu_custom_call.1']
    #allocation4 [shape = 's32[2]{0}', space=sflag, size = 0x8, scoped, tag = 'scoped memory for tpu_custom_call.1']
    #allocation5 [shape = 'u8[8192]{0}', space=vmem, size = 0x2000, scoped, tag = 'input window, operand 1']
    #allocation6 [shape = 's32[2]{0}', space=sflag, size = 0x8, scoped, tag = 'scoped memory for tpu_custom_call.1']
    #allocation7 [shape = 'u8[8192]{0}', space=vmem, size = 0x2000, scoped, tag = 'output window, operand 0']
    %7 = vsyncpa [#allocation3], 0
    %8 = vsyncpa [#allocation6], 0
    %s9 = scalar_lea.sflag [#allocation6], 1
    %10 = vsyncpa %s9, 0
    %11 = vsyncpa [#allocation4], 0
    %s12 = scalar_lea.sflag [#allocation4], 1
    %13 = vsyncpa %s12, 0
    loop: start=0, step=1, limit=4
    $region2: #{tpu_custom_call.1} parent=1 // loop_pre_header
      _
    $region3: #{tpu_custom_call.1} parent=1 // loop_header
      %s15 = sphi 0, %s19
      %p16 = scmp.ge.s32.totalorder %s15, 4
      %s23 = sphi 0, %s23
      %s25 = sphi 0, %s23
      %s26 = sphi 0, %s25
      %s40 = sphi 0, %s26
      %s46 = sphi 0, %s48
      %s49 = sphi 0, %s46
      %s50 = sphi 0, %s49
      %s66 = sphi 0, %s50
      %s72 = sphi 0, %s74
      %s75 = sphi 0, %s72
      %s76 = sphi 0, %s75
      %s92 = sphi 0, %s76
    $region4: #{tpu_custom_call.1} parent=1 // loop_header_branch
      %18 = sbr.rel (%p16) target = $region8
    $region5: #{tpu_custom_call.1} parent=1 // loop_body
      %s20 = ssub.s32 %s15, 1
      %s21 = ssub.s32 %s15, 2
      %s22 = sadd.s32 %s15, 1
      %s24 = sadd.s32 %s23, 1
      %p27 = scmp.eq.s32.totalorder %s15, 1
      %p28 = scmp.ne.s32.totalorder %s23, %s25
      %p29 = scmp.eq.s32.totalorder %s15, 0
      %p30 = por %p28, %p29
      %p31 = scmp.ne.s32.totalorder %s23, %s25
      %p32 = scmp.eq.s32.totalorder %s20, 1
      %p33 = por %p31, %p32
      %p34 = scmp.ne.s32.totalorder %s25, %s26
      %p35 = scmp.eq.s32.totalorder %s20, 0
      %p36 = por %p34, %p35
      %p37 = scmp.ne.s32.totalorder %s25, %s26
      %p38 = scmp.eq.s32.totalorder %s21, 1
      %p39 = por %p37, %p38
      %p41 = scmp.ne.s32.totalorder %s26, %s40
      %p42 = scmp.eq.s32.totalorder %s21, 0
      %p43 = por %p41, %p42
      %s44 = ssub.s32 %s15, %s22
      %p45 = scmp.eq.s32.totalorder %s44, 0
      %s47 = sadd.s32 %s46, 1
      %s48 = scalar_select %p45, %s46, %s47
      %p51 = pneg %p45
      %p52 = scmp.eq.s32.totalorder %s15, 1
      %p53 = por %p51, %p52
      %p54 = scmp.ne.s32.totalorder %s46, %s49
      %p55 = scmp.eq.s32.totalorder %s15, 0
      %p56 = por %p54, %p55
      %p57 = scmp.ne.s32.totalorder %s46, %s49
      %p58 = scmp.eq.s32.totalorder %s20, 1
      %p59 = por %p57, %p58
      %p60 = scmp.ne.s32.totalorder %s49, %s50
      %p61 = scmp.eq.s32.totalorder %s20, 0
      %p62 = por %p60, %p61
      %p63 = scmp.ne.s32.totalorder %s49, %s50
      %p64 = scmp.eq.s32.totalorder %s21, 1
      %p65 = por %p63, %p64
      %p67 = scmp.ne.s32.totalorder %s50, %s66
      %p68 = scmp.eq.s32.totalorder %s21, 0
      %p69 = por %p67, %p68
      %s70 = ssub.s32 %s15, %s22
      %p71 = scmp.eq.s32.totalorder %s70, 0
      %s73 = sadd.s32 %s72, 1
      %s74 = scalar_select %p71, %s72, %s73
      %p77 = pneg %p71
      %p78 = scmp.eq.s32.totalorder %s15, 1
      %p79 = por %p77, %p78
      %p80 = scmp.ne.s32.totalorder %s72, %s75
      %p81 = scmp.eq.s32.totalorder %s15, 0
      %p82 = por %p80, %p81
      %p83 = scmp.ne.s32.totalorder %s72, %s75
      %p84 = scmp.eq.s32.totalorder %s20, 1
      %p85 = por %p83, %p84
      %p86 = scmp.ne.s32.totalorder %s75, %s76
      %p87 = scmp.eq.s32.totalorder %s20, 0
      %p88 = por %p86, %p87
      %p89 = scmp.ne.s32.totalorder %s75, %s76
      %p90 = scmp.eq.s32.totalorder %s21, 1
      %p91 = por %p89, %p90
      %p93 = scmp.ne.s32.totalorder %s76, %s92
      %p94 = scmp.eq.s32.totalorder %s21, 0
      %p95 = por %p93, %p94
      %p96 = scmp.le.s32.totalorder 1, %s15
      %p97 = scmp.lt.s32.totalorder %s15, 3
      %p98 = pnand %p96, %p97
      %p99 = pneg %p98
      // Predicated region
      $region9: #{tpu_custom_call.1} parent=5 // pred_check
        _
      $region10: #{tpu_custom_call.1} parent=5 // pred_check_branch
        %101 = sbr.rel (%p98) target = $region12
      $region11: #{tpu_custom_call.1} parent=5 // pred_region
        %s102 = ssub.s32 %s15, 1
        // Predicated region
        $region13: #{tpu_custom_call.1} parent=11 // pred_check
          %p103 = pneg %p36
        $region14: #{tpu_custom_call.1} parent=11 // pred_check_branch
          %105 = sbr.rel (%p103) target = $region16
        $region15: #{tpu_custom_call.1} parent=11 // pred_region
          %s107 = ssub.s32 128, 128
          %108 = vsyncadd [#allocation3], %s107
          %s110 = sshll.u32 [#allocation2], 4
          %s111 = int_to_ptr.vmem [resolvable:$true] %s110
          %113 = dma.hbm_to_vmem [thread:$0]  %s0, 128, %s111, [#allocation3]
        $region16: #{tpu_custom_call.1} parent=11 // pred_fallthru
          _
      $region12: #{tpu_custom_call.1} parent=5 // pred_fallthru
        _
      %p114 = scmp.lt.s32.totalorder %s15, 2
      // Predicated region
      $region17: #{tpu_custom_call.1} parent=5 // pred_check
        %p115 = pneg %p114
      $region18: #{tpu_custom_call.1} parent=5 // pred_check_branch
        %117 = sbr.rel (%p115) target = $region20
      $region19: #{tpu_custom_call.1} parent=5 // pred_region
        // Predicated region
        $region21: #{tpu_custom_call.1} parent=19 // pred_check
          %p118 = pneg %p56
        $region22: #{tpu_custom_call.1} parent=19 // pred_check_branch
          %120 = sbr.rel (%p118) target = $region24
        $region23: #{tpu_custom_call.1} parent=19 // pred_region
          %s121 = sand.u32 %s46, 1
          %s122 = scalar_lea.sflag [#allocation6], %s121
          %s123 = sand.u32 %s46, 1
          %s124 = smul.addr %s123, 8
          %s125 = scalar_lea.vmem [#allocation5], %s124
          %s127 = ssub.s32 128, 128
          %128 = vsyncadd %s122, %s127
          %s129 = smul.addr %s15, 128
          %s130 = scalar_lea.hbm %s1, %s129
          %s132 = sshll.u32 %s125, 4
          %s133 = int_to_ptr.vmem [resolvable:$true] %s132
          %135 = dma.hbm_to_vmem [thread:$0]  %s130, 128, %s133, %s122
        $region24: #{tpu_custom_call.1} parent=19 // pred_fallthru
          _
      $region20: #{tpu_custom_call.1} parent=5 // pred_fallthru
        _
      %p136 = scmp.le.s32.totalorder 1, %s15
      %p137 = scmp.lt.s32.totalorder %s15, 3
      %p138 = pnand %p136, %p137
      %p139 = pneg %p138
      // Predicated region
      $region25: #{tpu_custom_call.1} parent=5 // pred_check
        _
      $region26: #{tpu_custom_call.1} parent=5 // pred_check_branch
        %141 = sbr.rel (%p138) target = $region28
      $region27: #{tpu_custom_call.1} parent=5 // pred_region
        %s142 = ssub.s32 %s15, 1
        // Predicated region
        $region29: #{tpu_custom_call.1} parent=27 // pred_check
          %p143 = pneg %p36
        $region30: #{tpu_custom_call.1} parent=27 // pred_check_branch
          %145 = sbr.rel (%p143) target = $region32
        $region31: #{tpu_custom_call.1} parent=27 // pred_region
          %146 = dma.done [#allocation3], 128
        $region32: #{tpu_custom_call.1} parent=27 // pred_fallthru
          _
        %s147 = sand.u32 %s49, 1
        %s148 = scalar_lea.sflag [#allocation6], %s147
        %s149 = sand.u32 %s49, 1
        %s150 = smul.addr %s149, 8
        %s151 = scalar_lea.vmem [#allocation5], %s150
        // Predicated region
        $region33: #{tpu_custom_call.1} parent=27 // pred_check
          %p152 = pneg %p62
        $region34: #{tpu_custom_call.1} parent=27 // pred_check_branch
          %154 = sbr.rel (%p152) target = $region36
        $region35: #{tpu_custom_call.1} parent=27 // pred_region
          %155 = dma.done %s148, 128
        $region36: #{tpu_custom_call.1} parent=27 // pred_fallthru
          _
        %p156 = pneg %p36
        %p157 = pneg %p33
        %s158 = sand.u32 %s49, 1
        %s159 = scalar_lea.sflag [#allocation6], %s158
        %s160 = sand.u32 %s49, 1
        %s161 = smul.addr %s160, 8
        %s162 = scalar_lea.vmem [#allocation5], %s161
        %p163 = pneg %p62
        %p164 = pneg %p59
        %p165 = pneg %p88
        %p166 = pneg %p85
        %s167 = sand.u32 %s75, 1
        %s168 = scalar_lea.sflag [#allocation4], %s167
        %s169 = sand.u32 %s75, 1
        %s170 = smul.addr %s169, 8
        %s171 = scalar_lea.vmem [#allocation7], %s170
        %v172 = vld [vmem:[%s151] sm:$0xff]
        %v173 = vld [vmem:[#allocation2] sm:$0xff]
        %v174 = vadd.f32 %v172, %v173
        %175 = vst [vmem:[%s171] sm:$0xff] %v174
        %s176 = sand.u32 %s75, 1
        %s177 = scalar_lea.sflag [#allocation4], %s176
        %s178 = sand.u32 %s75, 1
        %s179 = smul.addr %s178, 8
        %s180 = scalar_lea.vmem [#allocation7], %s179
        // Predicated region
        $region37: #{tpu_custom_call.1} parent=27 // pred_check
          %p181 = pneg %p85
        $region38: #{tpu_custom_call.1} parent=27 // pred_check_branch
          %183 = sbr.rel (%p181) target = $region40
        $region39: #{tpu_custom_call.1} parent=27 // pred_region
          %s185 = ssub.s32 128, 128
          %186 = vsyncadd %s177, %s185
          %s187 = smul.addr %s20, 128
          %s188 = scalar_lea.hbm %s2, %s187
          %s190 = sshll.u32 %s180, 4
          %s191 = int_to_ptr.vmem [resolvable:$true] %s190
          %193 = dma.vmem_to_hbm [thread:$0]  %s191, 128, %s188, %s177
        $region40: #{tpu_custom_call.1} parent=27 // pred_fallthru
          _
      $region28: #{tpu_custom_call.1} parent=5 // pred_fallthru
        _
      %p194 = scmp.le.s32.totalorder 2, %s15
      // Predicated region
      $region41: #{tpu_custom_call.1} parent=5 // pred_check
        %p195 = pneg %p194
      $region42: #{tpu_custom_call.1} parent=5 // pred_check_branch
        %197 = sbr.rel (%p195) target = $region44
      $region43: #{tpu_custom_call.1} parent=5 // pred_region
        %s198 = ssub.s32 %s15, 2
        // Predicated region
        $region45: #{tpu_custom_call.1} parent=43 // pred_check
          %p199 = pneg %p91
        $region46: #{tpu_custom_call.1} parent=43 // pred_check_branch
          %201 = sbr.rel (%p199) target = $region48
        $region47: #{tpu_custom_call.1} parent=43 // pred_region
          %s202 = sand.u32 %s76, 1
          %s203 = scalar_lea.sflag [#allocation4], %s202
          %s204 = sand.u32 %s76, 1
          %s205 = smul.addr %s204, 8
          %s206 = scalar_lea.vmem [#allocation7], %s205
          %207 = dma.done %s203, 128
        $region48: #{tpu_custom_call.1} parent=43 // pred_fallthru
          _
      $region44: #{tpu_custom_call.1} parent=5 // pred_fallthru
        _
    $region6: #{tpu_custom_call.1} parent=1 // loop_footer
      %s19 = sadd.s32 1, %s15
    $region7: #{tpu_custom_call.1} parent=1 // loop_footer_branch
      %14 = sbr.rel target = $region3
    $region8: #{tpu_custom_call.1} parent=1 // loop_exit
      _
    %208 = vsyncpa [#allocation3], 1
    %s209 = scalar_lea.sflag [#allocation3], 1
    %210 = vsyncpa %s209, 1
    %211 = vsyncpa [#allocation6], 1
    %s212 = scalar_lea.sflag [#allocation6], 1
    %213 = vsyncpa %s212, 1
    %214 = vsyncpa [#allocation4], 1
    %s215 = scalar_lea.sflag [#allocation4], 1
    %216 = vsyncpa %s215, 1

// kernel: encode_image.11
$region0: #{encode_image.11}
  #allocation0 [shape = 'u32[]', space=smem, size = 0x4, offset = 0x4, fixed_abs, tag = 'smem constant byte address 0x4 - core index']
  #allocation1 [shape = 'u32[144,128]{1,0:T(1,128)}', space=vmem, size = 0x12000, scoped, tag = 'internal scratch']
  %s0 = inlined_call_operand.vmem [shape: bf16[8,256], index: 0, kind: input, shape index: {}]
  %s1 = inlined_call_operand.vmem [shape: bf16[256,256], index: 1, kind: input, shape index: {}]
  %s2 = inlined_call_operand.vmem [shape: bf16[1,256], index: 2, kind: input, shape index: {}]
  %s3 = inlined_call_operand.vmem [shape: bf16[8,256], index: 3, kind: output, shape index: {}]
  %s4 = sld [smem:[#allocation0]]
  $region22: #{encode_image.11} parent=0
    _
  %s6 = ssub.s32 1, %s4
  %s7 = scalar_select 0, %s6, %s4
  // Predicated region
  $region2: #{encode_image.11} parent=0 // pred_check
    _
  $region3: #{encode_image.11} parent=0 // pred_check_branch
    %9 = sbr.rel (0) target = $region5
  $region4: #{encode_image.11} parent=0 // pred_region
    _
  $region5: #{encode_image.11} parent=0 // pred_fallthru
    _
  // Predicated region
  $region6: #{encode_image.11} parent=0 // pred_check
    _
  $region7: #{encode_image.11} parent=0 // pred_check_branch
    %11 = sbr.rel (0) target = $region9
  $region8: #{encode_image.11} parent=0 // pred_region
    _
  $region9: #{encode_image.11} parent=0 // pred_fallthru
    _
  // Predicated region
  $region10: #{encode_image.11} parent=0 // pred_check
    _
  $region11: #{encode_image.11} parent=0 // pred_check_branch
    %13 = sbr.rel (0) target = $region13
  $region12: #{encode_image.11} parent=0 // pred_region
    _
  $region13: #{encode_image.11} parent=0 // pred_fallthru
    _
  %v14 = vld [vmem:[%s0] sm:$0xff]
  %v15 = vld [vmem:[%s1] sm:$0xff]
  %v16 = vld [vmem:[%s1 + $0x8] sm:$0xff]
  %v17 = vld [vmem:[%s1 + $0x10] sm:$0xff]
  %v18 = vld [vmem:[%s1 + $0x18] sm:$0xff]
  %v19 = vld [vmem:[%s1 + $0x20] sm:$0xff]
  %v20 = vld [vmem:[%s1 + $0x28] sm:$0xff]
  %v21 = vld [vmem:[%s1 + $0x30] sm:$0xff]
  %v22 = vld [vmem:[%s1 + $0x38] sm:$0xff]
  %v23 = vld [vmem:[%s1 + $0x40] sm:$0xff]
  %v24 = vld [vmem:[%s1 + $0x48] sm:$0xff]
  %v25 = vld [vmem:[%s1 + $0x50] sm:$0xff]
  %v26 = vld [vmem:[%s1 + $0x58] sm:$0xff]
  %v27 = vld [vmem:[%s1 + $0x60] sm:$0xff]
  %v28 = vld [vmem:[%s1 + $0x68] sm:$0xff]
  %v29 = vld [vmem:[%s1 + $0x70] sm:$0xff]
  %v30 = vld [vmem:[%s1 + $0x78] sm:$0xff]
  %v31 = vld [vmem:[%s1 + $0x80] sm:$0xff]
  %v32 = vld [vmem:[%s1 + $0x88] sm:$0xff]
  %v33 = vld [vmem:[%s1 + $0x90] sm:$0xff]
  %v34 = vld [vmem:[%s1 + $0x98] sm:$0xff]
  %v35 = vld [vmem:[%s1 + $0xa0] sm:$0xff]
  %v36 = vld [vmem:[%s1 + $0xa8] sm:$0xff]
  %v37 = vld [vmem:[%s1 + $0xb0] sm:$0xff]
  %v38 = vld [vmem:[%s1 + $0xb8] sm:$0xff]
  %v39 = vld [vmem:[%s1 + $0xc0] sm:$0xff]
  %v40 = vld [vmem:[%s1 + $0xc8] sm:$0xff]
  %v41 = vld [vmem:[%s1 + $0xd0] sm:$0xff]
  %v42 = vld [vmem:[%s1 + $0xd8] sm:$0xff]
  %v43 = vld [vmem:[%s1 + $0xe0] sm:$0xff]
  %v44 = vld [vmem:[%s1 + $0xe8] sm:$0xff]
  %v45 = vld [vmem:[%s1 + $0xf0] sm:$0xff]
  %v46 = vld [vmem:[%s1 + $0xf8] sm:$0xff]
  %v47 = vld [vmem:[%s2] sm:$0x3]
  %v48 = vunpack.c.l.bf16 %v47
  %v50 = vlaneseq
  %v51 = vshrl.u32 %v50, 7
  %v52 = vsub.s32 0, %v51
  %v53 = vrot.slane %v48, %v52
  %v54 = vlaneseq
  %v55 = vshrl.u32 %v54, 7
  %v56 = vsub.s32 2, %v55
  %v57 = vrot.slane %v48, %v56
  %v60 = vlaneseq
  %v61 = vshrl.u32 %v60, 7
  %v62 = vsub.s32 0, %v61
  %v63 = vrot.slane %v53, %v62
  %v64 = vlaneseq
  %v65 = vshrl.u32 %v64, 7
  %v66 = vsub.s32 0, %v65
  %v67 = vrot.slane %v57, %v66
  %v69 = vunpack.c.l.b16 %v14
  %v70 = vunpack.c.h.b16 %v14
  %v71 = vpack.c.b16 %v69, %v69
  %v72 = vpack.c.b16 %v70, %v70
  %v107 = vunpack.c.l.b16 %v15
  %v108 = vunpack.c.h.b16 %v15
  %v109 = vunpack.c.l.b16 %v16
  %v110 = vunpack.c.h.b16 %v16
  %v111 = vunpack.c.l.b16 %v17
  %v112 = vunpack.c.h.b16 %v17
  %v113 = vunpack.c.l.b16 %v18
  %v114 = vunpack.c.h.b16 %v18
  %v115 = vunpack.c.l.b16 %v19
  %v116 = vunpack.c.h.b16 %v19
  %v117 = vunpack.c.l.b16 %v20
  %v118 = vunpack.c.h.b16 %v20
  %v119 = vunpack.c.l.b16 %v21
  %v120 = vunpack.c.h.b16 %v21
  %v121 = vunpack.c.l.b16 %v22
  %v122 = vunpack.c.h.b16 %v22
  %v123 = vunpack.c.l.b16 %v23
  %v124 = vunpack.c.h.b16 %v23
  %v125 = vunpack.c.l.b16 %v24
  %v126 = vunpack.c.h.b16 %v24
  %v127 = vunpack.c.l.b16 %v25
  %v128 = vunpack.c.h.b16 %v25
  %v129 = vunpack.c.l.b16 %v26
  %v130 = vunpack.c.h.b16 %v26
  %v131 = vunpack.c.l.b16 %v27
  %v132 = vunpack.c.h.b16 %v27
  %v133 = vunpack.c.l.b16 %v28
  %v134 = vunpack.c.h.b16 %v28
  %v135 = vunpack.c.l.b16 %v29
  %v136 = vunpack.c.h.b16 %v29
  %v137 = vunpack.c.l.b16 %v30
  %v138 = vunpack.c.h.b16 %v30
  %v139 = vunpack.c.l.b16 %v31
  %v140 = vunpack.c.h.b16 %v31
  %v141 = vunpack.c.l.b16 %v32
  %v142 = vunpack.c.h.b16 %v32
  %v143 = vunpack.c.l.b16 %v33
  %v144 = vunpack.c.h.b16 %v33
  %v145 = vunpack.c.l.b16 %v34
  %v146 = vunpack.c.h.b16 %v34
  %v147 = vunpack.c.l.b16 %v35
  %v148 = vunpack.c.h.b16 %v35
  %v149 = vunpack.c.l.b16 %v36
  %v150 = vunpack.c.h.b16 %v36
  %v151 = vunpack.c.l.b16 %v37
  %v152 = vunpack.c.h.b16 %v37
  %v153 = vunpack.c.l.b16 %v38
  %v154 = vunpack.c.h.b16 %v38
  %v155 = vunpack.c.l.b16 %v39
  %v156 = vunpack.c.h.b16 %v39
  %v157 = vunpack.c.l.b16 %v40
  %v158 = vunpack.c.h.b16 %v40
  %v159 = vunpack.c.l.b16 %v41
  %v160 = vunpack.c.h.b16 %v41
  %v161 = vunpack.c.l.b16 %v42
  %v162 = vunpack.c.h.b16 %v42
  %v163 = vunpack.c.l.b16 %v43
  %v164 = vunpack.c.h.b16 %v43
  %v165 = vunpack.c.l.b16 %v44
  %v166 = vunpack.c.h.b16 %v44
  %v167 = vunpack.c.l.b16 %v45
  %v168 = vunpack.c.h.b16 %v45
  %v169 = vunpack.c.l.b16 %v46
  %v170 = vunpack.c.h.b16 %v46
  %v171 = vpack.c.b16 %v109, %v107
  %v172 = vpack.c.b16 %v110, %v108
  %v173 = vpack.c.b16 %v113, %v111
  %v174 = vpack.c.b16 %v114, %v112
  %v175 = vpack.c.b16 %v117, %v115
  %v176 = vpack.c.b16 %v118, %v116
  %v177 = vpack.c.b16 %v121, %v119
  %v178 = vpack.c.b16 %v122, %v120
  %v179 = vpack.c.b16 %v125, %v123
  %v180 = vpack.c.b16 %v126, %v124
  %v181 = vpack.c.b16 %v129, %v127
  %v182 = vpack.c.b16 %v130, %v128
  %v183 = vpack.c.b16 %v133, %v131
  %v184 = vpack.c.b16 %v134, %v132
  %v185 = vpack.c.b16 %v137, %v135
  %v186 = vpack.c.b16 %v138, %v136
  %v187 = vpack.c.b16 %v141, %v139
  %v188 = vpack.c.b16 %v142, %v140
  %v189 = vpack.c.b16 %v145, %v143
  %v190 = vpack.c.b16 %v146, %v144
  %v191 = vpack.c.b16 %v149, %v147
  %v192 = vpack.c.b16 %v150, %v148
  %v193 = vpack.c.b16 %v153, %v151
  %v194 = vpack.c.b16 %v154, %v152
  %v195 = vpack.c.b16 %v157, %v155
  %v196 = vpack.c.b16 %v158, %v156
  %v197 = vpack.c.b16 %v161, %v159
  %v198 = vpack.c.b16 %v162, %v160
  %v199 = vpack.c.b16 %v165, %v163
  %v200 = vpack.c.b16 %v166, %v164
  %v201 = vpack.c.b16 %v169, %v167
  %v202 = vpack.c.b16 %v170, %v168
  %235 = vmatprep.subr.bf16.mxu0 %v186
  %236 = vmatpush1.bf16.msra.mxu0 %v185
  %237 = vmatprep.subr.bf16.mxu0 %v184
  %238 = vmatpush1.bf16.msra.mxu0 %v183
  %239 = vmatprep.subr.bf16.mxu0 %v182
  %240 = vmatpush1.bf16.msra.mxu0 %v181
  %241 = vmatprep.subr.bf16.mxu0 %v180
  %242 = vmatpush1.bf16.msra.mxu0 %v179
  %243 = vmatprep.subr.bf16.mxu0 %v178
  %244 = vmatpush1.bf16.msra.mxu0 %v177
  %245 = vmatprep.subr.bf16.mxu0 %v176
  %246 = vmatpush1.bf16.msra.mxu0 %v175
  %247 = vmatprep.subr.bf16.mxu0 %v174
  %248 = vmatpush1.bf16.msra.mxu0 %v173
  %249 = vmatprep.subr.bf16.mxu0 %v172
  %250 = vmatpush1.bf16.msra.mxu0 %v171
  %251 = vmatprep.subr.bf16.mxu0 %v202
  %252 = vmatpush2.bf16.msra.mxu0 %v201
  %253 = vmatprep.subr.bf16.mxu0 %v200
  %254 = vmatpush2.bf16.msra.mxu0 %v199
  %255 = vmatprep.subr.bf16.mxu0 %v198
  %256 = vmatpush2.bf16.msra.mxu0 %v197
  %257 = vmatprep.subr.bf16.mxu0 %v196
  %258 = vmatpush2.bf16.msra.mxu0 %v195
  %259 = vmatprep.subr.bf16.mxu0 %v194
  %260 = vmatpush2.bf16.msra.mxu0 %v193
  %261 = vmatprep.subr.bf16.mxu0 %v192
  %262 = vmatpush2.bf16.msra.mxu0 %v191
  %263 = vmatprep.subr.bf16.mxu0 %v190
  %264 = vmatpush2.bf16.msra.mxu0 %v189
  %265 = vmatprep.subr.bf16.mxu0 %v188
  %266 = vmatpush2.bf16.msra.mxu0 %v187
  %267 = vmatprep.mubr.bf16.mxu0 %v72
  %268 = vmatmul.mubr.bf16.gmra.mxu0 %v71
  %v269 = vpop.f32.mrf.mxu0
  %v270 = vadd.f32 %v63, %v269
  %v271 = vpop.f32.mrf.mxu0
  %v272 = vadd.f32 %v67, %v271
  %v273 = vpop.f32.mrf.mxu0
  %v274 = vpop.f32.mrf.mxu0
  %275 = vdwg.mxu0
  %v276 = vpack.c.bf16 %v270, %v270
  %v277 = vpack.c.bf16 %v272, %v272
  %v280 = vunpack.c.l.b16 %v276
  %v281 = vunpack.c.l.b16 %v277
  %v282 = vpack.c.b16 %v281, %v280
  %284 = vst [vmem:[%s3] sm:$0xff] %v282
  // Predicated region
  $region14: #{encode_image.11} parent=0 // pred_check
    _
  $region15: #{encode_image.11} parent=0 // pred_check_branch
    %286 = sbr.rel (0) target = $region17
  $region16: #{encode_image.11} parent=0 // pred_region
    _
  $region17: #{encode_image.11} parent=0 // pred_fallthru
    _
  // Predicated region
  $region18: #{encode_image.11} parent=0 // pred_check
    _
  $region19: #{encode_image.11} parent=0 // pred_check_branch
    %288 = sbr.rel (0) target = $region21
  $region20: #{encode_image.11} parent=0 // pred_region
    _
  $region21: #{encode_image.11} parent=0 // pred_fallthru
    _

// kernel: encode_image.12
$region0: #{encode_image.12}
  #allocation0 [shape = 'u32[]', space=smem, size = 0x4, offset = 0x4, fixed_abs, tag = 'smem constant byte address 0x4 - core index']
  #allocation1 [shape = 'u32[144,128]{1,0:T(1,128)}', space=vmem, size = 0x12000, scoped, tag = 'internal scratch']
  %s0 = inlined_call_operand.vmem [shape: bf16[2,5,256], index: 0, kind: input, shape index: {}]
  %s1 = inlined_call_operand.vmem [shape: bf16[5,256], index: 1, kind: input, shape index: {}]
  %s2 = inlined_call_operand.vmem [shape: f32[1,256], index: 2, kind: input, shape index: {}]
  %s3 = inlined_call_operand.vmem [shape: f32[1,256], index: 3, kind: input, shape index: {}]
  %s4 = inlined_call_operand.vmem [shape: bf16[2,5,256], index: 4, kind: output, shape index: {}]
  %s5 = sld [smem:[#allocation0]]
  $region49: #{encode_image.12} parent=0
    _
  %s7 = ssub.s32 1, %s5
  %s8 = scalar_select 0, %s7, %s5
  loop: start=0, step=1, limit=4
  $region2: #{encode_image.12} parent=0 // loop_pre_header
    _
  $region3: #{encode_image.12} parent=0 // loop_header
    %s10 = sphi 0, %s14
    %p11 = scmp.ge.s32.totalorder %s10, 4
    %s17 = sphi 0, %s29
    %s18 = sphi 0, %s25
    %s19 = sphi 0, %s17
    %s20 = sphi 0, %s18
    %s21 = sphi 0, %s19
    %s22 = sphi 0, %s20
    %s34 = sphi 0, %s36
    %s37 = sphi 0, %s34
    %s38 = sphi 0, %s37
    %s54 = sphi 0, %s38
    %s60 = sphi 0, %s62
    %s63 = sphi 0, %s60
    %s64 = sphi 0, %s63
    %s80 = sphi 0, %s64
    %s84 = sphi 0, %s84
    %s86 = sphi 0, %s84
    %s87 = sphi 0, %s86
    %s101 = sphi 0, %s87
    %s105 = sphi 0, %s105
    %s107 = sphi 0, %s105
    %s108 = sphi 0, %s107
    %s122 = sphi 0, %s108
    %s130 = sphi 0, %s132
    %s133 = sphi 0, %s130
    %s134 = sphi 0, %s133
    %s150 = sphi 0, %s134
  $region4: #{encode_image.12} parent=0 // loop_header_branch
    %13 = sbr.rel (%p11) target = $region8
  $region5: #{encode_image.12} parent=0 // loop_body
    %s15 = ssub.s32 %s10, 1
    %s16 = ssub.s32 %s10, 2
    %s23 = sadd.s32 1, %s18
    %p24 = scmp.ge.s32.totalorder %s23, 1
    %s25 = scalar_select %p24, 0, %s23
    %s26 = sadd.s32 1, %s17
    %s27 = scalar_select %p24, %s26, %s17
    %p28 = scmp.ge.s32.totalorder %s27, 2
    %s29 = scalar_select %p28, 0, %s27
    %s30 = ssub.s32 %s17, %s29
    %s31 = ssub.s32 %s18, %s25
    %s32 = sor.u32 %s30, %s31
    %p33 = scmp.eq.s32.totalorder %s32, 0
    %s35 = sadd.s32 %s34, 1
    %s36 = scalar_select %p33, %s34, %s35
    %p39 = pneg %p33
    %p40 = scmp.eq.s32.totalorder %s10, 1
    %p41 = por %p39, %p40
    %p42 = scmp.ne.s32.totalorder %s34, %s37
    %p43 = scmp.eq.s32.totalorder %s10, 0
    %p44 = por %p42, %p43
    %p45 = scmp.ne.s32.totalorder %s34, %s37
    %p46 = scmp.eq.s32.totalorder %s15, 1
    %p47 = por %p45, %p46
    %p48 = scmp.ne.s32.totalorder %s37, %s38
    %p49 = scmp.eq.s32.totalorder %s15, 0
    %p50 = por %p48, %p49
    %p51 = scmp.ne.s32.totalorder %s37, %s38
    %p52 = scmp.eq.s32.totalorder %s16, 1
    %p53 = por %p51, %p52
    %p55 = scmp.ne.s32.totalorder %s38, %s54
    %p56 = scmp.eq.s32.totalorder %s16, 0
    %p57 = por %p55, %p56
    %s58 = ssub.s32 %s18, %s25
    %p59 = scmp.eq.s32.totalorder %s58, 0
    %s61 = sadd.s32 %s60, 1
    %s62 = scalar_select %p59, %s60, %s61
    %p65 = pneg %p59
    %p66 = scmp.eq.s32.totalorder %s10, 1
    %p67 = por %p65, %p66
    %p68 = scmp.ne.s32.totalorder %s60, %s63
    %p69 = scmp.eq.s32.totalorder %s10, 0
    %p70 = por %p68, %p69
    %p71 = scmp.ne.s32.totalorder %s60, %s63
    %p72 = scmp.eq.s32.totalorder %s15, 1
    %p73 = por %p71, %p72
    %p74 = scmp.ne.s32.totalorder %s63, %s64
    %p75 = scmp.eq.s32.totalorder %s15, 0
    %p76 = por %p74, %p75
    %p77 = scmp.ne.s32.totalorder %s63, %s64
    %p78 = scmp.eq.s32.totalorder %s16, 1
    %p79 = por %p77, %p78
    %p81 = scmp.ne.s32.totalorder %s64, %s80
    %p82 = scmp.eq.s32.totalorder %s16, 0
    %p83 = por %p81, %p82
    %s85 = sadd.s32 %s84, 1
    %p88 = scmp.eq.s32.totalorder %s10, 1
    %p89 = scmp.ne.s32.totalorder %s84, %s86
    %p90 = scmp.eq.s32.totalorder %s10, 0
    %p91 = por %p89, %p90
    %p92 = scmp.ne.s32.totalorder %s84, %s86
    %p93 = scmp.eq.s32.totalorder %s15, 1
    %p94 = por %p92, %p93
    %p95 = scmp.ne.s32.totalorder %s86, %s87
    %p96 = scmp.eq.s32.totalorder %s15, 0
    %p97 = por %p95, %p96
    %p98 = scmp.ne.s32.totalorder %s86, %s87
    %p99 = scmp.eq.s32.totalorder %s16, 1
    %p100 = por %p98, %p99
    %p102 = scmp.ne.s32.totalorder %s87, %s101
    %p103 = scmp.eq.s32.totalorder %s16, 0
    %p104 = por %p102, %p103
    %s106 = sadd.s32 %s105, 1
    %p109 = scmp.eq.s32.totalorder %s10, 1
    %p110 = scmp.ne.s32.totalorder %s105, %s107
    %p111 = scmp.eq.s32.totalorder %s10, 0
    %p112 = por %p110, %p111
    %p113 = scmp.ne.s32.totalorder %s105, %s107
    %p114 = scmp.eq.s32.totalorder %s15, 1
    %p115 = por %p113, %p114
    %p116 = scmp.ne.s32.totalorder %s107, %s108
    %p117 = scmp.eq.s32.totalorder %s15, 0
    %p118 = por %p116, %p117
    %p119 = scmp.ne.s32.totalorder %s107, %s108
    %p120 = scmp.eq.s32.totalorder %s16, 1
    %p121 = por %p119, %p120
    %p123 = scmp.ne.s32.totalorder %s108, %s122
    %p124 = scmp.eq.s32.totalorder %s16, 0
    %p125 = por %p123, %p124
    %s126 = ssub.s32 %s17, %s29
    %s127 = ssub.s32 %s18, %s25
    %s128 = sor.u32 %s126, %s127
    %p129 = scmp.eq.s32.totalorder %s128, 0
    %s131 = sadd.s32 %s130, 1
    %s132 = scalar_select %p129, %s130, %s131
    %p135 = pneg %p129
    %p136 = scmp.eq.s32.totalorder %s10, 1
    %p137 = por %p135, %p136
    %p138 = scmp.ne.s32.totalorder %s130, %s133
    %p139 = scmp.eq.s32.totalorder %s10, 0
    %p140 = por %p138, %p139
    %p141 = scmp.ne.s32.totalorder %s130, %s133
    %p142 = scmp.eq.s32.totalorder %s15, 1
    %p143 = por %p141, %p142
    %p144 = scmp.ne.s32.totalorder %s133, %s134
    %p145 = scmp.eq.s32.totalorder %s15, 0
    %p146 = por %p144, %p145
    %p147 = scmp.ne.s32.totalorder %s133, %s134
    %p148 = scmp.eq.s32.totalorder %s16, 1
    %p149 = por %p147, %p148
    %p151 = scmp.ne.s32.totalorder %s134, %s150
    %p152 = scmp.eq.s32.totalorder %s16, 0
    %p153 = por %p151, %p152
    %p154 = scmp.le.s32.totalorder 1, %s10
    %p155 = scmp.lt.s32.totalorder %s10, 3
    %p156 = pnand %p154, %p155
    %p157 = pneg %p156
    // Predicated region
    $region9: #{encode_image.12} parent=5 // pred_check
      _
    $region10: #{encode_image.12} parent=5 // pred_check_branch
      %159 = sbr.rel (%p156) target = $region12
    $region11: #{encode_image.12} parent=5 // pred_region
      %s160 = ssub.s32 %s10, 1
      // Predicated region
      $region13: #{encode_image.12} parent=11 // pred_check
        %p161 = pneg %p76
      $region14: #{encode_image.12} parent=11 // pred_check_branch
        %163 = sbr.rel (%p161) target = $region16
      $region15: #{encode_image.12} parent=11 // pred_region
        %p164 = scmp.lt.s32.totalorder %s20, 0
        %s165 = scalar_select %p164, %s20, 0
        %s166 = smul.addr %s165, 2
        %s167 = smul.addr %s166, 4
        %s168 = scalar_lea.vmem %s1, %s167
      $region16: #{encode_image.12} parent=11 // pred_fallthru
        _
      // Predicated region
      $region17: #{encode_image.12} parent=11 // pred_check
        %p169 = pneg %p97
      $region18: #{encode_image.12} parent=11 // pred_check_branch
        %171 = sbr.rel (%p169) target = $region20
      $region19: #{encode_image.12} parent=11 // pred_region
        _
      $region20: #{encode_image.12} parent=11 // pred_fallthru
        _
      // Predicated region
      $region21: #{encode_image.12} parent=11 // pred_check
        %p172 = pneg %p118
      $region22: #{encode_image.12} parent=11 // pred_check_branch
        %174 = sbr.rel (%p172) target = $region24
      $region23: #{encode_image.12} parent=11 // pred_region
        _
      $region24: #{encode_image.12} parent=11 // pred_fallthru
        _
    $region12: #{encode_image.12} parent=5 // pred_fallthru
      _
    %p175 = scmp.lt.s32.totalorder %s10, 2
    // Predicated region
    $region25: #{encode_image.12} parent=5 // pred_check
      %p176 = pneg %p175
    $region26: #{encode_image.12} parent=5 // pred_check_branch
      %178 = sbr.rel (%p176) target = $region28
    $region27: #{encode_image.12} parent=5 // pred_region
      // Predicated region
      $region29: #{encode_image.12} parent=27 // pred_check
        %p179 = pneg %p44
      $region30: #{encode_image.12} parent=27 // pred_check_branch
        %181 = sbr.rel (%p179) target = $region32
      $region31: #{encode_image.12} parent=27 // pred_region
        %p182 = scmp.lt.s32.totalorder %s17, 1
        %s183 = scalar_select %p182, %s17, 1
        %p184 = scmp.lt.s32.totalorder %s18, 0
        %s185 = scalar_select %p184, %s18, 0
        %s186 = smul.addr %s185, 2
        %s187 = smul.addr %s183, 2
        %s188 = sadd.s32 %s186, %s187
        %s189 = smul.addr %s188, 4
        %s190 = scalar_lea.vmem %s0, %s189
      $region32: #{encode_image.12} parent=27 // pred_fallthru
        _
    $region28: #{encode_image.12} parent=5 // pred_fallthru
      _
    %p191 = scmp.le.s32.totalorder 1, %s10
    %p192 = scmp.lt.s32.totalorder %s10, 3
    %p193 = pnand %p191, %p192
    %p194 = pneg %p193
    // Predicated region
    $region33: #{encode_image.12} parent=5 // pred_check
      _
    $region34: #{encode_image.12} parent=5 // pred_check_branch
      %196 = sbr.rel (%p193) target = $region36
    $region35: #{encode_image.12} parent=5 // pred_region
      %s197 = ssub.s32 %s10, 1
      %p198 = scmp.lt.s32.totalorder %s19, 1
      %s199 = scalar_select %p198, %s19, 1
      %p200 = scmp.lt.s32.totalorder %s20, 0
      %s201 = scalar_select %p200, %s20, 0
      %s202 = smul.addr %s201, 2
      %s203 = smul.addr %s199, 2
      %s204 = sadd.s32 %s202, %s203
      %s205 = smul.addr %s204, 4
      %s206 = scalar_lea.vmem %s0, %s205
      %p207 = pneg %p50
      %p208 = pneg %p47
      %p209 = scmp.lt.s32.totalorder %s20, 0
      %s210 = scalar_select %p209, %s20, 0
      %s211 = smul.addr %s210, 2
      %s212 = smul.addr %s211, 4
      %s213 = scalar_lea.vmem %s1, %s212
      %p214 = pneg %p76
      %p215 = pneg %p73
      %p216 = pneg %p97
      %p217 = pneg %p94
      %p218 = pneg %p118
      %p219 = pneg %p115
      %p220 = pneg %p146
      %p221 = pneg %p143
      %p222 = scmp.lt.s32.totalorder %s19, 1
      %s223 = scalar_select %p222, %s19, 1
      %p224 = scmp.lt.s32.totalorder %s20, 0
      %s225 = scalar_select %p224, %s20, 0
      %s226 = smul.addr %s225, 2
      %s227 = smul.addr %s223, 2
      %s228 = sadd.s32 %s226, %s227
      %s229 = smul.addr %s228, 4
      %s230 = scalar_lea.vmem %s4, %s229
      %p231 = scmp.lt.s32.totalorder %s19, 1
      %s232 = scalar_select %p231, %s19, 1
      %p233 = scmp.lt.s32.totalorder %s20, 0
      %s234 = scalar_select %p233, %s20, 0
      %s235 = smul.addr %s234, 2
      %s236 = smul.addr %s232, 2
      %s237 = sadd.s32 %s235, %s236
      %s238 = smul.addr %s237, 4
      %s239 = scalar_lea.vmem %s0, %s238
      %p240 = scmp.lt.s32.totalorder %s20, 0
      %s241 = scalar_select %p240, %s20, 0
      %s242 = smul.addr %s241, 2
      %s243 = smul.addr %s242, 4
      %s244 = scalar_lea.vmem %s1, %s243
      %p245 = scmp.lt.s32.totalorder %s19, 1
      %s246 = scalar_select %p245, %s19, 1
      %p247 = scmp.lt.s32.totalorder %s20, 0
      %s248 = scalar_select %p247, %s20, 0
      %s249 = smul.addr %s248, 2
      %s250 = smul.addr %s246, 2
      %s251 = sadd.s32 %s249, %s250
      %s252 = smul.addr %s251, 4
      %s253 = scalar_lea.vmem %s4, %s252
      %v254 = vld [vmem:[%s239] sm:$0x77]
      %v255 = vunpack.c.l.bf16 %v254
      %v256 = vunpack.c.h.bf16 %v254
      %v257 = vld [vmem:[%s244] sm:$0x77]
      %v258 = vunpack.c.l.bf16 %v257
      %v259 = vunpack.c.h.bf16 %v257
      %v260 = vadd.f32 %v255, %v258
      %v261 = vadd.f32 %v256, %v259
      %vm262 = vcmask 1044480
      %v263 = vsel %vm262, %v260, 0.0
      %v264 = vsel %vm262, %v261, 0.0
      %v265 = vadd.f32 %v263, %v264
      %266 = vadd.xlane.f32.xlu0 %v265
      %v267 = vpop.xlane.xlu0 %266
      %v268 = vrcp.pop 256.0
      %v269 = vmul.f32 %v267, %v268
      %v270 = vsub.f32 %v260, %v269
      %v271 = vsub.f32 %v261, %v269
      %v272 = vmul.f32 %v270, %v270
      %v273 = vmul.f32 %v271, %v271
      %v274 = vsel %vm262, %v272, 0.0
      %v275 = vsel %vm262, %v273, 0.0
      %v276 = vadd.f32 %v274, %v275
      %277 = vadd.xlane.f32.xlu0 %v276
      %v278 = vpop.xlane.xlu0 %277
      %v279 = vmul.f32 %v278, %v268
      %v280 = vadd.f32 %v279, 1e-05
      %v281 = vrsqrt.pop %v280
      %v282 = vmul.f32 %v270, %v281
      %v283 = vmul.f32 %v271, %v281
      %v284 = vld [vmem:[%s2] sm:$0x3]
      %v286 = vlaneseq
      %v287 = vshrl.u32 %v286, 7
      %v288 = vsub.s32 0, %v287
      %v289 = vrot.slane %v284, %v288
      %v290 = vlaneseq
      %v291 = vshrl.u32 %v290, 7
      %v292 = vsub.s32 1, %v291
      %v293 = vrot.slane %v284, %v292
      %v296 = vmul.f32 %v282, %v289
      %v297 = vmul.f32 %v283, %v293
      %v298 = vld [vmem:[%s3] sm:$0x3]
      %v300 = vlaneseq
      %v301 = vshrl.u32 %v300, 7
      %v302 = vsub.s32 0, %v301
      %v303 = vrot.slane %v298, %v302
      %v304 = vlaneseq
      %v305 = vshrl.u32 %v304, 7
      %v306 = vsub.s32 1, %v305
      %v307 = vrot.slane %v298, %v306
      %v310 = vadd.f32 %v296, %v303
      %v311 = vadd.f32 %v297, %v307
      %v312 = vpack.c.bf16 %v310, %v310
      %v313 = vpack.c.bf16 %v311, %v311
      %v316 = vunpack.c.l.b16 %v312
      %v317 = vunpack.c.l.b16 %v313
      %v318 = vpack.c.b16 %v317, %v316
      %vm320 = vcmask 1042432
      %vm321 = vsmask.f32 2304
      %vm322 = vmand %vm320, %vm321
      %vm323 = vcmask 1046532
      %vm324 = vsmask.f32 6400
      %vm325 = vmand %vm323, %vm324
      %vm326 = vmor %vm325, %vm322
      %v327 = vld [vmem:[%s253] sm:$0x77]
      %v328 = vsel %vm326, %v318, %v327
      %329 = vst [vmem:[%s253] sm:$0x77] %v328
      %p330 = scmp.lt.s32.totalorder %s19, 1
      %s331 = scalar_select %p330, %s19, 1
      %p332 = scmp.lt.s32.totalorder %s20, 0
      %s333 = scalar_select %p332, %s20, 0
      %s334 = smul.addr %s333, 2
      %s335 = smul.addr %s331, 2
      %s336 = sadd.s32 %s334, %s335
      %s337 = smul.addr %s336, 4
      %s338 = scalar_lea.vmem %s4, %s337
      // Predicated region
      $region37: #{encode_image.12} parent=35 // pred_check
        %p339 = pneg %p143
      $region38: #{encode_image.12} parent=35 // pred_check_branch
        %341 = sbr.rel (%p339) target = $region40
      $region39: #{encode_image.12} parent=35 // pred_region
        _
      $region40: #{encode_image.12} parent=35 // pred_fallthru
        _
    $region36: #{encode_image.12} parent=5 // pred_fallthru
      _
    %p342 = scmp.le.s32.totalorder 2, %s10
    // Predicated region
    $region41: #{encode_image.12} parent=5 // pred_check
      %p343 = pneg %p342
    $region42: #{encode_image.12} parent=5 // pred_check_branch
      %345 = sbr.rel (%p343) target = $region44
    $region43: #{encode_image.12} parent=5 // pred_region
      %s346 = ssub.s32 %s10, 2
      // Predicated region
      $region45: #{encode_image.12} parent=43 // pred_check
        %p347 = pneg %p149
      $region46: #{encode_image.12} parent=43 // pred_check_branch
        %349 = sbr.rel (%p347) target = $region48
      $region47: #{encode_image.12} parent=43 // pred_region
        %p350 = scmp.lt.s32.totalorder %s21, 1
        %s351 = scalar_select %p350, %s21, 1
        %p352 = scmp.lt.s32.totalorder %s22, 0
        %s353 = scalar_select %p352, %s22, 0
        %s354 = smul.addr %s353, 2
        %s355 = smul.addr %s351, 2
        %s356 = sadd.s32 %s354, %s355
        %s357 = smul.addr %s356, 4
        %s358 = scalar_lea.vmem %s4, %s357
      $region48: #{encode_image.12} parent=43 // pred_fallthru
        _
    $region44: #{encode_image.12} parent=5 // pred_fallthru
      _
  $region6: #{encode_image.12} parent=0 // loop_footer
    %s14 = sadd.s32 1, %s10
  $region7: #{encode_image.12} parent=0 // loop_footer_branch
    %9 = sbr.rel target = $region3
  $region8: #{encode_image.12} parent=0 // loop_exit
    _

// kernel: encode_image.13
$region0: #{encode_image.13}
  #allocation0 [shape = 'u32[]', space=smem, size = 0x4, offset = 0x4, fixed_abs, tag = 'smem constant byte address 0x4 - core index']
  #allocation1 [shape = 'u32[144,128]{1,0:T(1,128)}', space=vmem, size = 0x12000, scoped, tag = 'internal scratch']
  %s0 = inlined_call_operand.vmem [shape: bf16[10,256], index: 0, kind: input, shape index: {}]
  %s1 = inlined_call_operand.vmem [shape: f32[1,256], index: 1, kind: input, shape index: {}]
  %s2 = inlined_call_operand.vmem [shape: f32[1,256], index: 2, kind: input, shape index: {}]
  %s3 = inlined_call_operand.vmem [shape: bf16[256,768], index: 3, kind: input, shape index: {}]
  %s4 = inlined_call_operand.vmem [shape: bf16[1,768], index: 4, kind: input, shape index: {}]
  %s5 = inlined_call_operand.vmem [shape: bf16[10,768], index: 5, kind: output, shape index: {}]
  %s6 = sld [smem:[#allocation0]]
  $region30: #{encode_image.13} parent=0
    _
  %s8 = ssub.s32 1, %s6
  %s9 = scalar_select 0, %s8, %s6
  // Predicated region
  $region2: #{encode_image.13} parent=0 // pred_check
    _
  $region3: #{encode_image.13} parent=0 // pred_check_branch
    %11 = sbr.rel (0) target = $region5
  $region4: #{encode_image.13} parent=0 // pred_region
    _
  $region5: #{encode_image.13} parent=0 // pred_fallthru
    _
  // Predicated region
  $region6: #{encode_image.13} parent=0 // pred_check
    _
  $region7: #{encode_image.13} parent=0 // pred_check_branch
    %13 = sbr.rel (0) target = $region9
  $region8: #{encode_image.13} parent=0 // pred_region
    _
  $region9: #{encode_image.13} parent=0 // pred_fallthru
    _
  // Predicated region
  $region10: #{encode_image.13} parent=0 // pred_check
    _
  $region11: #{encode_image.13} parent=0 // pred_check_branch
    %15 = sbr.rel (0) target = $region13
  $region12: #{encode_image.13} parent=0 // pred_region
    _
  $region13: #{encode_image.13} parent=0 // pred_fallthru
    _
  // Predicated region
  $region14: #{encode_image.13} parent=0 // pred_check
    _
  $region15: #{encode_image.13} parent=0 // pred_check_branch
    %17 = sbr.rel (0) target = $region17
  $region16: #{encode_image.13} parent=0 // pred_region
    _
  $region17: #{encode_image.13} parent=0 // pred_fallthru
    _
  // Predicated region
  $region18: #{encode_image.13} parent=0 // pred_check
    _
  $region19: #{encode_image.13} parent=0 // pred_check_branch
    %19 = sbr.rel (0) target = $region21
  $region20: #{encode_image.13} parent=0 // pred_region
    _
  $region21: #{encode_image.13} parent=0 // pred_fallthru
    _
  %v20 = vld [vmem:[%s0] sm:$0xff]
  %v21 = vld [vmem:[%s0 + $0x8] sm:$0x11]
  %v22 = vunpack.c.l.bf16 %v20
  %v23 = vunpack.c.h.bf16 %v20
  %v24 = vunpack.c.l.bf16 %v21
  %v25 = vunpack.c.h.bf16 %v21
  %v26 = vadd.f32 %v22, %v23
  %27 = vadd.xlane.f32.xlu0 %v26
  %v28 = vpop.xlane.xlu0 %27
  %vm29 = vcmask 1041408
  %v30 = vsel %vm29, %v24, 0.0
  %v31 = vsel %vm29, %v25, 0.0
  %v32 = vadd.f32 %v30, %v31
  %33 = vadd.xlane.f32.xlu0 %v32
  %v34 = vpop.xlane.xlu0 %33
  %v35 = vrcp.pop 256.0
  %v36 = vmul.f32 %v28, %v35
  %v37 = vmul.f32 %v34, %v35
  %v38 = vsub.f32 %v22, %v36
  %v39 = vsub.f32 %v23, %v36
  %v40 = vsub.f32 %v24, %v37
  %v41 = vsub.f32 %v25, %v37
  %v42 = vmul.f32 %v38, %v38
  %v43 = vmul.f32 %v39, %v39
  %v44 = vmul.f32 %v40, %v40
  %v45 = vmul.f32 %v41, %v41
  %v46 = vadd.f32 %v42, %v43
  %47 = vadd.xlane.f32.xlu0 %v46
  %v48 = vpop.xlane.xlu0 %47
  %v49 = vsel %vm29, %v44, 0.0
  %v50 = vsel %vm29, %v45, 0.0
  %v51 = vadd.f32 %v49, %v50
  %52 = vadd.xlane.f32.xlu0 %v51
  %v53 = vpop.xlane.xlu0 %52
  %v54 = vmul.f32 %v48, %v35
  %v55 = vmul.f32 %v53, %v35
  %v56 = vadd.f32 %v54, 1e-05
  %v57 = vadd.f32 %v55, 1e-05
  %v58 = vrsqrt.pop %v56
  %v59 = vrsqrt.pop %v57
  %v60 = vmul.f32 %v38, %v58
  %v61 = vmul.f32 %v39, %v58
  %v62 = vmul.f32 %v40, %v59
  %v63 = vmul.f32 %v41, %v59
  %v64 = vld [vmem:[%s1] sm:$0x3]
  %v66 = vlaneseq
  %v67 = vshrl.u32 %v66, 7
  %v68 = vsub.s32 0, %v67
  %v69 = vrot.slane %v64, %v68
  %v70 = vlaneseq
  %v71 = vshrl.u32 %v70, 7
  %v72 = vsub.s32 1, %v71
  %v73 = vrot.slane %v64, %v72
  %v76 = vmul.f32 %v60, %v69
  %v77 = vmul.f32 %v61, %v73
  %v78 = vmul.f32 %v62, %v69
  %v79 = vmul.f32 %v63, %v73
  %v80 = vld [vmem:[%s2] sm:$0x3]
  %v82 = vlaneseq
  %v83 = vshrl.u32 %v82, 7
  %v84 = vsub.s32 0, %v83
  %v85 = vrot.slane %v80, %v84
  %v86 = vlaneseq
  %v87 = vshrl.u32 %v86, 7
  %v88 = vsub.s32 1, %v87
  %v89 = vrot.slane %v80, %v88
  %v92 = vadd.f32 %v76, %v85
  %v93 = vadd.f32 %v77, %v89
  %v94 = vadd.f32 %v78, %v85
  %v95 = vadd.f32 %v79, %v89
  %v96 = vpack.c.bf16 %v94, %v92
  %v97 = vpack.c.bf16 %v95, %v93
  %v98 = vld [vmem:[%s3] sm:$0xff]
  %v99 = vld [vmem:[%s3 + $0x8] sm:$0xff]
  %v100 = vld [vmem:[%s3 + $0x10] sm:$0xff]
  %v101 = vld [vmem:[%s3 + $0x18] sm:$0xff]
  %v102 = vld [vmem:[%s3 + $0x20] sm:$0xff]
  %v103 = vld [vmem:[%s3 + $0x28] sm:$0xff]
  %v104 = vld [vmem:[%s3 + $0x30] sm:$0xff]
  %v105 = vld [vmem:[%s3 + $0x38] sm:$0xff]
  %v106 = vld [vmem:[%s3 + $0x40] sm:$0xff]
  %v107 = vld [vmem:[%s3 + $0x48] sm:$0xff]
  %v108 = vld [vmem:[%s3 + $0x50] sm:$0xff]
  %v109 = vld [vmem:[%s3 + $0x58] sm:$0xff]
  %v110 = vld [vmem:[%s3 + $0x60] sm:$0xff]
  %v111 = vld [vmem:[%s3 + $0x68] sm:$0xff]
  %v112 = vld [vmem:[%s3 + $0x70] sm:$0xff]
  %v113 = vld [vmem:[%s3 + $0x78] sm:$0xff]
  %v114 = vld [vmem:[%s3 + $0x80] sm:$0xff]
  %v115 = vld [vmem:[%s3 + $0x88] sm:$0xff]
  %v116 = vld [vmem:[%s3 + $0x90] sm:$0xff]
  %v117 = vld [vmem:[%s3 + $0x98] sm:$0xff]
  %v118 = vld [vmem:[%s3 + $0xa0] sm:$0xff]
  %v119 = vld [vmem:[%s3 + $0xa8] sm:$0xff]
  %v120 = vld [vmem:[%s3 + $0xb0] sm:$0xff]
  %v121 = vld [vmem:[%s3 + $0xb8] sm:$0xff]
  %v122 = vld [vmem:[%s3 + $0xc0] sm:$0xff]
  %v123 = vld [vmem:[%s3 + $0xc8] sm:$0xff]
  %v124 = vld [vmem:[%s3 + $0xd0] sm:$0xff]
  %v125 = vld [vmem:[%s3 + $0xd8] sm:$0xff]
  %v126 = vld [vmem:[%s3 + $0xe0] sm:$0xff]
  %v127 = vld [vmem:[%s3 + $0xe8] sm:$0xff]
  %v128 = vld [vmem:[%s3 + $0xf0] sm:$0xff]
  %v129 = vld [vmem:[%s3 + $0xf8] sm:$0xff]
  %v130 = vld [vmem:[%s3 + $0x100] sm:$0xff]
  %v131 = vld [vmem:[%s3 + $0x108] sm:$0xff]
  %v132 = vld [vmem:[%s3 + $0x110] sm:$0xff]
  %v133 = vld [vmem:[%s3 + $0x118] sm:$0xff]
  %v134 = vld [vmem:[%s3 + $0x120] sm:$0xff]
  %v135 = vld [vmem:[%s3 + $0x128] sm:$0xff]
  %v136 = vld [vmem:[%s3 + $0x130] sm:$0xff]
  %v137 = vld [vmem:[%s3 + $0x138] sm:$0xff]
  %v138 = vld [vmem:[%s3 + $0x140] sm:$0xff]
  %v139 = vld [vmem:[%s3 + $0x148] sm:$0xff]
  %v140 = vld [vmem:[%s3 + $0x150] sm:$0xff]
  %v141 = vld [vmem:[%s3 + $0x158] sm:$0xff]
  %v142 = vld [vmem:[%s3 + $0x160] sm:$0xff]
  %v143 = vld [vmem:[%s3 + $0x168] sm:$0xff]
  %v144 = vld [vmem:[%s3 + $0x170] sm:$0xff]
  %v145 = vld [vmem:[%s3 + $0x178] sm:$0xff]
  %v146 = vld [vmem:[%s3 + $0x180] sm:$0xff]
  %v147 = vld [vmem:[%s3 + $0x188] sm:$0xff]
  %v148 = vld [vmem:[%s3 + $0x190] sm:$0xff]
  %v149 = vld [vmem:[%s3 + $0x198] sm:$0xff]
  %v150 = vld [vmem:[%s3 + $0x1a0] sm:$0xff]
  %v151 = vld [vmem:[%s3 + $0x1a8] sm:$0xff]
  %v152 = vld [vmem:[%s3 + $0x1b0] sm:$0xff]
  %v153 = vld [vmem:[%s3 + $0x1b8] sm:$0xff]
  %v154 = vld [vmem:[%s3 + $0x1c0] sm:$0xff]
  %v155 = vld [vmem:[%s3 + $0x1c8] sm:$0xff]
  %v156 = vld [vmem:[%s3 + $0x1d0] sm:$0xff]
  %v157 = vld [vmem:[%s3 + $0x1d8] sm:$0xff]
  %v158 = vld [vmem:[%s3 + $0x1e0] sm:$0xff]
  %v159 = vld [vmem:[%s3 + $0x1e8] sm:$0xff]
  %v160 = vld [vmem:[%s3 + $0x1f0] sm:$0xff]
  %v161 = vld [vmem:[%s3 + $0x1f8] sm:$0xff]
  %v162 = vld [vmem:[%s3 + $0x200] sm:$0xff]
  %v163 = vld [vmem:[%s3 + $0x208] sm:$0xff]
  %v164 = vld [vmem:[%s3 + $0x210] sm:$0xff]
  %v165 = vld [vmem:[%s3 + $0x218] sm:$0xff]
  %v166 = vld [vmem:[%s3 + $0x220] sm:$0xff]
  %v167 = vld [vmem:[%s3 + $0x228] sm:$0xff]
  %v168 = vld [vmem:[%s3 + $0x230] sm:$0xff]
  %v169 = vld [vmem:[%s3 + $0x238] sm:$0xff]
  %v170 = vld [vmem:[%s3 + $0x240] sm:$0xff]
  %v171 = vld [vmem:[%s3 + $0x248] sm:$0xff]
  %v172 = vld [vmem:[%s3 + $0x250] sm:$0xff]
  %v173 = vld [vmem:[%s3 + $0x258] sm:$0xff]
  %v174 = vld [vmem:[%s3 + $0x260] sm:$0xff]
  %v175 = vld [vmem:[%s3 + $0x268] sm:$0xff]
  %v176 = vld [vmem:[%s3 + $0x270] sm:$0xff]
  %v177 = vld [vmem:[%s3 + $0x278] sm:$0xff]
  %v178 = vld [vmem:[%s3 + $0x280] sm:$0xff]
  %v179 = vld [vmem:[%s3 + $0x288] sm:$0xff]
  %v180 = vld [vmem:[%s3 + $0x290] sm:$0xff]
  %v181 = vld [vmem:[%s3 + $0x298] sm:$0xff]
  %v182 = vld [vmem:[%s3 + $0x2a0] sm:$0xff]
  %v183 = vld [vmem:[%s3 + $0x2a8] sm:$0xff]
  %v184 = vld [vmem:[%s3 + $0x2b0] sm:$0xff]
  %v185 = vld [vmem:[%s3 + $0x2b8] sm:$0xff]
  %v186 = vld [vmem:[%s3 + $0x2c0] sm:$0xff]
  %v187 = vld [vmem:[%s3 + $0x2c8] sm:$0xff]
  %v188 = vld [vmem:[%s3 + $0x2d0] sm:$0xff]
  %v189 = vld [vmem:[%s3 + $0x2d8] sm:$0xff]
  %v190 = vld [vmem:[%s3 + $0x2e0] sm:$0xff]
  %v191 = vld [vmem:[%s3 + $0x2e8] sm:$0xff]
  %v192 = vld [vmem:[%s3 + $0x2f0] sm:$0xff]
  %v193 = vld [vmem:[%s3 + $0x2f8] sm:$0xff]
  %v194 = vld [vmem:[%s4] sm:$0x3f]
  %v195 = vunpack.c.l.bf16 %v194
  %v196 = vunpack.c.h.bf16 %v194
  %v199 = vlaneseq
  %v200 = vshrl.u32 %v199, 7
  %v201 = vsub.s32 0, %v200
  %v202 = vrot.slane %v195, %v201
  %v203 = vlaneseq
  %v204 = vshrl.u32 %v203, 7
  %v205 = vsub.s32 2, %v204
  %v206 = vrot.slane %v195, %v205
  %v207 = vlaneseq
  %v208 = vshrl.u32 %v207, 7
  %v209 = vsub.s32 4, %v208
  %v210 = vrot.slane %v195, %v209
  %v211 = vlaneseq
  %v212 = vshrl.u32 %v211, 7
  %v213 = vsub.s32 6, %v212
  %v214 = vrot.slane %v195, %v213
  %v215 = vlaneseq
  %v216 = vshrl.u32 %v215, 7
  %v217 = vsub.s32 0, %v216
  %v218 = vrot.slane %v196, %v217
  %v219 = vlaneseq
  %v220 = vshrl.u32 %v219, 7
  %v221 = vsub.s32 2, %v220
  %v222 = vrot.slane %v196, %v221
  %v229 = vlaneseq
  %v230 = vshrl.u32 %v229, 7
  %v231 = vsub.s32 0, %v230
  %v232 = vrot.slane %v202, %v231
  %v233 = vlaneseq
  %v234 = vshrl.u32 %v233, 7
  %v235 = vsub.s32 0, %v234
  %v236 = vrot.slane %v206, %v235
  %v237 = vlaneseq
  %v238 = vshrl.u32 %v237, 7
  %v239 = vsub.s32 0, %v238
  %v240 = vrot.slane %v210, %v239
  %v241 = vlaneseq
  %v242 = vshrl.u32 %v241, 7
  %v243 = vsub.s32 0, %v242
  %v244 = vrot.slane %v214, %v243
  %v245 = vlaneseq
  %v246 = vshrl.u32 %v245, 7
  %v247 = vsub.s32 0, %v246
  %v248 = vrot.slane %v218, %v247
  %v249 = vlaneseq
  %v250 = vshrl.u32 %v249, 7
  %v251 = vsub.s32 0, %v250
  %v252 = vrot.slane %v222, %v251
  %v349 = vunpack.c.l.b16 %v98
  %v350 = vunpack.c.h.b16 %v98
  %v351 = vunpack.c.l.b16 %v99
  %v352 = vunpack.c.h.b16 %v99
  %v353 = vunpack.c.l.b16 %v100
  %v354 = vunpack.c.h.b16 %v100
  %v355 = vunpack.c.l.b16 %v101
  %v356 = vunpack.c.h.b16 %v101
  %v357 = vunpack.c.l.b16 %v102
  %v358 = vunpack.c.h.b16 %v102
  %v359 = vunpack.c.l.b16 %v103
  %v360 = vunpack.c.h.b16 %v103
  %v361 = vunpack.c.l.b16 %v104
  %v362 = vunpack.c.h.b16 %v104
  %v363 = vunpack.c.l.b16 %v105
  %v364 = vunpack.c.h.b16 %v105
  %v365 = vunpack.c.l.b16 %v106
  %v366 = vunpack.c.h.b16 %v106
  %v367 = vunpack.c.l.b16 %v107
  %v368 = vunpack.c.h.b16 %v107
  %v369 = vunpack.c.l.b16 %v108
  %v370 = vunpack.c.h.b16 %v108
  %v371 = vunpack.c.l.b16 %v109
  %v372 = vunpack.c.h.b16 %v109
  %v373 = vunpack.c.l.b16 %v110
  %v374 = vunpack.c.h.b16 %v110
  %v375 = vunpack.c.l.b16 %v111
  %v376 = vunpack.c.h.b16 %v111
  %v377 = vunpack.c.l.b16 %v112
  %v378 = vunpack.c.h.b16 %v112
  %v379 = vunpack.c.l.b16 %v113
  %v380 = vunpack.c.h.b16 %v113
  %v381 = vunpack.c.l.b16 %v114
  %v382 = vunpack.c.h.b16 %v114
  %v383 = vunpack.c.l.b16 %v115
  %v384 = vunpack.c.h.b16 %v115
  %v385 = vunpack.c.l.b16 %v116
  %v386 = vunpack.c.h.b16 %v116
  %v387 = vunpack.c.l.b16 %v117
  %v388 = vunpack.c.h.b16 %v117
  %v389 = vunpack.c.l.b16 %v118
  %v390 = vunpack.c.h.b16 %v118
  %v391 = vunpack.c.l.b16 %v119
  %v392 = vunpack.c.h.b16 %v119
  %v393 = vunpack.c.l.b16 %v120
  %v394 = vunpack.c.h.b16 %v120
  %v395 = vunpack.c.l.b16 %v121
  %v396 = vunpack.c.h.b16 %v121
  %v397 = vunpack.c.l.b16 %v122
  %v398 = vunpack.c.h.b16 %v122
  %v399 = vunpack.c.l.b16 %v123
  %v400 = vunpack.c.h.b16 %v123
  %v401 = vunpack.c.l.b16 %v124
  %v402 = vunpack.c.h.b16 %v124
  %v403 = vunpack.c.l.b16 %v125
  %v404 = vunpack.c.h.b16 %v125
  %v405 = vunpack.c.l.b16 %v126
  %v406 = vunpack.c.h.b16 %v126
  %v407 = vunpack.c.l.b16 %v127
  %v408 = vunpack.c.h.b16 %v127
  %v409 = vunpack.c.l.b16 %v128
  %v410 = vunpack.c.h.b16 %v128
  %v411 = vunpack.c.l.b16 %v129
  %v412 = vunpack.c.h.b16 %v129
  %v413 = vunpack.c.l.b16 %v130
  %v414 = vunpack.c.h.b16 %v130
  %v415 = vunpack.c.l.b16 %v131
  %v416 = vunpack.c.h.b16 %v131
  %v417 = vunpack.c.l.b16 %v132
  %v418 = vunpack.c.h.b16 %v132
  %v419 = vunpack.c.l.b16 %v133
  %v420 = vunpack.c.h.b16 %v133
  %v421 = vunpack.c.l.b16 %v134
  %v422 = vunpack.c.h.b16 %v134
  %v423 = vunpack.c.l.b16 %v135
  %v424 = vunpack.c.h.b16 %v135
  %v425 = vunpack.c.l.b16 %v136
  %v426 = vunpack.c.h.b16 %v136
  %v427 = vunpack.c.l.b16 %v137
  %v428 = vunpack.c.h.b16 %v137
  %v429 = vunpack.c.l.b16 %v138
  %v430 = vunpack.c.h.b16 %v138
  %v431 = vunpack.c.l.b16 %v139
  %v432 = vunpack.c.h.b16 %v139
  %v433 = vunpack.c.l.b16 %v140
  %v434 = vunpack.c.h.b16 %v140
  %v435 = vunpack.c.l.b16 %v141
  %v436 = vunpack.c.h.b16 %v141
  %v437 = vunpack.c.l.b16 %v142
  %v438 = vunpack.c.h.b16 %v142
  %v439 = vunpack.c.l.b16 %v143
  %v440 = vunpack.c.h.b16 %v143
  %v441 = vunpack.c.l.b16 %v144
  %v442 = vunpack.c.h.b16 %v144
  %v443 = vunpack.c.l.b16 %v145
  %v444 = vunpack.c.h.b16 %v145
  %v445 = vunpack.c.l.b16 %v146
  %v446 = vunpack.c.h.b16 %v146
  %v447 = vunpack.c.l.b16 %v147
  %v448 = vunpack.c.h.b16 %v147
  %v449 = vunpack.c.l.b16 %v148
  %v450 = vunpack.c.h.b16 %v148
  %v451 = vunpack.c.l.b16 %v149
  %v452 = vunpack.c.h.b16 %v149
  %v453 = vunpack.c.l.b16 %v150
  %v454 = vunpack.c.h.b16 %v150
  %v455 = vunpack.c.l.b16 %v151
  %v456 = vunpack.c.h.b16 %v151
  %v457 = vunpack.c.l.b16 %v152
  %v458 = vunpack.c.h.b16 %v152
  %v459 = vunpack.c.l.b16 %v153
  %v460 = vunpack.c.h.b16 %v153
  %v461 = vunpack.c.l.b16 %v154
  %v462 = vunpack.c.h.b16 %v154
  %v463 = vunpack.c.l.b16 %v155
  %v464 = vunpack.c.h.b16 %v155
  %v465 = vunpack.c.l.b16 %v156
  %v466 = vunpack.c.h.b16 %v156
  %v467 = vunpack.c.l.b16 %v157
  %v468 = vunpack.c.h.b16 %v157
  %v469 = vunpack.c.l.b16 %v158
  %v470 = vunpack.c.h.b16 %v158
  %v471 = vunpack.c.l.b16 %v159
  %v472 = vunpack.c.h.b16 %v159
  %v473 = vunpack.c.l.b16 %v160
  %v474 = vunpack.c.h.b16 %v160
  %v475 = vunpack.c.l.b16 %v161
  %v476 = vunpack.c.h.b16 %v161
  %v477 = vunpack.c.l.b16 %v162
  %v478 = vunpack.c.h.b16 %v162
  %v479 = vunpack.c.l.b16 %v163
  %v480 = vunpack.c.h.b16 %v163
  %v481 = vunpack.c.l.b16 %v164
  %v482 = vunpack.c.h.b16 %v164
  %v483 = vunpack.c.l.b16 %v165
  %v484 = vunpack.c.h.b16 %v165
  %v485 = vunpack.c.l.b16 %v166
  %v486 = vunpack.c.h.b16 %v166
  %v487 = vunpack.c.l.b16 %v167
  %v488 = vunpack.c.h.b16 %v167
  %v489 = vunpack.c.l.b16 %v168
  %v490 = vunpack.c.h.b16 %v168
  %v491 = vunpack.c.l.b16 %v169
  %v492 = vunpack.c.h.b16 %v169
  %v493 = vunpack.c.l.b16 %v170
  %v494 = vunpack.c.h.b16 %v170
  %v495 = vunpack.c.l.b16 %v171
  %v496 = vunpack.c.h.b16 %v171
  %v497 = vunpack.c.l.b16 %v172
  %v498 = vunpack.c.h.b16 %v172
  %v499 = vunpack.c.l.b16 %v173
  %v500 = vunpack.c.h.b16 %v173
  %v501 = vunpack.c.l.b16 %v174
  %v502 = vunpack.c.h.b16 %v174
  %v503 = vunpack.c.l.b16 %v175
  %v504 = vunpack.c.h.b16 %v175
  %v505 = vunpack.c.l.b16 %v176
  %v506 = vunpack.c.h.b16 %v176
  %v507 = vunpack.c.l.b16 %v177
  %v508 = vunpack.c.h.b16 %v177
  %v509 = vunpack.c.l.b16 %v178
  %v510 = vunpack.c.h.b16 %v178
  %v511 = vunpack.c.l.b16 %v179
  %v512 = vunpack.c.h.b16 %v179
  %v513 = vunpack.c.l.b16 %v180
  %v514 = vunpack.c.h.b16 %v180
  %v515 = vunpack.c.l.b16 %v181
  %v516 = vunpack.c.h.b16 %v181
  %v517 = vunpack.c.l.b16 %v182
  %v518 = vunpack.c.h.b16 %v182
  %v519 = vunpack.c.l.b16 %v183
  %v520 = vunpack.c.h.b16 %v183
  %v521 = vunpack.c.l.b16 %v184
  %v522 = vunpack.c.h.b16 %v184
  %v523 = vunpack.c.l.b16 %v185
  %v524 = vunpack.c.h.b16 %v185
  %v525 = vunpack.c.l.b16 %v186
  %v526 = vunpack.c.h.b16 %v186
  %v527 = vunpack.c.l.b16 %v187
  %v528 = vunpack.c.h.b16 %v187
  %v529 = vunpack.c.l.b16 %v188
  %v530 = vunpack.c.h.b16 %v188
  %v531 = vunpack.c.l.b16 %v189
  %v532 = vunpack.c.h.b16 %v189
  %v533 = vunpack.c.l.b16 %v190
  %v534 = vunpack.c.h.b16 %v190
  %v535 = vunpack.c.l.b16 %v191
  %v536 = vunpack.c.h.b16 %v191
  %v537 = vunpack.c.l.b16 %v192
  %v538 = vunpack.c.h.b16 %v192
  %v539 = vunpack.c.l.b16 %v193
  %v540 = vunpack.c.h.b16 %v193
  %v541 = vpack.c.b16 %v355, %v349
  %v542 = vpack.c.b16 %v356, %v350
  %v543 = vpack.c.b16 %v357, %v351
  %v544 = vpack.c.b16 %v358, %v352
  %v545 = vpack.c.b16 %v359, %v353
  %v546 = vpack.c.b16 %v360, %v354
  %v547 = vpack.c.b16 %v367, %v361
  %v548 = vpack.c.b16 %v368, %v362
  %v549 = vpack.c.b16 %v369, %v363
  %v550 = vpack.c.b16 %v370, %v364
  %v551 = vpack.c.b16 %v371, %v365
  %v552 = vpack.c.b16 %v372, %v366
  %v553 = vpack.c.b16 %v379, %v373
  %v554 = vpack.c.b16 %v380, %v374
  %v555 = vpack.c.b16 %v381, %v375
  %v556 = vpack.c.b16 %v382, %v376
  %v557 = vpack.c.b16 %v383, %v377
  %v558 = vpack.c.b16 %v384, %v378
  %v559 = vpack.c.b16 %v391, %v385
  %v560 = vpack.c.b16 %v392, %v386
  %v561 = vpack.c.b16 %v393, %v387
  %v562 = vpack.c.b16 %v394, %v388
  %v563 = vpack.c.b16 %v395, %v389
  %v564 = vpack.c.b16 %v396, %v390
  %v565 = vpack.c.b16 %v403, %v397
  %v566 = vpack.c.b16 %v404, %v398
  %v567 = vpack.c.b16 %v405, %v399
  %v568 = vpack.c.b16 %v406, %v400
  %v569 = vpack.c.b16 %v407, %v401
  %v570 = vpack.c.b16 %v408, %v402
  %v571 = vpack.c.b16 %v415, %v409
  %v572 = vpack.c.b16 %v416, %v410
  %v573 = vpack.c.b16 %v417, %v411
  %v574 = vpack.c.b16 %v418, %v412
  %v575 = vpack.c.b16 %v419, %v413
  %v576 = vpack.c.b16 %v420, %v414
  %v577 = vpack.c.b16 %v427, %v421
  %v578 = vpack.c.b16 %v428, %v422
  %v579 = vpack.c.b16 %v429, %v423
  %v580 = vpack.c.b16 %v430, %v424
  %v581 = vpack.c.b16 %v431, %v425
  %v582 = vpack.c.b16 %v432, %v426
  %v583 = vpack.c.b16 %v439, %v433
  %v584 = vpack.c.b16 %v440, %v434
  %v585 = vpack.c.b16 %v441, %v435
  %v586 = vpack.c.b16 %v442, %v436
  %v587 = vpack.c.b16 %v443, %v437
  %v588 = vpack.c.b16 %v444, %v438
  %v589 = vpack.c.b16 %v451, %v445
  %v590 = vpack.c.b16 %v452, %v446
  %v591 = vpack.c.b16 %v453, %v447
  %v592 = vpack.c.b16 %v454, %v448
  %v593 = vpack.c.b16 %v455, %v449
  %v594 = vpack.c.b16 %v456, %v450
  %v595 = vpack.c.b16 %v463, %v457
  %v596 = vpack.c.b16 %v464, %v458
  %v597 = vpack.c.b16 %v465, %v459
  %v598 = vpack.c.b16 %v466, %v460
  %v599 = vpack.c.b16 %v467, %v461
  %v600 = vpack.c.b16 %v468, %v462
  %v601 = vpack.c.b16 %v475, %v469
  %v602 = vpack.c.b16 %v476, %v470
  %v603 = vpack.c.b16 %v477, %v471
  %v604 = vpack.c.b16 %v478, %v472
  %v605 = vpack.c.b16 %v479, %v473
  %v606 = vpack.c.b16 %v480, %v474
  %v607 = vpack.c.b16 %v487, %v481
  %v608 = vpack.c.b16 %v488, %v482
  %v609 = vpack.c.b16 %v489, %v483
  %v610 = vpack.c.b16 %v490, %v484
  %v611 = vpack.c.b16 %v491, %v485
  %v612 = vpack.c.b16 %v492, %v486
  %v613 = vpack.c.b16 %v499, %v493
  %v614 = vpack.c.b16 %v500, %v494
  %v615 = vpack.c.b16 %v501, %v495
  %v616 = vpack.c.b16 %v502, %v496
  %v617 = vpack.c.b16 %v503, %v497
  %v618 = vpack.c.b16 %v504, %v498
  %v619 = vpack.c.b16 %v511, %v505
  %v620 = vpack.c.b16 %v512, %v506
  %v621 = vpack.c.b16 %v513, %v507
  %v622 = vpack.c.b16 %v514, %v508
  %v623 = vpack.c.b16 %v515, %v509
  %v624 = vpack.c.b16 %v516, %v510
  %v625 = vpack.c.b16 %v523, %v517
  %v626 = vpack.c.b16 %v524, %v518
  %v627 = vpack.c.b16 %v525, %v519
  %v628 = vpack.c.b16 %v526, %v520
  %v629 = vpack.c.b16 %v527, %v521
  %v630 = vpack.c.b16 %v528, %v522
  %v631 = vpack.c.b16 %v535, %v529
  %v632 = vpack.c.b16 %v536, %v530
  %v633 = vpack.c.b16 %v537, %v531
  %v634 = vpack.c.b16 %v538, %v532
  %v635 = vpack.c.b16 %v539, %v533
  %v636 = vpack.c.b16 %v540, %v534
  %733 = vmatprep.subr.bf16.mxu0 %v584
  %734 = vmatpush1.bf16.msra.mxu0 %v583
  %735 = vmatprep.subr.bf16.mxu0 %v578
  %736 = vmatpush1.bf16.msra.mxu0 %v577
  %737 = vmatprep.subr.bf16.mxu0 %v572
  %738 = vmatpush1.bf16.msra.mxu0 %v571
  %739 = vmatprep.subr.bf16.mxu0 %v566
  %740 = vmatpush1.bf16.msra.mxu0 %v565
  %741 = vmatprep.subr.bf16.mxu0 %v560
  %742 = vmatpush1.bf16.msra.mxu0 %v559
  %743 = vmatprep.subr.bf16.mxu0 %v554
  %744 = vmatpush1.bf16.msra.mxu0 %v553
  %745 = vmatprep.subr.bf16.mxu0 %v548
  %746 = vmatpush1.bf16.msra.mxu0 %v547
  %747 = vmatprep.subr.bf16.mxu0 %v542
  %748 = vmatpush1.bf16.msra.mxu0 %v541
  %749 = vmatprep.subr.bf16.mxu0 %v632
  %750 = vmatpush2.bf16.msra.mxu0 %v631
  %751 = vmatprep.subr.bf16.mxu0 %v626
  %752 = vmatpush2.bf16.msra.mxu0 %v625
  %753 = vmatprep.subr.bf16.mxu0 %v620
  %754 = vmatpush2.bf16.msra.mxu0 %v619
  %755 = vmatprep.subr.bf16.mxu0 %v614
  %756 = vmatpush2.bf16.msra.mxu0 %v613
  %757 = vmatprep.subr.bf16.mxu0 %v608
  %758 = vmatpush2.bf16.msra.mxu0 %v607
  %759 = vmatprep.subr.bf16.mxu0 %v602
  %760 = vmatpush2.bf16.msra.mxu0 %v601
  %761 = vmatprep.subr.bf16.mxu0 %v596
  %762 = vmatpush2.bf16.msra.mxu0 %v595
  %763 = vmatprep.subr.bf16.mxu0 %v590
  %764 = vmatpush2.bf16.msra.mxu0 %v589
  %765 = vmatprep.mubr.bf16.mxu0 %v97
  %766 = vmatmul.mubr.bf16.gmra.mxu0 %v96
  %v767 = vpop.f32.mrf.mxu0
  %v768 = vadd.f32 %v232, %v767
  %v769 = vpop.f32.mrf.mxu0
  %v770 = vadd.f32 %v236, %v769
  %v771 = vpop.f32.mrf.mxu0
  %v772 = vadd.f32 %v232, %v771
  %v773 = vpop.f32.mrf.mxu0
  %v774 = vadd.f32 %v236, %v773
  %775 = vdwg.mxu0
  %776 = vmatprep.subr.bf16.mxu0 %v586
  %777 = vmatpush1.bf16.msra.mxu0 %v585
  %778 = vmatprep.subr.bf16.mxu0 %v580
  %779 = vmatpush1.bf16.msra.mxu0 %v579
  %780 = vmatprep.subr.bf16.mxu0 %v574
  %781 = vmatpush1.bf16.msra.mxu0 %v573
  %782 = vmatprep.subr.bf16.mxu0 %v568
  %783 = vmatpush1.bf16.msra.mxu0 %v567
  %784 = vmatprep.subr.bf16.mxu0 %v562
  %785 = vmatpush1.bf16.msra.mxu0 %v561
  %786 = vmatprep.subr.bf16.mxu0 %v556
  %787 = vmatpush1.bf16.msra.mxu0 %v555
  %788 = vmatprep.subr.bf16.mxu0 %v550
  %789 = vmatpush1.bf16.msra.mxu0 %v549
  %790 = vmatprep.subr.bf16.mxu0 %v544
  %791 = vmatpush1.bf16.msra.mxu0 %v543
  %792 = vmatprep.subr.bf16.mxu0 %v634
  %793 = vmatpush2.bf16.msra.mxu0 %v633
  %794 = vmatprep.subr.bf16.mxu0 %v628
  %795 = vmatpush2.bf16.msra.mxu0 %v627
  %796 = vmatprep.subr.bf16.mxu0 %v622
  %797 = vmatpush2.bf16.msra.mxu0 %v621
  %798 = vmatprep.subr.bf16.mxu0 %v616
  %799 = vmatpush2.bf16.msra.mxu0 %v615
  %800 = vmatprep.subr.bf16.mxu0 %v610
  %801 = vmatpush2.bf16.msra.mxu0 %v609
  %802 = vmatprep.subr.bf16.mxu0 %v604
  %803 = vmatpush2.bf16.msra.mxu0 %v603
  %804 = vmatprep.subr.bf16.mxu0 %v598
  %805 = vmatpush2.bf16.msra.mxu0 %v597
  %806 = vmatprep.subr.bf16.mxu0 %v592
  %807 = vmatpush2.bf16.msra.mxu0 %v591
  %808 = vmatprep.mubr.bf16.mxu0 %v97
  %809 = vmatmul.mubr.bf16.gmra.mxu0 %v96
  %v810 = vpop.f32.mrf.mxu0
  %v811 = vadd.f32 %v240, %v810
  %v812 = vpop.f32.mrf.mxu0
  %v813 = vadd.f32 %v244, %v812
  %v814 = vpop.f32.mrf.mxu0
  %v815 = vadd.f32 %v240, %v814
  %v816 = vpop.f32.mrf.mxu0
  %v817 = vadd.f32 %v244, %v816
  %818 = vdwg.mxu0
  %819 = vmatprep.subr.bf16.mxu0 %v588
  %820 = vmatpush1.bf16.msra.mxu0 %v587
  %821 = vmatprep.subr.bf16.mxu0 %v582
  %822 = vmatpush1.bf16.msra.mxu0 %v581
  %823 = vmatprep.subr.bf16.mxu0 %v576
  %824 = vmatpush1.bf16.msra.mxu0 %v575
  %825 = vmatprep.subr.bf16.mxu0 %v570
  %826 = vmatpush1.bf16.msra.mxu0 %v569
  %827 = vmatprep.subr.bf16.mxu0 %v564
  %828 = vmatpush1.bf16.msra.mxu0 %v563
  %829 = vmatprep.subr.bf16.mxu0 %v558
  %830 = vmatpush1.bf16.msra.mxu0 %v557
  %831 = vmatprep.subr.bf16.mxu0 %v552
  %832 = vmatpush1.bf16.msra.mxu0 %v551
  %833 = vmatprep.subr.bf16.mxu0 %v546
  %834 = vmatpush1.bf16.msra.mxu0 %v545
  %835 = vmatprep.subr.bf16.mxu0 %v636
  %836 = vmatpush2.bf16.msra.mxu0 %v635
  %837 = vmatprep.subr.bf16.mxu0 %v630
  %838 = vmatpush2.bf16.msra.mxu0 %v629
  %839 = vmatprep.subr.bf16.mxu0 %v624
  %840 = vmatpush2.bf16.msra.mxu0 %v623
  %841 = vmatprep.subr.bf16.mxu0 %v618
  %842 = vmatpush2.bf16.msra.mxu0 %v617
  %843 = vmatprep.subr.bf16.mxu0 %v612
  %844 = vmatpush2.bf16.msra.mxu0 %v611
  %845 = vmatprep.subr.bf16.mxu0 %v606
  %846 = vmatpush2.bf16.msra.mxu0 %v605
  %847 = vmatprep.subr.bf16.mxu0 %v600
  %848 = vmatpush2.bf16.msra.mxu0 %v599
  %849 = vmatprep.subr.bf16.mxu0 %v594
  %850 = vmatpush2.bf16.msra.mxu0 %v593
  %851 = vmatprep.mubr.bf16.mxu0 %v97
  %852 = vmatmul.mubr.bf16.gmra.mxu0 %v96
  %v853 = vpop.f32.mrf.mxu0
  %v854 = vadd.f32 %v248, %v853
  %v855 = vpop.f32.mrf.mxu0
  %v856 = vadd.f32 %v252, %v855
  %v857 = vpop.f32.mrf.mxu0
  %v858 = vadd.f32 %v248, %v857
  %v859 = vpop.f32.mrf.mxu0
  %v860 = vadd.f32 %v252, %v859
  %861 = vdwg.mxu0
  %v862 = vpack.c.bf16 %v772, %v768
  %v863 = vpack.c.bf16 %v774, %v770
  %v864 = vpack.c.bf16 %v815, %v811
  %v865 = vpack.c.bf16 %v817, %v813
  %v866 = vpack.c.bf16 %v858, %v854
  %v867 = vpack.c.bf16 %v860, %v856
  %v874 = vunpack.c.l.b16 %v862
  %v875 = vunpack.c.l.b16 %v863
  %v876 = vunpack.c.l.b16 %v864
  %v877 = vunpack.c.l.b16 %v865
  %v878 = vunpack.c.l.b16 %v866
  %v879 = vunpack.c.l.b16 %v867
  %v880 = vunpack.c.h.b16 %v862
  %v881 = vunpack.c.h.b16 %v863
  %v882 = vunpack.c.h.b16 %v864
  %v883 = vunpack.c.h.b16 %v865
  %v884 = vunpack.c.h.b16 %v866
  %v885 = vunpack.c.h.b16 %v867
  %v886 = vpack.c.b16 %v875, %v874
  %v887 = vpack.c.b16 %v877, %v876
  %v888 = vpack.c.b16 %v879, %v878
  %v889 = vpack.c.b16 %v881, %v880
  %v890 = vpack.c.b16 %v883, %v882
  %v891 = vpack.c.b16 %v885, %v884
  %898 = vst [vmem:[%s5] sm:$0xff] %v886
  %899 = vst [vmem:[%s5 + $0x8] sm:$0xff] %v887
  %900 = vst [vmem:[%s5 + $0x10] sm:$0xff] %v888
  %901 = vst [vmem:[%s5 + $0x18] sm:$0x11] %v889
  %902 = vst [vmem:[%s5 + $0x20] sm:$0x11] %v890
  %903 = vst [vmem:[%s5 + $0x28] sm:$0x11] %v891
  // Predicated region
  $region22: #{encode_image.13} parent=0 // pred_check
    _
  $region23: #{encode_image.13} parent=0 // pred_check_branch
    %905 = sbr.rel (0) target = $region25
  $region24: #{encode_image.13} parent=0 // pred_region
    _
  $region25: #{encode_image.13} parent=0 // pred_fallthru
    _
  // Predicated region
  $region26: #{encode_image.13} parent=0 // pred_check
    _
  $region27: #{encode_image.13} parent=0 // pred_check_branch
    %907 = sbr.rel (0) target = $region29
  $region28: #{encode_image.13} parent=0 // pred_region
    _
  $region29: #{encode_image.13} parent=0 // pred_fallthru
    _

// kernel: encode_image.14
$region0: #{encode_image.14}
  #allocation0 [shape = 'u32[]', space=smem, size = 0x4, offset = 0x4, fixed_abs, tag = 'smem constant byte address 0x4 - core index']
  #allocation1 [shape = 'u32[144,128]{1,0:T(1,128)}', space=vmem, size = 0x12000, scoped, tag = 'internal scratch']
  %s0 = inlined_call_operand.vmem [shape: bf16[2,5,768], index: 0, kind: input, shape index: {}, may-alias: {0,1,2}]
  %s1 = inlined_call_operand.vmem [shape: bf16[2,5,768], index: 1, kind: input, shape index: {}, may-alias: {0,1,2}]
  %s2 = inlined_call_operand.vmem [shape: bf16[2,5,768], index: 2, kind: input, shape index: {}, may-alias: {0,1,2}]
  %s3 = inlined_call_operand.vmem [shape: bf16[2,5,256], index: 3, kind: output, shape index: {}]
  %s4 = sld [smem:[#allocation0]]
  $region45: #{encode_image.14} parent=0
    _
  %s6 = ssub.s32 1, %s4
  %s7 = scalar_select 0, %s6, %s4
  loop: start=0, step=1, limit=6
  $region2: #{encode_image.14} parent=0 // loop_pre_header
    _
  $region3: #{encode_image.14} parent=0 // loop_header
    %s9 = sphi 0, %s13
    %p10 = scmp.ge.s32.totalorder %s9, 6
    %s16 = sphi 0, %s28
    %s17 = sphi 0, %s24
    %s18 = sphi 0, %s16
    %s19 = sphi 0, %s17
    %s20 = sphi 0, %s18
    %s21 = sphi 0, %s19
    %s33 = sphi 0, %s35
    %s36 = sphi 0, %s33
    %s37 = sphi 0, %s36
    %s53 = sphi 0, %s37
    %s63 = sphi 0, %s65
    %s66 = sphi 0, %s63
    %s67 = sphi 0, %s66
    %s83 = sphi 0, %s67
    %s93 = sphi 0, %s95
    %s96 = sphi 0, %s93
    %s97 = sphi 0, %s96
    %s113 = sphi 0, %s97
    %s121 = sphi 0, %s123
    %s124 = sphi 0, %s121
    %s125 = sphi 0, %s124
    %s141 = sphi 0, %s125
  $region4: #{encode_image.14} parent=0 // loop_header_branch
    %12 = sbr.rel (%p10) target = $region8
  $region5: #{encode_image.14} parent=0 // loop_body
    %s14 = ssub.s32 %s9, 1
    %s15 = ssub.s32 %s9, 2
    %s22 = sadd.s32 1, %s17
    %p23 = scmp.ge.s32.totalorder %s22, 2
    %s24 = scalar_select %p23, 0, %s22
    %s25 = sadd.s32 1, %s16
    %s26 = scalar_select %p23, %s25, %s16
    %p27 = scmp.ge.s32.totalorder %s26, 2
    %s28 = scalar_select %p27, 0, %s26
    %s29 = ssub.s32 %s16, %s28
    %s30 = ssub.s32 %s17, %s24
    %s31 = sor.u32 %s29, %s30
    %p32 = scmp.eq.s32.totalorder %s31, 0
    %s34 = sadd.s32 %s33, 1
    %s35 = scalar_select %p32, %s33, %s34
    %p38 = pneg %p32
    %p39 = scmp.eq.s32.totalorder %s9, 3
    %p40 = por %p38, %p39
    %p41 = scmp.ne.s32.totalorder %s33, %s36
    %p42 = scmp.eq.s32.totalorder %s9, 0
    %p43 = por %p41, %p42
    %p44 = scmp.ne.s32.totalorder %s33, %s36
    %p45 = scmp.eq.s32.totalorder %s14, 3
    %p46 = por %p44, %p45
    %p47 = scmp.ne.s32.totalorder %s36, %s37
    %p48 = scmp.eq.s32.totalorder %s14, 0
    %p49 = por %p47, %p48
    %p50 = scmp.ne.s32.totalorder %s36, %s37
    %p51 = scmp.eq.s32.totalorder %s15, 3
    %p52 = por %p50, %p51
    %p54 = scmp.ne.s32.totalorder %s37, %s53
    %p55 = scmp.eq.s32.totalorder %s15, 0
    %p56 = por %p54, %p55
    %s57 = sadd.s32 %s17, 2
    %s58 = sadd.s32 %s24, 2
    %s59 = ssub.s32 %s16, %s28
    %s60 = ssub.s32 %s57, %s58
    %s61 = sor.u32 %s59, %s60
    %p62 = scmp.eq.s32.totalorder %s61, 0
    %s64 = sadd.s32 %s63, 1
    %s65 = scalar_select %p62, %s63, %s64
    %p68 = pneg %p62
    %p69 = scmp.eq.s32.totalorder %s9, 3
    %p70 = por %p68, %p69
    %p71 = scmp.ne.s32.totalorder %s63, %s66
    %p72 = scmp.eq.s32.totalorder %s9, 0
    %p73 = por %p71, %p72
    %p74 = scmp.ne.s32.totalorder %s63, %s66
    %p75 = scmp.eq.s32.totalorder %s14, 3
    %p76 = por %p74, %p75
    %p77 = scmp.ne.s32.totalorder %s66, %s67
    %p78 = scmp.eq.s32.totalorder %s14, 0
    %p79 = por %p77, %p78
    %p80 = scmp.ne.s32.totalorder %s66, %s67
    %p81 = scmp.eq.s32.totalorder %s15, 3
    %p82 = por %p80, %p81
    %p84 = scmp.ne.s32.totalorder %s67, %s83
    %p85 = scmp.eq.s32.totalorder %s15, 0
    %p86 = por %p84, %p85
    %s87 = sadd.s32 %s17, 4
    %s88 = sadd.s32 %s24, 4
    %s89 = ssub.s32 %s16, %s28
    %s90 = ssub.s32 %s87, %s88
    %s91 = sor.u32 %s89, %s90
    %p92 = scmp.eq.s32.totalorder %s91, 0
    %s94 = sadd.s32 %s93, 1
    %s95 = scalar_select %p92, %s93, %s94
    %p98 = pneg %p92
    %p99 = scmp.eq.s32.totalorder %s9, 3
    %p100 = por %p98, %p99
    %p101 = scmp.ne.s32.totalorder %s93, %s96
    %p102 = scmp.eq.s32.totalorder %s9, 0
    %p103 = por %p101, %p102
    %p104 = scmp.ne.s32.totalorder %s93, %s96
    %p105 = scmp.eq.s32.totalorder %s14, 3
    %p106 = por %p104, %p105
    %p107 = scmp.ne.s32.totalorder %s96, %s97
    %p108 = scmp.eq.s32.totalorder %s14, 0
    %p109 = por %p107, %p108
    %p110 = scmp.ne.s32.totalorder %s96, %s97
    %p111 = scmp.eq.s32.totalorder %s15, 3
    %p112 = por %p110, %p111
    %p114 = scmp.ne.s32.totalorder %s97, %s113
    %p115 = scmp.eq.s32.totalorder %s15, 0
    %p116 = por %p114, %p115
    %s117 = ssub.s32 %s16, %s28
    %s118 = ssub.s32 %s17, %s24
    %s119 = sor.u32 %s117, %s118
    %p120 = scmp.eq.s32.totalorder %s119, 0
    %s122 = sadd.s32 %s121, 1
    %s123 = scalar_select %p120, %s121, %s122
    %p126 = pneg %p120
    %p127 = scmp.eq.s32.totalorder %s9, 3
    %p128 = por %p126, %p127
    %p129 = scmp.ne.s32.totalorder %s121, %s124
    %p130 = scmp.eq.s32.totalorder %s9, 0
    %p131 = por %p129, %p130
    %p132 = scmp.ne.s32.totalorder %s121, %s124
    %p133 = scmp.eq.s32.totalorder %s14, 3
    %p134 = por %p132, %p133
    %p135 = scmp.ne.s32.totalorder %s124, %s125
    %p136 = scmp.eq.s32.totalorder %s14, 0
    %p137 = por %p135, %p136
    %p138 = scmp.ne.s32.totalorder %s124, %s125
    %p139 = scmp.eq.s32.totalorder %s15, 3
    %p140 = por %p138, %p139
    %p142 = scmp.ne.s32.totalorder %s125, %s141
    %p143 = scmp.eq.s32.totalorder %s15, 0
    %p144 = por %p142, %p143
    %p145 = scmp.le.s32.totalorder 1, %s9
    %p146 = scmp.lt.s32.totalorder %s9, 5
    %p147 = pnand %p145, %p146
    %p148 = pneg %p147
    // Predicated region
    $region9: #{encode_image.14} parent=5 // pred_check
      _
    $region10: #{encode_image.14} parent=5 // pred_check_branch
      %150 = sbr.rel (%p147) target = $region12
    $region11: #{encode_image.14} parent=5 // pred_region
      %s151 = ssub.s32 %s9, 1
    $region12: #{encode_image.14} parent=5 // pred_fallthru
      _
    %p152 = scmp.lt.s32.totalorder %s9, 4
    // Predicated region
    $region13: #{encode_image.14} parent=5 // pred_check
      %p153 = pneg %p152
    $region14: #{encode_image.14} parent=5 // pred_check_branch
      %155 = sbr.rel (%p153) target = $region16
    $region15: #{encode_image.14} parent=5 // pred_region
      // Predicated region
      $region17: #{encode_image.14} parent=15 // pred_check
        %p156 = pneg %p43
      $region18: #{encode_image.14} parent=15 // pred_check_branch
        %158 = sbr.rel (%p156) target = $region20
      $region19: #{encode_image.14} parent=15 // pred_region
        %p159 = scmp.lt.s32.totalorder %s16, 1
        %s160 = scalar_select %p159, %s16, 1
        %p161 = scmp.lt.s32.totalorder %s17, 5
        %s162 = scalar_select %p161, %s17, 5
        %s163 = smul.addr %s160, 6
        %s164 = sadd.s32 %s162, %s163
        %s165 = smul.addr %s164, 4
        %s166 = scalar_lea.vmem %s0, %s165
      $region20: #{encode_image.14} parent=15 // pred_fallthru
        _
      // Predicated region
      $region21: #{encode_image.14} parent=15 // pred_check
        %p167 = pneg %p73
      $region22: #{encode_image.14} parent=15 // pred_check_branch
        %169 = sbr.rel (%p167) target = $region24
      $region23: #{encode_image.14} parent=15 // pred_region
        %s170 = sadd.s32 %s17, 2
        %p171 = scmp.lt.s32.totalorder %s16, 1
        %s172 = scalar_select %p171, %s16, 1
        %p173 = scmp.lt.s32.totalorder %s170, 5
        %s174 = scalar_select %p173, %s170, 5
        %s175 = smul.addr %s172, 6
        %s176 = sadd.s32 %s174, %s175
        %s177 = smul.addr %s176, 4
        %s178 = scalar_lea.vmem %s1, %s177
        %s179 = sadd.s32 %s17, 2
      $region24: #{encode_image.14} parent=15 // pred_fallthru
        _
      // Predicated region
      $region25: #{encode_image.14} parent=15 // pred_check
        %p180 = pneg %p103
      $region26: #{encode_image.14} parent=15 // pred_check_branch
        %182 = sbr.rel (%p180) target = $region28
      $region27: #{encode_image.14} parent=15 // pred_region
        %s183 = sadd.s32 %s17, 4
        %p184 = scmp.lt.s32.totalorder %s16, 1
        %s185 = scalar_select %p184, %s16, 1
        %p186 = scmp.lt.s32.totalorder %s183, 5
        %s187 = scalar_select %p186, %s183, 5
        %s188 = smul.addr %s185, 6
        %s189 = sadd.s32 %s187, %s188
        %s190 = smul.addr %s189, 4
        %s191 = scalar_lea.vmem %s2, %s190
        %s192 = sadd.s32 %s17, 4
      $region28: #{encode_image.14} parent=15 // pred_fallthru
        _
    $region16: #{encode_image.14} parent=5 // pred_fallthru
      _
    %p193 = scmp.le.s32.totalorder 1, %s9
    %p194 = scmp.lt.s32.totalorder %s9, 5
    %p195 = pnand %p193, %p194
    %p196 = pneg %p195
    // Predicated region
    $region29: #{encode_image.14} parent=5 // pred_check
      _
    $region30: #{encode_image.14} parent=5 // pred_check_branch
      %198 = sbr.rel (%p195) target = $region32
    $region31: #{encode_image.14} parent=5 // pred_region
      %s199 = ssub.s32 %s9, 1
      %p200 = scmp.lt.s32.totalorder %s18, 1
      %s201 = scalar_select %p200, %s18, 1
      %p202 = scmp.lt.s32.totalorder %s19, 5
      %s203 = scalar_select %p202, %s19, 5
      %s204 = smul.addr %s201, 6
      %s205 = sadd.s32 %s203, %s204
      %s206 = smul.addr %s205, 4
      %s207 = scalar_lea.vmem %s0, %s206
      %p208 = pneg %p49
      %p209 = pneg %p46
      %s210 = sadd.s32 %s19, 2
      %p211 = scmp.lt.s32.totalorder %s18, 1
      %s212 = scalar_select %p211, %s18, 1
      %p213 = scmp.lt.s32.totalorder %s210, 5
      %s214 = scalar_select %p213, %s210, 5
      %s215 = smul.addr %s212, 6
      %s216 = sadd.s32 %s214, %s215
      %s217 = smul.addr %s216, 4
      %s218 = scalar_lea.vmem %s1, %s217
      %p219 = pneg %p79
      %p220 = pneg %p76
      %s221 = sadd.s32 %s19, 4
      %p222 = scmp.lt.s32.totalorder %s18, 1
      %s223 = scalar_select %p222, %s18, 1
      %p224 = scmp.lt.s32.totalorder %s221, 5
      %s225 = scalar_select %p224, %s221, 5
      %s226 = smul.addr %s223, 6
      %s227 = sadd.s32 %s225, %s226
      %s228 = smul.addr %s227, 4
      %s229 = scalar_lea.vmem %s2, %s228
      %p230 = pneg %p109
      %p231 = pneg %p106
      %p232 = pneg %p137
      %p233 = pneg %p134
      %p234 = scmp.lt.s32.totalorder %s18, 1
      %s235 = scalar_select %p234, %s18, 1
      %p236 = scmp.lt.s32.totalorder %s19, 1
      %s237 = scalar_select %p236, %s19, 1
      %s238 = smul.addr %s235, 2
      %s239 = sadd.s32 %s237, %s238
      %s240 = smul.addr %s239, 4
      %s241 = scalar_lea.vmem %s3, %s240
      %p242 = scmp.lt.s32.totalorder %s18, 1
      %s243 = scalar_select %p242, %s18, 1
      %p244 = scmp.lt.s32.totalorder %s19, 5
      %s245 = scalar_select %p244, %s19, 5
      %s246 = smul.addr %s243, 6
      %s247 = sadd.s32 %s245, %s246
      %s248 = smul.addr %s247, 4
      %s249 = scalar_lea.vmem %s0, %s248
      %s250 = sadd.s32 %s19, 2
      %p251 = scmp.lt.s32.totalorder %s18, 1
      %s252 = scalar_select %p251, %s18, 1
      %p253 = scmp.lt.s32.totalorder %s250, 5
      %s254 = scalar_select %p253, %s250, 5
      %s255 = smul.addr %s252, 6
      %s256 = sadd.s32 %s254, %s255
      %s257 = smul.addr %s256, 4
      %s258 = scalar_lea.vmem %s1, %s257
      %s259 = sadd.s32 %s19, 2
      %s260 = sadd.s32 %s19, 4
      %p261 = scmp.lt.s32.totalorder %s18, 1
      %s262 = scalar_select %p261, %s18, 1
      %p263 = scmp.lt.s32.totalorder %s260, 5
      %s264 = scalar_select %p263, %s260, 5
      %s265 = smul.addr %s262, 6
      %s266 = sadd.s32 %s264, %s265
      %s267 = smul.addr %s266, 4
      %s268 = scalar_lea.vmem %s2, %s267
      %s269 = sadd.s32 %s19, 4
      %p270 = scmp.lt.s32.totalorder %s18, 1
      %s271 = scalar_select %p270, %s18, 1
      %p272 = scmp.lt.s32.totalorder %s19, 1
      %s273 = scalar_select %p272, %s19, 1
      %s274 = smul.addr %s271, 2
      %s275 = sadd.s32 %s273, %s274
      %s276 = smul.addr %s275, 4
      %s277 = scalar_lea.vmem %s3, %s276
      %v280 = vld [vmem:[%s249] sm:$0x7]
      %v281 = vmul.bf16 %v280, 1035287989
      %v282 = vld [vmem:[%s258] sm:$0x7]
      %v283 = vld [vmem:[%s268] sm:$0x7]
      %284 = vmatprep.subr.bf16.mxu0 0
      %285 = vmatpush1.bf16.xpose.msra.mxu0 0
      %286 = vmatprep.subr.bf16.mxu0 0
      %287 = vmatpush1.bf16.xpose.msra.mxu0 0
      %288 = vmatprep.subr.bf16.mxu0 0
      %289 = vmatpush1.bf16.xpose.msra.mxu0 0
      %290 = vmatprep.subr.bf16.mxu0 0
      %291 = vmatpush1.bf16.xpose.msra.mxu0 0
      %292 = vmatprep.subr.bf16.mxu0 0
      %293 = vmatpush1.bf16.xpose.msra.mxu0 0
      %294 = vmatprep.subr.bf16.mxu0 0
      %295 = vmatpush1.bf16.xpose.msra.mxu0 0
      %296 = vmatprep.subr.bf16.mxu0 0
      %297 = vmatpush1.bf16.xpose.msra.mxu0 0
      %298 = vmatprep.subr.bf16.mxu0 0
      %299 = vmatpush1.bf16.xpose.msra.mxu0 %v282
      %300 = vmatprep.subr.bf16.mxu0 0
      %301 = vmatpush2.bf16.xpose.msra.mxu0 0
      %302 = vmatprep.subr.bf16.mxu0 0
      %303 = vmatpush2.bf16.xpose.msra.mxu0 0
      %304 = vmatprep.subr.bf16.mxu0 0
      %305 = vmatpush2.bf16.xpose.msra.mxu0 0
      %306 = vmatprep.subr.bf16.mxu0 0
      %307 = vmatpush2.bf16.xpose.msra.mxu0 0
      %308 = vmatprep.subr.bf16.mxu0 0
      %309 = vmatpush2.bf16.xpose.msra.mxu0 0
      %310 = vmatprep.subr.bf16.mxu0 0
      %311 = vmatpush2.bf16.xpose.msra.mxu0 0
      %312 = vmatprep.subr.bf16.mxu0 0
      %313 = vmatpush2.bf16.xpose.msra.mxu0 0
      %314 = vmatprep.subr.bf16.mxu0 0
      %315 = vmatpush2.bf16.xpose.msra.mxu0 0
      %316 = vmatprep.mubr.bf16.mxu0 0
      %317 = vmatmul.mubr.bf16.gmra.mxu0 %v281
      %v318 = vpop.f32.mrf.mxu0
      %v319 = vadd.f32 0.0, %v318
      %v320 = vpop.f32.mrf.mxu0
      %v321 = vpop.f32.mrf.mxu0
      %v322 = vpop.f32.mrf.mxu0
      %323 = vdwg.mxu0
      %vm324 = vcmask 36864
      %v325 = vsel %vm324, %v319, -inf
      %326 = vmax.xlane.f32.xlu0 %v325
      %v327 = vpop.xlane.xlu0 %326
      %v328 = vsub.f32 %v319, %v327
      %v329 = vmul.f32 %v328, 1.442695
      %v330 = vpow.pop %v329
      %v331 = vsel %vm324, %v330, 0.0
      %332 = vadd.xlane.f32.xlu0 %v331
      %v333 = vpop.xlane.xlu0 %332
      %v334 = vrcp.pop %v333
      %v335 = vmul.f32 %v330, %v334
      %v336 = vpack.c.bf16 %v335, %v335
      %vm337 = vcmask 39936
      %v339 = vsel %vm337, %v336, 0
      %vm341 = vcmask 1041408
      %vm342 = vcmask 1042432
      %v343 = vsel %vm341, 4294967295, 65535
      %v344 = vsel %vm342, %v343, 0
      %v346 = vand.u32 %v283, %v344
      %348 = vmatprep.subr.bf16.mxu0 0
      %349 = vmatpush1.bf16.msra.mxu0 0
      %350 = vmatprep.subr.bf16.mxu0 0
      %351 = vmatpush1.bf16.msra.mxu0 0
      %352 = vmatprep.subr.bf16.mxu0 0
      %353 = vmatpush1.bf16.msra.mxu0 0
      %354 = vmatprep.subr.bf16.mxu0 0
      %355 = vmatpush1.bf16.msra.mxu0 0
      %356 = vmatprep.subr.bf16.mxu0 0
      %357 = vmatpush1.bf16.msra.mxu0 0
      %358 = vmatprep.subr.bf16.mxu0 0
      %359 = vmatpush1.bf16.msra.mxu0 0
      %360 = vmatprep.subr.bf16.mxu0 0
      %361 = vmatpush1.bf16.msra.mxu0 0
      %362 = vmatprep.subr.bf16.mxu0 0
      %363 = vmatpush1.bf16.msra.mxu0 %v346
      %364 = vmatprep.subr.bf16.mxu0 0
      %365 = vmatpush2.bf16.msra.mxu0 0
      %366 = vmatprep.subr.bf16.mxu0 0
      %367 = vmatpush2.bf16.msra.mxu0 0
      %368 = vmatprep.subr.bf16.mxu0 0
      %369 = vmatpush2.bf16.msra.mxu0 0
      %370 = vmatprep.subr.bf16.mxu0 0
      %371 = vmatpush2.bf16.msra.mxu0 0
      %372 = vmatprep.subr.bf16.mxu0 0
      %373 = vmatpush2.bf16.msra.mxu0 0
      %374 = vmatprep.subr.bf16.mxu0 0
      %375 = vmatpush2.bf16.msra.mxu0 0
      %376 = vmatprep.subr.bf16.mxu0 0
      %377 = vmatpush2.bf16.msra.mxu0 0
      %378 = vmatprep.subr.bf16.mxu0 0
      %379 = vmatpush2.bf16.msra.mxu0 0
      %380 = vmatprep.mubr.bf16.mxu0 0
      %381 = vmatmul.mubr.bf16.gmra.mxu0 %v339
      %v382 = vpop.f32.mrf.mxu0
      %v383 = vadd.f32 0.0, %v382
      %v384 = vpop.f32.mrf.mxu0
      %v385 = vpop.f32.mrf.mxu0
      %v386 = vpop.f32.mrf.mxu0
      %387 = vdwg.mxu0
      %v388 = vpack.c.bf16 %v383, %v383
      %vm389 = vcmask 1042432
      %vm390 = vsmask.f32 2304
      %vm391 = vmand %vm389, %vm390
      %v392 = vld [vmem:[%s277] sm:$0x7]
      %v393 = vsel %vm391, %v388, %v392
      %394 = vst [vmem:[%s277] sm:$0x7] %v393
      %p395 = scmp.lt.s32.totalorder %s18, 1
      %s396 = scalar_select %p395, %s18, 1
      %p397 = scmp.lt.s32.totalorder %s19, 1
      %s398 = scalar_select %p397, %s19, 1
      %s399 = smul.addr %s396, 2
      %s400 = sadd.s32 %s398, %s399
      %s401 = smul.addr %s400, 4
      %s402 = scalar_lea.vmem %s3, %s401
      // Predicated region
      $region33: #{encode_image.14} parent=31 // pred_check
        %p403 = pneg %p134
      $region34: #{encode_image.14} parent=31 // pred_check_branch
        %405 = sbr.rel (%p403) target = $region36
      $region35: #{encode_image.14} parent=31 // pred_region
        _
      $region36: #{encode_image.14} parent=31 // pred_fallthru
        _
    $region32: #{encode_image.14} parent=5 // pred_fallthru
      _
    %p406 = scmp.le.s32.totalorder 2, %s9
    // Predicated region
    $region37: #{encode_image.14} parent=5 // pred_check
      %p407 = pneg %p406
    $region38: #{encode_image.14} parent=5 // pred_check_branch
      %409 = sbr.rel (%p407) target = $region40
    $region39: #{encode_image.14} parent=5 // pred_region
      %s410 = ssub.s32 %s9, 2
      // Predicated region
      $region41: #{encode_image.14} parent=39 // pred_check
        %p411 = pneg %p140
      $region42: #{encode_image.14} parent=39 // pred_check_branch
        %413 = sbr.rel (%p411) target = $region44
      $region43: #{encode_image.14} parent=39 // pred_region
        %p414 = scmp.lt.s32.totalorder %s20, 1
        %s415 = scalar_select %p414, %s20, 1
        %p416 = scmp.lt.s32.totalorder %s21, 1
        %s417 = scalar_select %p416, %s21, 1
        %s418 = smul.addr %s415, 2
        %s419 = sadd.s32 %s417, %s418
        %s420 = smul.addr %s419, 4
        %s421 = scalar_lea.vmem %s3, %s420
      $region44: #{encode_image.14} parent=39 // pred_fallthru
        _
    $region40: #{encode_image.14} parent=5 // pred_fallthru
      _
  $region6: #{encode_image.14} parent=0 // loop_footer
    %s13 = sadd.s32 1, %s9
  $region7: #{encode_image.14} parent=0 // loop_footer_branch
    %8 = sbr.rel target = $region3
  $region8: #{encode_image.14} parent=0 // loop_exit
    _

// kernel: encode_image.15
$region0: #{encode_image.15}
  #allocation0 [shape = 'u32[]', space=smem, size = 0x4, offset = 0x4, fixed_abs, tag = 'smem constant byte address 0x4 - core index']
  #allocation1 [shape = 'u32[144,128]{1,0:T(1,128)}', space=vmem, size = 0x12000, scoped, tag = 'internal scratch']
  %s0 = inlined_call_operand.vmem [shape: bf16[10,256], index: 0, kind: input, shape index: {}]
  %s1 = inlined_call_operand.hbm [shape: bf16[256,256], index: 1, kind: input, shape index: {}]
  %s2 = inlined_call_operand.vmem [shape: bf16[1,256], index: 2, kind: input, shape index: {}]
  %s3 = inlined_call_operand.vmem [shape: bf16[10,256], index: 3, kind: input, shape index: {}]
  %s4 = inlined_call_operand.vmem [shape: bf16[10,256], index: 4, kind: output, shape index: {}]
  %s5 = sld [smem:[#allocation0]]
  $region30: #{encode_image.15} parent=0
    _
  %s7 = ssub.s32 1, %s5
  %s8 = scalar_select 0, %s7, %s5
  $region1: #{encode_image.15} parent=0
    #allocation2 [shape = 'u8[131072]{0}', space=vmem, size = 0x20000, scoped, tag = 'input window, operand 1, single buffered']
    #allocation3 [shape = 's32[1]{0}', space=sflag, size = 0x4, scoped, tag = 'scoped memory for encode_image.15']
    %9 = vsyncpa [#allocation3], 0
    // Predicated region
    $region2: #{encode_image.15} parent=1 // pred_check
      _
    $region3: #{encode_image.15} parent=1 // pred_check_branch
      %11 = sbr.rel (0) target = $region5
    $region4: #{encode_image.15} parent=1 // pred_region
      _
    $region5: #{encode_image.15} parent=1 // pred_fallthru
      _
    // Predicated region
    $region6: #{encode_image.15} parent=1 // pred_check
      _
    $region7: #{encode_image.15} parent=1 // pred_check_branch
      %13 = sbr.rel (0) target = $region9
    $region8: #{encode_image.15} parent=1 // pred_region
      %s15 = ssub.s32 4096, 4096
      %16 = vsyncadd [#allocation3], %s15
      %s17 = sshll.u32 [#allocation2], 4
      %s18 = int_to_ptr.vmem [resolvable:$true] %s17
      %23 = dma.hbm_to_vmem [thread:$0]  %s1, 4096, %s18, [#allocation3], 128, 128, 8
    $region9: #{encode_image.15} parent=1 // pred_fallthru
      _
    // Predicated region
    $region10: #{encode_image.15} parent=1 // pred_check
      _
    $region11: #{encode_image.15} parent=1 // pred_check_branch
      %25 = sbr.rel (0) target = $region13
    $region12: #{encode_image.15} parent=1 // pred_region
      _
    $region13: #{encode_image.15} parent=1 // pred_fallthru
      _
    // Predicated region
    $region14: #{encode_image.15} parent=1 // pred_check
      _
    $region15: #{encode_image.15} parent=1 // pred_check_branch
      %27 = sbr.rel (0) target = $region17
    $region16: #{encode_image.15} parent=1 // pred_region
      _
    $region17: #{encode_image.15} parent=1 // pred_fallthru
      _
    // Predicated region
    $region18: #{encode_image.15} parent=1 // pred_check
      _
    $region19: #{encode_image.15} parent=1 // pred_check_branch
      %29 = sbr.rel (0) target = $region21
    $region20: #{encode_image.15} parent=1 // pred_region
      %30 = dma.done [#allocation3], 4096
    $region21: #{encode_image.15} parent=1 // pred_fallthru
      _
    %v31 = vld [vmem:[%s0] sm:$0xff]
    %v32 = vld [vmem:[%s0 + $0x8] sm:$0x11]
    %v33 = vld [vmem:[#allocation2] sm:$0xff]
    %v34 = vld [vmem:[#allocation2 + $0x8] sm:$0xff]
    %v35 = vld [vmem:[#allocation2 + $0x10] sm:$0xff]
    %v36 = vld [vmem:[#allocation2 + $0x18] sm:$0xff]
    %v37 = vld [vmem:[#allocation2 + $0x20] sm:$0xff]
    %v38 = vld [vmem:[#allocation2 + $0x28] sm:$0xff]
    %v39 = vld [vmem:[#allocation2 + $0x30] sm:$0xff]
    %v40 = vld [vmem:[#allocation2 + $0x38] sm:$0xff]
    %v41 = vld [vmem:[#allocation2 + $0x40] sm:$0xff]
    %v42 = vld [vmem:[#allocation2 + $0x48] sm:$0xff]
    %v43 = vld [vmem:[#allocation2 + $0x50] sm:$0xff]
    %v44 = vld [vmem:[#allocation2 + $0x58] sm:$0xff]
    %v45 = vld [vmem:[#allocation2 + $0x60] sm:$0xff]
    %v46 = vld [vmem:[#allocation2 + $0x68] sm:$0xff]
    %v47 = vld [vmem:[#allocation2 + $0x70] sm:$0xff]
    %v48 = vld [vmem:[#allocation2 + $0x78] sm:$0xff]
    %v49 = vld [vmem:[#allocation2 + $0x80] sm:$0xff]
    %v50 = vld [vmem:[#allocation2 + $0x88] sm:$0xff]
    %v51 = vld [vmem:[#allocation2 + $0x90] sm:$0xff]
    %v52 = vld [vmem:[#allocation2 + $0x98] sm:$0xff]
    %v53 = vld [vmem:[#allocation2 + $0xa0] sm:$0xff]
    %v54 = vld [vmem:[#allocation2 + $0xa8] sm:$0xff]
    %v55 = vld [vmem:[#allocation2 + $0xb0] sm:$0xff]
    %v56 = vld [vmem:[#allocation2 + $0xb8] sm:$0xff]
    %v57 = vld [vmem:[#allocation2 + $0xc0] sm:$0xff]
    %v58 = vld [vmem:[#allocation2 + $0xc8] sm:$0xff]
    %v59 = vld [vmem:[#allocation2 + $0xd0] sm:$0xff]
    %v60 = vld [vmem:[#allocation2 + $0xd8] sm:$0xff]
    %v61 = vld [vmem:[#allocation2 + $0xe0] sm:$0xff]
    %v62 = vld [vmem:[#allocation2 + $0xe8] sm:$0xff]
    %v63 = vld [vmem:[#allocation2 + $0xf0] sm:$0xff]
    %v64 = vld [vmem:[#allocation2 + $0xf8] sm:$0xff]
    %v65 = vld [vmem:[%s2] sm:$0x3]
    %v66 = vunpack.c.l.bf16 %v65
    %v68 = vlaneseq
    %v69 = vshrl.u32 %v68, 7
    %v70 = vsub.s32 0, %v69
    %v71 = vrot.slane %v66, %v70
    %v72 = vlaneseq
    %v73 = vshrl.u32 %v72, 7
    %v74 = vsub.s32 2, %v73
    %v75 = vrot.slane %v66, %v74
    %v78 = vlaneseq
    %v79 = vshrl.u32 %v78, 7
    %v80 = vsub.s32 0, %v79
    %v81 = vrot.slane %v71, %v80
    %v82 = vlaneseq
    %v83 = vshrl.u32 %v82, 7
    %v84 = vsub.s32 0, %v83
    %v85 = vrot.slane %v75, %v84
    %v88 = vunpack.c.l.b16 %v31
    %v89 = vunpack.c.h.b16 %v31
    %v90 = vunpack.c.l.b16 %v32
    %v91 = vunpack.c.h.b16 %v32
    %v92 = vpack.c.b16 %v90, %v88
    %v93 = vpack.c.b16 %v91, %v89
    %v128 = vunpack.c.l.b16 %v33
    %v129 = vunpack.c.h.b16 %v33
    %v130 = vunpack.c.l.b16 %v34
    %v131 = vunpack.c.h.b16 %v34
    %v132 = vunpack.c.l.b16 %v35
    %v133 = vunpack.c.h.b16 %v35
    %v134 = vunpack.c.l.b16 %v36
    %v135 = vunpack.c.h.b16 %v36
    %v136 = vunpack.c.l.b16 %v37
    %v137 = vunpack.c.h.b16 %v37
    %v138 = vunpack.c.l.b16 %v38
    %v139 = vunpack.c.h.b16 %v38
    %v140 = vunpack.c.l.b16 %v39
    %v141 = vunpack.c.h.b16 %v39
    %v142 = vunpack.c.l.b16 %v40
    %v143 = vunpack.c.h.b16 %v40
    %v144 = vunpack.c.l.b16 %v41
    %v145 = vunpack.c.h.b16 %v41
    %v146 = vunpack.c.l.b16 %v42
    %v147 = vunpack.c.h.b16 %v42
    %v148 = vunpack.c.l.b16 %v43
    %v149 = vunpack.c.h.b16 %v43
    %v150 = vunpack.c.l.b16 %v44
    %v151 = vunpack.c.h.b16 %v44
    %v152 = vunpack.c.l.b16 %v45
    %v153 = vunpack.c.h.b16 %v45
    %v154 = vunpack.c.l.b16 %v46
    %v155 = vunpack.c.h.b16 %v46
    %v156 = vunpack.c.l.b16 %v47
    %v157 = vunpack.c.h.b16 %v47
    %v158 = vunpack.c.l.b16 %v48
    %v159 = vunpack.c.h.b16 %v48
    %v160 = vunpack.c.l.b16 %v49
    %v161 = vunpack.c.h.b16 %v49
    %v162 = vunpack.c.l.b16 %v50
    %v163 = vunpack.c.h.b16 %v50
    %v164 = vunpack.c.l.b16 %v51
    %v165 = vunpack.c.h.b16 %v51
    %v166 = vunpack.c.l.b16 %v52
    %v167 = vunpack.c.h.b16 %v52
    %v168 = vunpack.c.l.b16 %v53
    %v169 = vunpack.c.h.b16 %v53
    %v170 = vunpack.c.l.b16 %v54
    %v171 = vunpack.c.h.b16 %v54
    %v172 = vunpack.c.l.b16 %v55
    %v173 = vunpack.c.h.b16 %v55
    %v174 = vunpack.c.l.b16 %v56
    %v175 = vunpack.c.h.b16 %v56
    %v176 = vunpack.c.l.b16 %v57
    %v177 = vunpack.c.h.b16 %v57
    %v178 = vunpack.c.l.b16 %v58
    %v179 = vunpack.c.h.b16 %v58
    %v180 = vunpack.c.l.b16 %v59
    %v181 = vunpack.c.h.b16 %v59
    %v182 = vunpack.c.l.b16 %v60
    %v183 = vunpack.c.h.b16 %v60
    %v184 = vunpack.c.l.b16 %v61
    %v185 = vunpack.c.h.b16 %v61
    %v186 = vunpack.c.l.b16 %v62
    %v187 = vunpack.c.h.b16 %v62
    %v188 = vunpack.c.l.b16 %v63
    %v189 = vunpack.c.h.b16 %v63
    %v190 = vunpack.c.l.b16 %v64
    %v191 = vunpack.c.h.b16 %v64
    %v192 = vpack.c.b16 %v130, %v128
    %v193 = vpack.c.b16 %v131, %v129
    %v194 = vpack.c.b16 %v134, %v132
    %v195 = vpack.c.b16 %v135, %v133
    %v196 = vpack.c.b16 %v138, %v136
    %v197 = vpack.c.b16 %v139, %v137
    %v198 = vpack.c.b16 %v142, %v140
    %v199 = vpack.c.b16 %v143, %v141
    %v200 = vpack.c.b16 %v146, %v144
    %v201 = vpack.c.b16 %v147, %v145
    %v202 = vpack.c.b16 %v150, %v148
    %v203 = vpack.c.b16 %v151, %v149
    %v204 = vpack.c.b16 %v154, %v152
    %v205 = vpack.c.b16 %v155, %v153
    %v206 = vpack.c.b16 %v158, %v156
    %v207 = vpack.c.b16 %v159, %v157
    %v208 = vpack.c.b16 %v162, %v160
    %v209 = vpack.c.b16 %v163, %v161
    %v210 = vpack.c.b16 %v166, %v164
    %v211 = vpack.c.b16 %v167, %v165
    %v212 = vpack.c.b16 %v170, %v168
    %v213 = vpack.c.b16 %v171, %v169
    %v214 = vpack.c.b16 %v174, %v172
    %v215 = vpack.c.b16 %v175, %v173
    %v216 = vpack.c.b16 %v178, %v176
    %v217 = vpack.c.b16 %v179, %v177
    %v218 = vpack.c.b16 %v182, %v180
    %v219 = vpack.c.b16 %v183, %v181
    %v220 = vpack.c.b16 %v186, %v184
    %v221 = vpack.c.b16 %v187, %v185
    %v222 = vpack.c.b16 %v190, %v188
    %v223 = vpack.c.b16 %v191, %v189
    %256 = vmatprep.subr.bf16.mxu0 %v207
    %257 = vmatpush1.bf16.msra.mxu0 %v206
    %258 = vmatprep.subr.bf16.mxu0 %v205
    %259 = vmatpush1.bf16.msra.mxu0 %v204
    %260 = vmatprep.subr.bf16.mxu0 %v203
    %261 = vmatpush1.bf16.msra.mxu0 %v202
    %262 = vmatprep.subr.bf16.mxu0 %v201
    %263 = vmatpush1.bf16.msra.mxu0 %v200
    %264 = vmatprep.subr.bf16.mxu0 %v199
    %265 = vmatpush1.bf16.msra.mxu0 %v198
    %266 = vmatprep.subr.bf16.mxu0 %v197
    %267 = vmatpush1.bf16.msra.mxu0 %v196
    %268 = vmatprep.subr.bf16.mxu0 %v195
    %269 = vmatpush1.bf16.msra.mxu0 %v194
    %270 = vmatprep.subr.bf16.mxu0 %v193
    %271 = vmatpush1.bf16.msra.mxu0 %v192
    %272 = vmatprep.subr.bf16.mxu0 %v223
    %273 = vmatpush2.bf16.msra.mxu0 %v222
    %274 = vmatprep.subr.bf16.mxu0 %v221
    %275 = vmatpush2.bf16.msra.mxu0 %v220
    %276 = vmatprep.subr.bf16.mxu0 %v219
    %277 = vmatpush2.bf16.msra.mxu0 %v218
    %278 = vmatprep.subr.bf16.mxu0 %v217
    %279 = vmatpush2.bf16.msra.mxu0 %v216
    %280 = vmatprep.subr.bf16.mxu0 %v215
    %281 = vmatpush2.bf16.msra.mxu0 %v214
    %282 = vmatprep.subr.bf16.mxu0 %v213
    %283 = vmatpush2.bf16.msra.mxu0 %v212
    %284 = vmatprep.subr.bf16.mxu0 %v211
    %285 = vmatpush2.bf16.msra.mxu0 %v210
    %286 = vmatprep.subr.bf16.mxu0 %v209
    %287 = vmatpush2.bf16.msra.mxu0 %v208
    %288 = vmatprep.mubr.bf16.mxu0 %v93
    %289 = vmatmul.mubr.bf16.gmra.mxu0 %v92
    %v290 = vpop.f32.mrf.mxu0
    %v291 = vadd.f32 %v81, %v290
    %v292 = vpop.f32.mrf.mxu0
    %v293 = vadd.f32 %v85, %v292
    %v294 = vpop.f32.mrf.mxu0
    %v295 = vadd.f32 %v81, %v294
    %v296 = vpop.f32.mrf.mxu0
    %v297 = vadd.f32 %v85, %v296
    %298 = vdwg.mxu0
    %v299 = vld [vmem:[%s3] sm:$0xff]
    %v300 = vld [vmem:[%s3 + $0x8] sm:$0x11]
    %v301 = vunpack.c.l.bf16 %v299
    %v302 = vunpack.c.h.bf16 %v299
    %v303 = vunpack.c.l.bf16 %v300
    %v304 = vunpack.c.h.bf16 %v300
    %v305 = vadd.f32 %v291, %v301
    %v306 = vadd.f32 %v293, %v302
    %v307 = vadd.f32 %v295, %v303
    %v308 = vadd.f32 %v297, %v304
    %v309 = vpack.c.bf16 %v307, %v305
    %v310 = vpack.c.bf16 %v308, %v306
    %v313 = vunpack.c.l.b16 %v309
    %v314 = vunpack.c.l.b16 %v310
    %v315 = vunpack.c.h.b16 %v309
    %v316 = vunpack.c.h.b16 %v310
    %v317 = vpack.c.b16 %v314, %v313
    %v318 = vpack.c.b16 %v316, %v315
    %321 = vst [vmem:[%s4] sm:$0xff] %v317
    %322 = vst [vmem:[%s4 + $0x8] sm:$0x11] %v318
    // Predicated region
    $region22: #{encode_image.15} parent=1 // pred_check
      _
    $region23: #{encode_image.15} parent=1 // pred_check_branch
      %324 = sbr.rel (0) target = $region25
    $region24: #{encode_image.15} parent=1 // pred_region
      _
    $region25: #{encode_image.15} parent=1 // pred_fallthru
      _
    // Predicated region
    $region26: #{encode_image.15} parent=1 // pred_check
      _
    $region27: #{encode_image.15} parent=1 // pred_check_branch
      %326 = sbr.rel (0) target = $region29
    $region28: #{encode_image.15} parent=1 // pred_region
      _
    $region29: #{encode_image.15} parent=1 // pred_fallthru
      _
    %327 = vsyncpa [#allocation3], 1

// kernel: encode_image.19
$region0: #{encode_image.19}
  #allocation0 [shape = 'u32[]', space=smem, size = 0x4, offset = 0x4, fixed_abs, tag = 'smem constant byte address 0x4 - core index']
  #allocation1 [shape = 'u32[144,128]{1,0:T(1,128)}', space=vmem, size = 0x12000, scoped, tag = 'internal scratch']
  %s0 = inlined_call_operand.vmem [shape: bf16[10,256], index: 0, kind: input, shape index: {}]
  %s1 = inlined_call_operand.vmem [shape: bf16[256,256], index: 1, kind: input, shape index: {}]
  %s2 = inlined_call_operand.vmem [shape: bf16[1,256], index: 2, kind: input, shape index: {}]
  %s3 = inlined_call_operand.vmem [shape: bf16[10,256], index: 3, kind: input, shape index: {}]
  %s4 = inlined_call_operand.vmem [shape: bf16[10,256], index: 4, kind: output, shape index: {}]
  %s5 = sld [smem:[#allocation0]]
  $region26: #{encode_image.19} parent=0
    _
  %s7 = ssub.s32 1, %s5
  %s8 = scalar_select 0, %s7, %s5
  // Predicated region
  $region2: #{encode_image.19} parent=0 // pred_check
    _
  $region3: #{encode_image.19} parent=0 // pred_check_branch
    %10 = sbr.rel (0) target = $region5
  $region4: #{encode_image.19} parent=0 // pred_region
    _
  $region5: #{encode_image.19} parent=0 // pred_fallthru
    _
  // Predicated region
  $region6: #{encode_image.19} parent=0 // pred_check
    _
  $region7: #{encode_image.19} parent=0 // pred_check_branch
    %12 = sbr.rel (0) target = $region9
  $region8: #{encode_image.19} parent=0 // pred_region
    _
  $region9: #{encode_image.19} parent=0 // pred_fallthru
    _
  // Predicated region
  $region10: #{encode_image.19} parent=0 // pred_check
    _
  $region11: #{encode_image.19} parent=0 // pred_check_branch
    %14 = sbr.rel (0) target = $region13
  $region12: #{encode_image.19} parent=0 // pred_region
    _
  $region13: #{encode_image.19} parent=0 // pred_fallthru
    _
  // Predicated region
  $region14: #{encode_image.19} parent=0 // pred_check
    _
  $region15: #{encode_image.19} parent=0 // pred_check_branch
    %16 = sbr.rel (0) target = $region17
  $region16: #{encode_image.19} parent=0 // pred_region
    _
  $region17: #{encode_image.19} parent=0 // pred_fallthru
    _
  %v17 = vld [vmem:[%s0] sm:$0xff]
  %v18 = vld [vmem:[%s0 + $0x8] sm:$0x11]
  %v19 = vld [vmem:[%s1] sm:$0xff]
  %v20 = vld [vmem:[%s1 + $0x8] sm:$0xff]
  %v21 = vld [vmem:[%s1 + $0x10] sm:$0xff]
  %v22 = vld [vmem:[%s1 + $0x18] sm:$0xff]
  %v23 = vld [vmem:[%s1 + $0x20] sm:$0xff]
  %v24 = vld [vmem:[%s1 + $0x28] sm:$0xff]
  %v25 = vld [vmem:[%s1 + $0x30] sm:$0xff]
  %v26 = vld [vmem:[%s1 + $0x38] sm:$0xff]
  %v27 = vld [vmem:[%s1 + $0x40] sm:$0xff]
  %v28 = vld [vmem:[%s1 + $0x48] sm:$0xff]
  %v29 = vld [vmem:[%s1 + $0x50] sm:$0xff]
  %v30 = vld [vmem:[%s1 + $0x58] sm:$0xff]
  %v31 = vld [vmem:[%s1 + $0x60] sm:$0xff]
  %v32 = vld [vmem:[%s1 + $0x68] sm:$0xff]
  %v33 = vld [vmem:[%s1 + $0x70] sm:$0xff]
  %v34 = vld [vmem:[%s1 + $0x78] sm:$0xff]
  %v35 = vld [vmem:[%s1 + $0x80] sm:$0xff]
  %v36 = vld [vmem:[%s1 + $0x88] sm:$0xff]
  %v37 = vld [vmem:[%s1 + $0x90] sm:$0xff]
  %v38 = vld [vmem:[%s1 + $0x98] sm:$0xff]
  %v39 = vld [vmem:[%s1 + $0xa0] sm:$0xff]
  %v40 = vld [vmem:[%s1 + $0xa8] sm:$0xff]
  %v41 = vld [vmem:[%s1 + $0xb0] sm:$0xff]
  %v42 = vld [vmem:[%s1 + $0xb8] sm:$0xff]
  %v43 = vld [vmem:[%s1 + $0xc0] sm:$0xff]
  %v44 = vld [vmem:[%s1 + $0xc8] sm:$0xff]
  %v45 = vld [vmem:[%s1 + $0xd0] sm:$0xff]
  %v46 = vld [vmem:[%s1 + $0xd8] sm:$0xff]
  %v47 = vld [vmem:[%s1 + $0xe0] sm:$0xff]
  %v48 = vld [vmem:[%s1 + $0xe8] sm:$0xff]
  %v49 = vld [vmem:[%s1 + $0xf0] sm:$0xff]
  %v50 = vld [vmem:[%s1 + $0xf8] sm:$0xff]
  %v51 = vld [vmem:[%s2] sm:$0x3]
  %v52 = vunpack.c.l.bf16 %v51
  %v54 = vlaneseq
  %v55 = vshrl.u32 %v54, 7
  %v56 = vsub.s32 0, %v55
  %v57 = vrot.slane %v52, %v56
  %v58 = vlaneseq
  %v59 = vshrl.u32 %v58, 7
  %v60 = vsub.s32 2, %v59
  %v61 = vrot.slane %v52, %v60
  %v64 = vlaneseq
  %v65 = vshrl.u32 %v64, 7
  %v66 = vsub.s32 0, %v65
  %v67 = vrot.slane %v57, %v66
  %v68 = vlaneseq
  %v69 = vshrl.u32 %v68, 7
  %v70 = vsub.s32 0, %v69
  %v71 = vrot.slane %v61, %v70
  %v74 = vunpack.c.l.b16 %v17
  %v75 = vunpack.c.h.b16 %v17
  %v76 = vunpack.c.l.b16 %v18
  %v77 = vunpack.c.h.b16 %v18
  %v78 = vpack.c.b16 %v76, %v74
  %v79 = vpack.c.b16 %v77, %v75
  %v114 = vunpack.c.l.b16 %v19
  %v115 = vunpack.c.h.b16 %v19
  %v116 = vunpack.c.l.b16 %v20
  %v117 = vunpack.c.h.b16 %v20
  %v118 = vunpack.c.l.b16 %v21
  %v119 = vunpack.c.h.b16 %v21
  %v120 = vunpack.c.l.b16 %v22
  %v121 = vunpack.c.h.b16 %v22
  %v122 = vunpack.c.l.b16 %v23
  %v123 = vunpack.c.h.b16 %v23
  %v124 = vunpack.c.l.b16 %v24
  %v125 = vunpack.c.h.b16 %v24
  %v126 = vunpack.c.l.b16 %v25
  %v127 = vunpack.c.h.b16 %v25
  %v128 = vunpack.c.l.b16 %v26
  %v129 = vunpack.c.h.b16 %v26
  %v130 = vunpack.c.l.b16 %v27
  %v131 = vunpack.c.h.b16 %v27
  %v132 = vunpack.c.l.b16 %v28
  %v133 = vunpack.c.h.b16 %v28
  %v134 = vunpack.c.l.b16 %v29
  %v135 = vunpack.c.h.b16 %v29
  %v136 = vunpack.c.l.b16 %v30
  %v137 = vunpack.c.h.b16 %v30
  %v138 = vunpack.c.l.b16 %v31
  %v139 = vunpack.c.h.b16 %v31
  %v140 = vunpack.c.l.b16 %v32
  %v141 = vunpack.c.h.b16 %v32
  %v142 = vunpack.c.l.b16 %v33
  %v143 = vunpack.c.h.b16 %v33
  %v144 = vunpack.c.l.b16 %v34
  %v145 = vunpack.c.h.b16 %v34
  %v146 = vunpack.c.l.b16 %v35
  %v147 = vunpack.c.h.b16 %v35
  %v148 = vunpack.c.l.b16 %v36
  %v149 = vunpack.c.h.b16 %v36
  %v150 = vunpack.c.l.b16 %v37
  %v151 = vunpack.c.h.b16 %v37
  %v152 = vunpack.c.l.b16 %v38
  %v153 = vunpack.c.h.b16 %v38
  %v154 = vunpack.c.l.b16 %v39
  %v155 = vunpack.c.h.b16 %v39
  %v156 = vunpack.c.l.b16 %v40
  %v157 = vunpack.c.h.b16 %v40
  %v158 = vunpack.c.l.b16 %v41
  %v159 = vunpack.c.h.b16 %v41
  %v160 = vunpack.c.l.b16 %v42
  %v161 = vunpack.c.h.b16 %v42
  %v162 = vunpack.c.l.b16 %v43
  %v163 = vunpack.c.h.b16 %v43
  %v164 = vunpack.c.l.b16 %v44
  %v165 = vunpack.c.h.b16 %v44
  %v166 = vunpack.c.l.b16 %v45
  %v167 = vunpack.c.h.b16 %v45
  %v168 = vunpack.c.l.b16 %v46
  %v169 = vunpack.c.h.b16 %v46
  %v170 = vunpack.c.l.b16 %v47
  %v171 = vunpack.c.h.b16 %v47
  %v172 = vunpack.c.l.b16 %v48
  %v173 = vunpack.c.h.b16 %v48
  %v174 = vunpack.c.l.b16 %v49
  %v175 = vunpack.c.h.b16 %v49
  %v176 = vunpack.c.l.b16 %v50
  %v177 = vunpack.c.h.b16 %v50
  %v178 = vpack.c.b16 %v116, %v114
  %v179 = vpack.c.b16 %v117, %v115
  %v180 = vpack.c.b16 %v120, %v118
  %v181 = vpack.c.b16 %v121, %v119
  %v182 = vpack.c.b16 %v124, %v122
  %v183 = vpack.c.b16 %v125, %v123
  %v184 = vpack.c.b16 %v128, %v126
  %v185 = vpack.c.b16 %v129, %v127
  %v186 = vpack.c.b16 %v132, %v130
  %v187 = vpack.c.b16 %v133, %v131
  %v188 = vpack.c.b16 %v136, %v134
  %v189 = vpack.c.b16 %v137, %v135
  %v190 = vpack.c.b16 %v140, %v138
  %v191 = vpack.c.b16 %v141, %v139
  %v192 = vpack.c.b16 %v144, %v142
  %v193 = vpack.c.b16 %v145, %v143
  %v194 = vpack.c.b16 %v148, %v146
  %v195 = vpack.c.b16 %v149, %v147
  %v196 = vpack.c.b16 %v152, %v150
  %v197 = vpack.c.b16 %v153, %v151
  %v198 = vpack.c.b16 %v156, %v154
  %v199 = vpack.c.b16 %v157, %v155
  %v200 = vpack.c.b16 %v160, %v158
  %v201 = vpack.c.b16 %v161, %v159
  %v202 = vpack.c.b16 %v164, %v162
  %v203 = vpack.c.b16 %v165, %v163
  %v204 = vpack.c.b16 %v168, %v166
  %v205 = vpack.c.b16 %v169, %v167
  %v206 = vpack.c.b16 %v172, %v170
  %v207 = vpack.c.b16 %v173, %v171
  %v208 = vpack.c.b16 %v176, %v174
  %v209 = vpack.c.b16 %v177, %v175
  %242 = vmatprep.subr.bf16.mxu0 %v193
  %243 = vmatpush1.bf16.msra.mxu0 %v192
  %244 = vmatprep.subr.bf16.mxu0 %v191
  %245 = vmatpush1.bf16.msra.mxu0 %v190
  %246 = vmatprep.subr.bf16.mxu0 %v189
  %247 = vmatpush1.bf16.msra.mxu0 %v188
  %248 = vmatprep.subr.bf16.mxu0 %v187
  %249 = vmatpush1.bf16.msra.mxu0 %v186
  %250 = vmatprep.subr.bf16.mxu0 %v185
  %251 = vmatpush1.bf16.msra.mxu0 %v184
  %252 = vmatprep.subr.bf16.mxu0 %v183
  %253 = vmatpush1.bf16.msra.mxu0 %v182
  %254 = vmatprep.subr.bf16.mxu0 %v181
  %255 = vmatpush1.bf16.msra.mxu0 %v180
  %256 = vmatprep.subr.bf16.mxu0 %v179
  %257 = vmatpush1.bf16.msra.mxu0 %v178
  %258 = vmatprep.subr.bf16.mxu0 %v209
  %259 = vmatpush2.bf16.msra.mxu0 %v208
  %260 = vmatprep.subr.bf16.mxu0 %v207
  %261 = vmatpush2.bf16.msra.mxu0 %v206
  %262 = vmatprep.subr.bf16.mxu0 %v205
  %263 = vmatpush2.bf16.msra.mxu0 %v204
  %264 = vmatprep.subr.bf16.mxu0 %v203
  %265 = vmatpush2.bf16.msra.mxu0 %v202
  %266 = vmatprep.subr.bf16.mxu0 %v201
  %267 = vmatpush2.bf16.msra.mxu0 %v200
  %268 = vmatprep.subr.bf16.mxu0 %v199
  %269 = vmatpush2.bf16.msra.mxu0 %v198
  %270 = vmatprep.subr.bf16.mxu0 %v197
  %271 = vmatpush2.bf16.msra.mxu0 %v196
  %272 = vmatprep.subr.bf16.mxu0 %v195
  %273 = vmatpush2.bf16.msra.mxu0 %v194
  %274 = vmatprep.mubr.bf16.mxu0 %v79
  %275 = vmatmul.mubr.bf16.gmra.mxu0 %v78
  %v276 = vpop.f32.mrf.mxu0
  %v277 = vadd.f32 %v67, %v276
  %v278 = vpop.f32.mrf.mxu0
  %v279 = vadd.f32 %v71, %v278
  %v280 = vpop.f32.mrf.mxu0
  %v281 = vadd.f32 %v67, %v280
  %v282 = vpop.f32.mrf.mxu0
  %v283 = vadd.f32 %v71, %v282
  %284 = vdwg.mxu0
  %v285 = vld [vmem:[%s3] sm:$0xff]
  %v286 = vld [vmem:[%s3 + $0x8] sm:$0x11]
  %v287 = vunpack.c.l.bf16 %v285
  %v288 = vunpack.c.h.bf16 %v285
  %v289 = vunpack.c.l.bf16 %v286
  %v290 = vunpack.c.h.bf16 %v286
  %v291 = vadd.f32 %v277, %v287
  %v292 = vadd.f32 %v279, %v288
  %v293 = vadd.f32 %v281, %v289
  %v294 = vadd.f32 %v283, %v290
  %v295 = vpack.c.bf16 %v293, %v291
  %v296 = vpack.c.bf16 %v294, %v292
  %v299 = vunpack.c.l.b16 %v295
  %v300 = vunpack.c.l.b16 %v296
  %v301 = vunpack.c.h.b16 %v295
  %v302 = vunpack.c.h.b16 %v296
  %v303 = vpack.c.b16 %v300, %v299
  %v304 = vpack.c.b16 %v302, %v301
  %307 = vst [vmem:[%s4] sm:$0xff] %v303
  %308 = vst [vmem:[%s4 + $0x8] sm:$0x11] %v304
  // Predicated region
  $region18: #{encode_image.19} parent=0 // pred_check
    _
  $region19: #{encode_image.19} parent=0 // pred_check_branch
    %310 = sbr.rel (0) target = $region21
  $region20: #{encode_image.19} parent=0 // pred_region
    _
  $region21: #{encode_image.19} parent=0 // pred_fallthru
    _
  // Predicated region
  $region22: #{encode_image.19} parent=0 // pred_check
    _
  $region23: #{encode_image.19} parent=0 // pred_check_branch
    %312 = sbr.rel (0) target = $region25
  $region24: #{encode_image.19} parent=0 // pred_region
    _
  $region25: #{encode_image.19} parent=0 // pred_fallthru
    _

// kernel: encode_image.16
$region0: #{encode_image.16}
  #allocation0 [shape = 'u32[]', space=smem, size = 0x4, offset = 0x4, fixed_abs, tag = 'smem constant byte address 0x4 - core index']
  #allocation1 [shape = 'u32[144,128]{1,0:T(1,128)}', space=vmem, size = 0x12000, scoped, tag = 'internal scratch']
  #allocation2 [shape = 'bf16[10,256]{1,0:T(8,128)(2,1)}', space=vmem, size = 0x2000, scoped, tag = 'scratch operand']
  #allocation3 [shape = 'f32[10,256]{1,0:T(8,128)}', space=vmem, size = 0x4000, scoped, tag = 'scratch operand']
  %s0 = inlined_call_operand.vmem [shape: bf16[10,256], index: 0, kind: input, shape index: {}]
  %s1 = inlined_call_operand.vmem [shape: f32[1,256], index: 1, kind: input, shape index: {}]
  %s2 = inlined_call_operand.vmem [shape: f32[1,256], index: 2, kind: input, shape index: {}]
  %s3 = inlined_call_operand.vmem [shape: bf16[256,1024], index: 3, kind: input, shape index: {}]
  %s4 = inlined_call_operand.vmem [shape: bf16[1,1024], index: 4, kind: input, shape index: {}]
  %s5 = inlined_call_operand.vmem [shape: bf16[1024,256], index: 5, kind: input, shape index: {}]
  %s6 = inlined_call_operand.vmem [shape: bf16[1,256], index: 6, kind: input, shape index: {}]
  %s7 = inlined_call_operand.vmem [shape: bf16[10,256], index: 7, kind: output, shape index: {}]
  %s8 = sld [smem:[#allocation0]]
  $region92: #{encode_image.16} parent=0
    _
  %s10 = ssub.s32 1, %s8
  %s11 = scalar_select 0, %s10, %s8
  $region1: #{encode_image.16} parent=0
    #allocation4 [shape = 'u8[524288]{0}', space=vmem, size = 0x80000, scoped, tag = 'input window, operand 3']
    loop: start=0, step=1, limit=4
    $region2: #{encode_image.16} parent=1 // loop_pre_header
      _
    $region3: #{encode_image.16} parent=1 // loop_header
      %s13 = sphi 0, %s17
      %p14 = scmp.ge.s32.totalorder %s13, 4
      %s20 = sphi 0, %s32
      %s21 = sphi 0, %s28
      %s22 = sphi 0, %s20
      %s23 = sphi 0, %s21
      %s24 = sphi 0, %s22
      %s25 = sphi 0, %s23
      %s35 = sphi 0, %s37
      %s38 = sphi 0, %s35
      %s39 = sphi 0, %s38
      %s55 = sphi 0, %s39
      %s59 = sphi 0, %s59
      %s61 = sphi 0, %s59
      %s62 = sphi 0, %s61
      %s76 = sphi 0, %s62
      %s80 = sphi 0, %s80
      %s82 = sphi 0, %s80
      %s83 = sphi 0, %s82
      %s97 = sphi 0, %s83
      %s103 = sphi 0, %s105
      %s106 = sphi 0, %s103
      %s107 = sphi 0, %s106
      %s123 = sphi 0, %s107
      %s129 = sphi 0, %s131
      %s132 = sphi 0, %s129
      %s133 = sphi 0, %s132
      %s149 = sphi 0, %s133
      %s155 = sphi 0, %s157
      %s158 = sphi 0, %s155
      %s159 = sphi 0, %s158
      %s175 = sphi 0, %s159
      %s179 = sphi 0, %s179
      %s181 = sphi 0, %s179
      %s182 = sphi 0, %s181
      %s196 = sphi 0, %s182
      %s202 = sphi 0, %s204
      %s205 = sphi 0, %s202
      %s206 = sphi 0, %s205
      %s222 = sphi 0, %s206
    $region4: #{encode_image.16} parent=1 // loop_header_branch
      %16 = sbr.rel (%p14) target = $region8
    $region5: #{encode_image.16} parent=1 // loop_body
      %s18 = ssub.s32 %s13, 1
      %s19 = ssub.s32 %s13, 2
      %s26 = sadd.s32 1, %s21
      %p27 = scmp.ge.s32.totalorder %s26, 2
      %s28 = scalar_select %p27, 0, %s26
      %s29 = sadd.s32 1, %s20
      %s30 = scalar_select %p27, %s29, %s20
      %p31 = scmp.ge.s32.totalorder %s30, 1
      %s32 = scalar_select %p31, 0, %s30
      %s33 = ssub.s32 %s20, %s32
      %p34 = scmp.eq.s32.totalorder %s33, 0
      %s36 = sadd.s32 %s35, 1
      %s37 = scalar_select %p34, %s35, %s36
      %p40 = pneg %p34
      %p41 = scmp.eq.s32.totalorder %s13, 1
      %p42 = por %p40, %p41
      %p43 = scmp.ne.s32.totalorder %s35, %s38
      %p44 = scmp.eq.s32.totalorder %s13, 0
      %p45 = por %p43, %p44
      %p46 = scmp.ne.s32.totalorder %s35, %s38
      %p47 = scmp.eq.s32.totalorder %s18, 1
      %p48 = por %p46, %p47
      %p49 = scmp.ne.s32.totalorder %s38, %s39
      %p50 = scmp.eq.s32.totalorder %s18, 0
      %p51 = por %p49, %p50
      %p52 = scmp.ne.s32.totalorder %s38, %s39
      %p53 = scmp.eq.s32.totalorder %s19, 1
      %p54 = por %p52, %p53
      %p56 = scmp.ne.s32.totalorder %s39, %s55
      %p57 = scmp.eq.s32.totalorder %s19, 0
      %p58 = por %p56, %p57
      %s60 = sadd.s32 %s59, 1
      %p63 = scmp.eq.s32.totalorder %s13, 1
      %p64 = scmp.ne.s32.totalorder %s59, %s61
      %p65 = scmp.eq.s32.totalorder %s13, 0
      %p66 = por %p64, %p65
      %p67 = scmp.ne.s32.totalorder %s59, %s61
      %p68 = scmp.eq.s32.totalorder %s18, 1
      %p69 = por %p67, %p68
      %p70 = scmp.ne.s32.totalorder %s61, %s62
      %p71 = scmp.eq.s32.totalorder %s18, 0
      %p72 = por %p70, %p71
      %p73 = scmp.ne.s32.totalorder %s61, %s62
      %p74 = scmp.eq.s32.totalorder %s19, 1
      %p75 = por %p73, %p74
      %p77 = scmp.ne.s32.totalorder %s62, %s76
      %p78 = scmp.eq.s32.totalorder %s19, 0
      %p79 = por %p77, %p78
      %s81 = sadd.s32 %s80, 1
      %p84 = scmp.eq.s32.totalorder %s13, 1
      %p85 = scmp.ne.s32.totalorder %s80, %s82
      %p86 = scmp.eq.s32.totalorder %s13, 0
      %p87 = por %p85, %p86
      %p88 = scmp.ne.s32.totalorder %s80, %s82
      %p89 = scmp.eq.s32.totalorder %s18, 1
      %p90 = por %p88, %p89
      %p91 = scmp.ne.s32.totalorder %s82, %s83
      %p92 = scmp.eq.s32.totalorder %s18, 0
      %p93 = por %p91, %p92
      %p94 = scmp.ne.s32.totalorder %s82, %s83
      %p95 = scmp.eq.s32.totalorder %s19, 1
      %p96 = por %p94, %p95
      %p98 = scmp.ne.s32.totalorder %s83, %s97
      %p99 = scmp.eq.s32.totalorder %s19, 0
      %p100 = por %p98, %p99
      %s101 = ssub.s32 %s21, %s28
      %p102 = scmp.eq.s32.totalorder %s101, 0
      %s104 = sadd.s32 %s103, 1
      %s105 = scalar_select %p102, %s103, %s104
      %p108 = pneg %p102
      %p109 = scmp.eq.s32.totalorder %s13, 1
      %p110 = por %p108, %p109
      %p111 = scmp.ne.s32.totalorder %s103, %s106
      %p112 = scmp.eq.s32.totalorder %s13, 0
      %p113 = por %p111, %p112
      %p114 = scmp.ne.s32.totalorder %s103, %s106
      %p115 = scmp.eq.s32.totalorder %s18, 1
      %p116 = por %p114, %p115
      %p117 = scmp.ne.s32.totalorder %s106, %s107
      %p118 = scmp.eq.s32.totalorder %s18, 0
      %p119 = por %p117, %p118
      %p120 = scmp.ne.s32.totalorder %s106, %s107
      %p121 = scmp.eq.s32.totalorder %s19, 1
      %p122 = por %p120, %p121
      %p124 = scmp.ne.s32.totalorder %s107, %s123
      %p125 = scmp.eq.s32.totalorder %s19, 0
      %p126 = por %p124, %p125
      %s127 = ssub.s32 %s21, %s28
      %p128 = scmp.eq.s32.totalorder %s127, 0
      %s130 = sadd.s32 %s129, 1
      %s131 = scalar_select %p128, %s129, %s130
      %p134 = pneg %p128
      %p135 = scmp.eq.s32.totalorder %s13, 1
      %p136 = por %p134, %p135
      %p137 = scmp.ne.s32.totalorder %s129, %s132
      %p138 = scmp.eq.s32.totalorder %s13, 0
      %p139 = por %p137, %p138
      %p140 = scmp.ne.s32.totalorder %s129, %s132
      %p141 = scmp.eq.s32.totalorder %s18, 1
      %p142 = por %p140, %p141
      %p143 = scmp.ne.s32.totalorder %s132, %s133
      %p144 = scmp.eq.s32.totalorder %s18, 0
      %p145 = por %p143, %p144
      %p146 = scmp.ne.s32.totalorder %s132, %s133
      %p147 = scmp.eq.s32.totalorder %s19, 1
      %p148 = por %p146, %p147
      %p150 = scmp.ne.s32.totalorder %s133, %s149
      %p151 = scmp.eq.s32.totalorder %s19, 0
      %p152 = por %p150, %p151
      %s153 = ssub.s32 %s21, %s28
      %p154 = scmp.eq.s32.totalorder %s153, 0
      %s156 = sadd.s32 %s155, 1
      %s157 = scalar_select %p154, %s155, %s156
      %p160 = pneg %p154
      %p161 = scmp.eq.s32.totalorder %s13, 1
      %p162 = por %p160, %p161
      %p163 = scmp.ne.s32.totalorder %s155, %s158
      %p164 = scmp.eq.s32.totalorder %s13, 0
      %p165 = por %p163, %p164
      %p166 = scmp.ne.s32.totalorder %s155, %s158
      %p167 = scmp.eq.s32.totalorder %s18, 1
      %p168 = por %p166, %p167
      %p169 = scmp.ne.s32.totalorder %s158, %s159
      %p170 = scmp.eq.s32.totalorder %s18, 0
      %p171 = por %p169, %p170
      %p172 = scmp.ne.s32.totalorder %s158, %s159
      %p173 = scmp.eq.s32.totalorder %s19, 1
      %p174 = por %p172, %p173
      %p176 = scmp.ne.s32.totalorder %s159, %s175
      %p177 = scmp.eq.s32.totalorder %s19, 0
      %p178 = por %p176, %p177
      %s180 = sadd.s32 %s179, 1
      %p183 = scmp.eq.s32.totalorder %s13, 1
      %p184 = scmp.ne.s32.totalorder %s179, %s181
      %p185 = scmp.eq.s32.totalorder %s13, 0
      %p186 = por %p184, %p185
      %p187 = scmp.ne.s32.totalorder %s179, %s181
      %p188 = scmp.eq.s32.totalorder %s18, 1
      %p189 = por %p187, %p188
      %p190 = scmp.ne.s32.totalorder %s181, %s182
      %p191 = scmp.eq.s32.totalorder %s18, 0
      %p192 = por %p190, %p191
      %p193 = scmp.ne.s32.totalorder %s181, %s182
      %p194 = scmp.eq.s32.totalorder %s19, 1
      %p195 = por %p193, %p194
      %p197 = scmp.ne.s32.totalorder %s182, %s196
      %p198 = scmp.eq.s32.totalorder %s19, 0
      %p199 = por %p197, %p198
      %s200 = ssub.s32 %s20, %s32
      %p201 = scmp.eq.s32.totalorder %s200, 0
      %s203 = sadd.s32 %s202, 1
      %s204 = scalar_select %p201, %s202, %s203
      %p207 = pneg %p201
      %p208 = scmp.eq.s32.totalorder %s13, 1
      %p209 = por %p207, %p208
      %p210 = scmp.ne.s32.totalorder %s202, %s205
      %p211 = scmp.eq.s32.totalorder %s13, 0
      %p212 = por %p210, %p211
      %p213 = scmp.ne.s32.totalorder %s202, %s205
      %p214 = scmp.eq.s32.totalorder %s18, 1
      %p215 = por %p213, %p214
      %p216 = scmp.ne.s32.totalorder %s205, %s206
      %p217 = scmp.eq.s32.totalorder %s18, 0
      %p218 = por %p216, %p217
      %p219 = scmp.ne.s32.totalorder %s205, %s206
      %p220 = scmp.eq.s32.totalorder %s19, 1
      %p221 = por %p219, %p220
      %p223 = scmp.ne.s32.totalorder %s206, %s222
      %p224 = scmp.eq.s32.totalorder %s19, 0
      %p225 = por %p223, %p224
      %p226 = scmp.le.s32.totalorder 1, %s13
      %p227 = scmp.lt.s32.totalorder %s13, 3
      %p228 = pnand %p226, %p227
      %p229 = pneg %p228
      // Predicated region
      $region9: #{encode_image.16} parent=5 // pred_check
        _
      $region10: #{encode_image.16} parent=5 // pred_check_branch
        %231 = sbr.rel (%p228) target = $region12
      $region11: #{encode_image.16} parent=5 // pred_region
        %s232 = ssub.s32 %s13, 1
        // Predicated region
        $region13: #{encode_image.16} parent=11 // pred_check
          %p233 = pneg %p51
        $region14: #{encode_image.16} parent=11 // pred_check_branch
          %235 = sbr.rel (%p233) target = $region16
        $region15: #{encode_image.16} parent=11 // pred_region
          %s236 = smul.u32 2, %s22
          %p237 = scmp.lt.s32.totalorder %s236, 1
          %s238 = scalar_select %p237, %s236, 1
          %s239 = smul.addr %s238, 2
          %s240 = smul.addr %s239, 4
          %s241 = scalar_lea.vmem %s0, %s240
          %s242 = smul.u32 2, %s22
        $region16: #{encode_image.16} parent=11 // pred_fallthru
          _
        // Predicated region
        $region17: #{encode_image.16} parent=11 // pred_check
          %p243 = pneg %p72
        $region18: #{encode_image.16} parent=11 // pred_check_branch
          %245 = sbr.rel (%p243) target = $region20
        $region19: #{encode_image.16} parent=11 // pred_region
          _
        $region20: #{encode_image.16} parent=11 // pred_fallthru
          _
        // Predicated region
        $region21: #{encode_image.16} parent=11 // pred_check
          %p246 = pneg %p93
        $region22: #{encode_image.16} parent=11 // pred_check_branch
          %248 = sbr.rel (%p246) target = $region24
        $region23: #{encode_image.16} parent=11 // pred_region
          _
        $region24: #{encode_image.16} parent=11 // pred_fallthru
          _
        // Predicated region
        $region25: #{encode_image.16} parent=11 // pred_check
          %p249 = pneg %p192
        $region26: #{encode_image.16} parent=11 // pred_check_branch
          %251 = sbr.rel (%p249) target = $region28
        $region27: #{encode_image.16} parent=11 // pred_region
          _
        $region28: #{encode_image.16} parent=11 // pred_fallthru
          _
      $region12: #{encode_image.16} parent=5 // pred_fallthru
        _
      %p252 = scmp.lt.s32.totalorder %s13, 2
      // Predicated region
      $region29: #{encode_image.16} parent=5 // pred_check
        %p253 = pneg %p252
      $region30: #{encode_image.16} parent=5 // pred_check_branch
        %255 = sbr.rel (%p253) target = $region32
      $region31: #{encode_image.16} parent=5 // pred_region
        // Predicated region
        $region33: #{encode_image.16} parent=31 // pred_check
          %p256 = pneg %p113
        $region34: #{encode_image.16} parent=31 // pred_check_branch
          %258 = sbr.rel (%p256) target = $region36
        $region35: #{encode_image.16} parent=31 // pred_region
          %s259 = sand.u32 %s103, 1
          %s260 = sand.u32 %s103, 1
          %s261 = smul.addr %s260, 512
          %s262 = scalar_lea.vmem [#allocation4], %s261
          %s263 = smul.u32 4, %s21
          %s264 = smul.addr %s263, 4
          %s265 = scalar_lea.vmem %s3, %s264
          // Predicated region
          $region37: #{encode_image.16} parent=35 // pred_check
            _
          $region38: #{encode_image.16} parent=35 // pred_check_branch
            %267 = sbr.rel (0) target = $region40
          $region39: #{encode_image.16} parent=35 // pred_region
            // Predicated region
            $region41: #{encode_image.16} parent=39 // pred_check
              _
            $region42: #{encode_image.16} parent=39 // pred_check_branch
              %269 = sbr.rel (0) target = $region44
            $region43: #{encode_image.16} parent=39 // pred_region
              loop: start=0, step=1, limit=1
              $region45: #{encode_image.16} parent=43 // loop_pre_header
                _
              $region46: #{encode_image.16} parent=43 // loop_header
                %s271 = sphi 0, %s275
                %p272 = scmp.ge.s32.totalorder %s271, 1
                %s276 = sphi %s265, %s265
                %s277 = sphi %s262, %s262
              $region47: #{encode_image.16} parent=43 // loop_header_branch
                %274 = sbr.rel (%p272) target = $region51
              $region48: #{encode_image.16} parent=43 // loop_body
                %v278 = vld [vmem:[%s276] sm:$0xff]
                %279 = vst [vmem:[%s277] sm:$0xff] %v278
                %v280 = vld [vmem:[%s276 + $0x8] sm:$0xff]
                %281 = vst [vmem:[%s277 + $0x8] sm:$0xff] %v280
                %v282 = vld [vmem:[%s276 + $0x20] sm:$0xff]
                %283 = vst [vmem:[%s277 + $0x10] sm:$0xff] %v282
                %v284 = vld [vmem:[%s276 + $0x28] sm:$0xff]
                %285 = vst [vmem:[%s277 + $0x18] sm:$0xff] %v284
                %v286 = vld [vmem:[%s276 + $0x40] sm:$0xff]
                %287 = vst [vmem:[%s277 + $0x20] sm:$0xff] %v286
                %v288 = vld [vmem:[%s276 + $0x48] sm:$0xff]
                %289 = vst [vmem:[%s277 + $0x28] sm:$0xff] %v288
                %v290 = vld [vmem:[%s276 + $0x60] sm:$0xff]
                %291 = vst [vmem:[%s277 + $0x30] sm:$0xff] %v290
                %v292 = vld [vmem:[%s276 + $0x68] sm:$0xff]
                %293 = vst [vmem:[%s277 + $0x38] sm:$0xff] %v292
                %v294 = vld [vmem:[%s276 + $0x80] sm:$0xff]
                %295 = vst [vmem:[%s277 + $0x40] sm:$0xff] %v294
                %v296 = vld [vmem:[%s276 + $0x88] sm:$0xff]
                %297 = vst [vmem:[%s277 + $0x48] sm:$0xff] %v296
                %v298 = vld [vmem:[%s276 + $0xa0] sm:$0xff]
                %299 = vst [vmem:[%s277 + $0x50] sm:$0xff] %v298
                %v300 = vld [vmem:[%s276 + $0xa8] sm:$0xff]
                %301 = vst [vmem:[%s277 + $0x58] sm:$0xff] %v300
                %v302 = vld [vmem:[%s276 + $0xc0] sm:$0xff]
                %303 = vst [vmem:[%s277 + $0x60] sm:$0xff] %v302
                %v304 = vld [vmem:[%s276 + $0xc8] sm:$0xff]
                %305 = vst [vmem:[%s277 + $0x68] sm:$0xff] %v304
                %v306 = vld [vmem:[%s276 + $0xe0] sm:$0xff]
                %307 = vst [vmem:[%s277 + $0x70] sm:$0xff] %v306
                %v308 = vld [vmem:[%s276 + $0xe8] sm:$0xff]
                %309 = vst [vmem:[%s277 + $0x78] sm:$0xff] %v308
                %v310 = vld [vmem:[%s276 + $0x100] sm:$0xff]
                %311 = vst [vmem:[%s277 + $0x80] sm:$0xff] %v310
                %v312 = vld [vmem:[%s276 + $0x108] sm:$0xff]
                %313 = vst [vmem:[%s277 + $0x88] sm:$0xff] %v312
                %v314 = vld [vmem:[%s276 + $0x120] sm:$0xff]
                %315 = vst [vmem:[%s277 + $0x90] sm:$0xff] %v314
                %v316 = vld [vmem:[%s276 + $0x128] sm:$0xff]
                %317 = vst [vmem:[%s277 + $0x98] sm:$0xff] %v316
                %v318 = vld [vmem:[%s276 + $0x140] sm:$0xff]
                %319 = vst [vmem:[%s277 + $0xa0] sm:$0xff] %v318
                %v320 = vld [vmem:[%s276 + $0x148] sm:$0xff]
                %321 = vst [vmem:[%s277 + $0xa8] sm:$0xff] %v320
                %v322 = vld [vmem:[%s276 + $0x160] sm:$0xff]
                %323 = vst [vmem:[%s277 + $0xb0] sm:$0xff] %v322
                %v324 = vld [vmem:[%s276 + $0x168] sm:$0xff]
                %325 = vst [vmem:[%s277 + $0xb8] sm:$0xff] %v324
                %v326 = vld [vmem:[%s276 + $0x180] sm:$0xff]
                %327 = vst [vmem:[%s277 + $0xc0] sm:$0xff] %v326
                %v328 = vld [vmem:[%s276 + $0x188] sm:$0xff]
                %329 = vst [vmem:[%s277 + $0xc8] sm:$0xff] %v328
                %v330 = vld [vmem:[%s276 + $0x1a0] sm:$0xff]
                %331 = vst [vmem:[%s277 + $0xd0] sm:$0xff] %v330
                %v332 = vld [vmem:[%s276 + $0x1a8] sm:$0xff]
                %333 = vst [vmem:[%s277 + $0xd8] sm:$0xff] %v332
                %v334 = vld [vmem:[%s276 + $0x1c0] sm:$0xff]
                %335 = vst [vmem:[%s277 + $0xe0] sm:$0xff] %v334
                %v336 = vld [vmem:[%s276 + $0x1c8] sm:$0xff]
                %337 = vst [vmem:[%s277 + $0xe8] sm:$0xff] %v336
                %v338 = vld [vmem:[%s276 + $0x1e0] sm:$0xff]
                %339 = vst [vmem:[%s277 + $0xf0] sm:$0xff] %v338
                %v340 = vld [vmem:[%s276 + $0x1e8] sm:$0xff]
                %341 = vst [vmem:[%s277 + $0xf8] sm:$0xff] %v340
                %v342 = vld [vmem:[%s276 + $0x200] sm:$0xff]
                %343 = vst [vmem:[%s277 + $0x100] sm:$0xff] %v342
                %v344 = vld [vmem:[%s276 + $0x208] sm:$0xff]
                %345 = vst [vmem:[%s277 + $0x108] sm:$0xff] %v344
                %v346 = vld [vmem:[%s276 + $0x220] sm:$0xff]
                %347 = vst [vmem:[%s277 + $0x110] sm:$0xff] %v346
                %v348 = vld [vmem:[%s276 + $0x228] sm:$0xff]
                %349 = vst [vmem:[%s277 + $0x118] sm:$0xff] %v348
                %v350 = vld [vmem:[%s276 + $0x240] sm:$0xff]
                %351 = vst [vmem:[%s277 + $0x120] sm:$0xff] %v350
                %v352 = vld [vmem:[%s276 + $0x248] sm:$0xff]
                %353 = vst [vmem:[%s277 + $0x128] sm:$0xff] %v352
                %v354 = vld [vmem:[%s276 + $0x260] sm:$0xff]
                %355 = vst [vmem:[%s277 + $0x130] sm:$0xff] %v354
                %v356 = vld [vmem:[%s276 + $0x268] sm:$0xff]
                %357 = vst [vmem:[%s277 + $0x138] sm:$0xff] %v356
                %v358 = vld [vmem:[%s276 + $0x280] sm:$0xff]
                %359 = vst [vmem:[%s277 + $0x140] sm:$0xff] %v358
                %v360 = vld [vmem:[%s276 + $0x288] sm:$0xff]
                %361 = vst [vmem:[%s277 + $0x148] sm:$0xff] %v360
                %v362 = vld [vmem:[%s276 + $0x2a0] sm:$0xff]
                %363 = vst [vmem:[%s277 + $0x150] sm:$0xff] %v362
                %v364 = vld [vmem:[%s276 + $0x2a8] sm:$0xff]
                %365 = vst [vmem:[%s277 + $0x158] sm:$0xff] %v364
                %v366 = vld [vmem:[%s276 + $0x2c0] sm:$0xff]
                %367 = vst [vmem:[%s277 + $0x160] sm:$0xff] %v366
                %v368 = vld [vmem:[%s276 + $0x2c8] sm:$0xff]
                %369 = vst [vmem:[%s277 + $0x168] sm:$0xff] %v368
                %v370 = vld [vmem:[%s276 + $0x2e0] sm:$0xff]
                %371 = vst [vmem:[%s277 + $0x170] sm:$0xff] %v370
                %v372 = vld [vmem:[%s276 + $0x2e8] sm:$0xff]
                %373 = vst [vmem:[%s277 + $0x178] sm:$0xff] %v372
                %v374 = vld [vmem:[%s276 + $0x300] sm:$0xff]
                %375 = vst [vmem:[%s277 + $0x180] sm:$0xff] %v374
                %v376 = vld [vmem:[%s276 + $0x308] sm:$0xff]
                %377 = vst [vmem:[%s277 + $0x188] sm:$0xff] %v376
                %v378 = vld [vmem:[%s276 + $0x320] sm:$0xff]
                %379 = vst [vmem:[%s277 + $0x190] sm:$0xff] %v378
                %v380 = vld [vmem:[%s276 + $0x328] sm:$0xff]
                %381 = vst [vmem:[%s277 + $0x198] sm:$0xff] %v380
                %v382 = vld [vmem:[%s276 + $0x340] sm:$0xff]
                %383 = vst [vmem:[%s277 + $0x1a0] sm:$0xff] %v382
                %v384 = vld [vmem:[%s276 + $0x348] sm:$0xff]
                %385 = vst [vmem:[%s277 + $0x1a8] sm:$0xff] %v384
                %v386 = vld [vmem:[%s276 + $0x360] sm:$0xff]
                %387 = vst [vmem:[%s277 + $0x1b0] sm:$0xff] %v386
                %v388 = vld [vmem:[%s276 + $0x368] sm:$0xff]
                %389 = vst [vmem:[%s277 + $0x1b8] sm:$0xff] %v388
                %v390 = vld [vmem:[%s276 + $0x380] sm:$0xff]
                %391 = vst [vmem:[%s277 + $0x1c0] sm:$0xff] %v390
                %v392 = vld [vmem:[%s276 + $0x388] sm:$0xff]
                %393 = vst [vmem:[%s277 + $0x1c8] sm:$0xff] %v392
                %v394 = vld [vmem:[%s276 + $0x3a0] sm:$0xff]
                %395 = vst [vmem:[%s277 + $0x1d0] sm:$0xff] %v394
                %v396 = vld [vmem:[%s276 + $0x3a8] sm:$0xff]
                %397 = vst [vmem:[%s277 + $0x1d8] sm:$0xff] %v396
                %v398 = vld [vmem:[%s276 + $0x3c0] sm:$0xff]
                %399 = vst [vmem:[%s277 + $0x1e0] sm:$0xff] %v398
                %v400 = vld [vmem:[%s276 + $0x3c8] sm:$0xff]
                %401 = vst [vmem:[%s277 + $0x1e8] sm:$0xff] %v400
                %v402 = vld [vmem:[%s276 + $0x3e0] sm:$0xff]
                %403 = vst [vmem:[%s277 + $0x1f0] sm:$0xff] %v402
                %v404 = vld [vmem:[%s276 + $0x3e8] sm:$0xff]
                %405 = vst [vmem:[%s277 + $0x1f8] sm:$0xff] %v404
              $region49: #{encode_image.16} parent=43 // loop_footer
                %s275 = sadd.s32 1, %s271
              $region50: #{encode_image.16} parent=43 // loop_footer_branch
                %270 = sbr.rel target = $region46
              $region51: #{encode_image.16} parent=43 // loop_exit
                _
            $region44: #{encode_image.16} parent=39 // pred_fallthru
              _
            // Predicated region
            $region52: #{encode_image.16} parent=39 // pred_check
              _
            $region53: #{encode_image.16} parent=39 // pred_check_branch
              %407 = sbr.rel target = $region55
            $region54: #{encode_image.16} parent=39 // pred_region
              _
            $region55: #{encode_image.16} parent=39 // pred_fallthru
              _
          $region40: #{encode_image.16} parent=35 // pred_fallthru
            _
          %408 = vnop
        $region36: #{encode_image.16} parent=31 // pred_fallthru
          _
        // Predicated region
        $region56: #{encode_image.16} parent=31 // pred_check
          %p409 = pneg %p139
        $region57: #{encode_image.16} parent=31 // pred_check_branch
          %411 = sbr.rel (%p409) target = $region59
        $region58: #{encode_image.16} parent=31 // pred_region
          %s412 = smul.u32 4, %s21
          %p413 = scmp.lt.s32.totalorder %s412, 7
          %s414 = scalar_select %p413, %s412, 7
          %s415 = scalar_lea.vmem %s4, %s414
          %s416 = smul.u32 4, %s21
        $region59: #{encode_image.16} parent=31 // pred_fallthru
          _
        // Predicated region
        $region60: #{encode_image.16} parent=31 // pred_check
          %p417 = pneg %p165
        $region61: #{encode_image.16} parent=31 // pred_check_branch
          %419 = sbr.rel (%p417) target = $region63
        $region62: #{encode_image.16} parent=31 // pred_region
          %s420 = smul.u32 64, %s21
          %p421 = scmp.lt.s32.totalorder %s420, 127
          %s422 = scalar_select %p421, %s420, 127
          %s423 = smul.addr %s422, 2
          %s424 = smul.addr %s423, 4
          %s425 = scalar_lea.vmem %s5, %s424
          %s426 = smul.u32 64, %s21
        $region63: #{encode_image.16} parent=31 // pred_fallthru
          _
      $region32: #{encode_image.16} parent=5 // pred_fallthru
        _
      %p427 = scmp.le.s32.totalorder 1, %s13
      %p428 = scmp.lt.s32.totalorder %s13, 3
      %p429 = pnand %p427, %p428
      %p430 = pneg %p429
      // Predicated region
      $region64: #{encode_image.16} parent=5 // pred_check
        _
      $region65: #{encode_image.16} parent=5 // pred_check_branch
        %432 = sbr.rel (%p429) target = $region67
      $region66: #{encode_image.16} parent=5 // pred_region
        %s433 = ssub.s32 %s13, 1
        %s434 = sand.u32 %s106, 1
        %s435 = sand.u32 %s106, 1
        %s436 = smul.addr %s435, 512
        %s437 = scalar_lea.vmem [#allocation4], %s436
        // Predicated region
        $region68: #{encode_image.16} parent=66 // pred_check
          %p438 = pneg %p119
        $region69: #{encode_image.16} parent=66 // pred_check_branch
          %440 = sbr.rel (%p438) target = $region71
        $region70: #{encode_image.16} parent=66 // pred_region
          _
        $region71: #{encode_image.16} parent=66 // pred_fallthru
          _
        %s441 = smul.u32 2, %s22
        %p442 = scmp.lt.s32.totalorder %s441, 1
        %s443 = scalar_select %p442, %s441, 1
        %s444 = smul.addr %s443, 2
        %s445 = smul.addr %s444, 4
        %s446 = scalar_lea.vmem %s0, %s445
        %p447 = pneg %p51
        %p448 = pneg %p48
        %p449 = pneg %p72
        %p450 = pneg %p69
        %p451 = pneg %p93
        %p452 = pneg %p90
        %s453 = sand.u32 %s106, 1
        %s454 = sand.u32 %s106, 1
        %s455 = smul.addr %s454, 512
        %s456 = scalar_lea.vmem [#allocation4], %s455
        %p457 = pneg %p119
        %p458 = pneg %p116
        %s459 = smul.u32 4, %s23
        %p460 = scmp.lt.s32.totalorder %s459, 7
        %s461 = scalar_select %p460, %s459, 7
        %s462 = scalar_lea.vmem %s4, %s461
        %p463 = pneg %p145
        %p464 = pneg %p142
        %s465 = smul.u32 64, %s23
        %p466 = scmp.lt.s32.totalorder %s465, 127
        %s467 = scalar_select %p466, %s465, 127
        %s468 = smul.addr %s467, 2
        %s469 = smul.addr %s468, 4
        %s470 = scalar_lea.vmem %s5, %s469
        %p471 = pneg %p171
        %p472 = pneg %p168
        %p473 = pneg %p192
        %p474 = pneg %p189
        %p475 = pneg %p218
        %p476 = pneg %p215
        %s477 = smul.u32 2, %s22
        %p478 = scmp.lt.s32.totalorder %s477, 1
        %s479 = scalar_select %p478, %s477, 1
        %s480 = smul.addr %s479, 2
        %s481 = smul.addr %s480, 4
        %s482 = scalar_lea.vmem %s7, %s481
        %s483 = smul.u32 2, %s22
        %p484 = scmp.lt.s32.totalorder %s483, 1
        %s485 = scalar_select %p484, %s483, 1
        %s486 = smul.addr %s485, 2
        %s487 = smul.addr %s486, 4
        %s488 = scalar_lea.vmem %s0, %s487
        %s489 = smul.u32 2, %s22
        %s490 = smul.u32 4, %s23
        %s491 = smul.u32 4, %s23
        %p492 = scmp.lt.s32.totalorder %s491, 7
        %s493 = scalar_select %p492, %s491, 7
        %s494 = scalar_lea.vmem %s4, %s493
        %s495 = smul.u32 4, %s23
        %s496 = smul.u32 64, %s23
        %p497 = scmp.lt.s32.totalorder %s496, 127
        %s498 = scalar_select %p497, %s496, 127
        %s499 = smul.addr %s498, 2
        %s500 = smul.addr %s499, 4
        %s501 = scalar_lea.vmem %s5, %s500
        %s502 = smul.u32 64, %s23
        %s503 = smul.u32 2, %s22
        %p504 = scmp.lt.s32.totalorder %s503, 1
        %s505 = scalar_select %p504, %s503, 1
        %s506 = smul.addr %s505, 2
        %s507 = smul.addr %s506, 4
        %s508 = scalar_lea.vmem %s7, %s507
        %s509 = smul.u32 2, %s22
        %p510 = scmp.eq.s32.totalorder %s23, 0
        // Predicated region
        $region72: #{encode_image.16} parent=66 // pred_check
          %p511 = pneg %p510
        $region73: #{encode_image.16} parent=66 // pred_check_branch
          %513 = sbr.rel (%p511) target = $region75
        $region74: #{encode_image.16} parent=66 // pred_region
          %v514 = vld [vmem:[%s488] sm:$0xff]
          %v515 = vld [vmem:[%s488 + $0x8] sm:$0x11]
          %v516 = vunpack.c.l.bf16 %v514
          %v517 = vunpack.c.h.bf16 %v514
          %v518 = vunpack.c.l.bf16 %v515
          %v519 = vunpack.c.h.bf16 %v515
          %v520 = vadd.f32 %v516, %v517
          %521 = vadd.xlane.f32.xlu0 %v520
          %v522 = vpop.xlane.xlu0 %521
          %vm523 = vcmask 1041408
          %v524 = vsel %vm523, %v518, 0.0
          %v525 = vsel %vm523, %v519, 0.0
          %v526 = vadd.f32 %v524, %v525
          %527 = vadd.xlane.f32.xlu0 %v526
          %v528 = vpop.xlane.xlu0 %527
          %v529 = vrcp.pop 256.0
          %v530 = vmul.f32 %v522, %v529
          %v531 = vmul.f32 %v528, %v529
          %v532 = vsub.f32 %v516, %v530
          %v533 = vsub.f32 %v517, %v530
          %v534 = vsub.f32 %v518, %v531
          %v535 = vsub.f32 %v519, %v531
          %v536 = vmul.f32 %v532, %v532
          %v537 = vmul.f32 %v533, %v533
          %v538 = vmul.f32 %v534, %v534
          %v539 = vmul.f32 %v535, %v535
          %v540 = vadd.f32 %v536, %v537
          %541 = vadd.xlane.f32.xlu0 %v540
          %v542 = vpop.xlane.xlu0 %541
          %v543 = vsel %vm523, %v538, 0.0
          %v544 = vsel %vm523, %v539, 0.0
          %v545 = vadd.f32 %v543, %v544
          %546 = vadd.xlane.f32.xlu0 %v545
          %v547 = vpop.xlane.xlu0 %546
          %v548 = vmul.f32 %v542, %v529
          %v549 = vmul.f32 %v547, %v529
          %v550 = vadd.f32 %v548, 1e-05
          %v551 = vadd.f32 %v549, 1e-05
          %v552 = vrsqrt.pop %v550
          %v553 = vrsqrt.pop %v551
          %v554 = vmul.f32 %v532, %v552
          %v555 = vmul.f32 %v533, %v552
          %v556 = vmul.f32 %v534, %v553
          %v557 = vmul.f32 %v535, %v553
          %v558 = vld [vmem:[%s1] sm:$0x3]
          %v560 = vlaneseq
          %v561 = vshrl.u32 %v560, 7
          %v562 = vsub.s32 0, %v561
          %v563 = vrot.slane %v558, %v562
          %v564 = vlaneseq
          %v565 = vshrl.u32 %v564, 7
          %v566 = vsub.s32 1, %v565
          %v567 = vrot.slane %v558, %v566
          %v570 = vmul.f32 %v554, %v563
          %v571 = vmul.f32 %v555, %v567
          %v572 = vmul.f32 %v556, %v563
          %v573 = vmul.f32 %v557, %v567
          %v574 = vld [vmem:[%s2] sm:$0x3]
          %v576 = vlaneseq
          %v577 = vshrl.u32 %v576, 7
          %v578 = vsub.s32 0, %v577
          %v579 = vrot.slane %v574, %v578
          %v580 = vlaneseq
          %v581 = vshrl.u32 %v580, 7
          %v582 = vsub.s32 1, %v581
          %v583 = vrot.slane %v574, %v582
          %v586 = vadd.f32 %v570, %v579
          %v587 = vadd.f32 %v571, %v583
          %v588 = vadd.f32 %v572, %v579
          %v589 = vadd.f32 %v573, %v583
          %v590 = vpack.c.bf16 %v588, %v586
          %v591 = vpack.c.bf16 %v589, %v587
          %v594 = vunpack.c.l.b16 %v590
          %v595 = vunpack.c.l.b16 %v591
          %v596 = vunpack.c.h.b16 %v590
          %v597 = vunpack.c.h.b16 %v591
          %v598 = vpack.c.b16 %v595, %v594
          %v599 = vpack.c.b16 %v597, %v596
          %602 = vst [vmem:[#allocation2] sm:$0xff] %v598
          %603 = vst [vmem:[#allocation2 + $0x8] sm:$0x11] %v599
          %604 = vst [vmem:[#allocation3] sm:$0xff] 0.0
          %605 = vst [vmem:[#allocation3 + $0x8] sm:$0xff] 0.0
          %606 = vst [vmem:[#allocation3 + $0x10] sm:$0x3] 0.0
          %607 = vst [vmem:[#allocation3 + $0x18] sm:$0x3] 0.0
        $region75: #{encode_image.16} parent=66 // pred_fallthru
          _
        %v608 = vld [vmem:[#allocation2] sm:$0xff]
        %v609 = vld [vmem:[#allocation2 + $0x8] sm:$0x11]
        %v610 = vld [vmem:[%s437] sm:$0xff]
        %v611 = vld [vmem:[%s437 + $0x8] sm:$0xff]
        %v612 = vld [vmem:[%s437 + $0x10] sm:$0xff]
        %v613 = vld [vmem:[%s437 + $0x18] sm:$0xff]
        %v614 = vld [vmem:[%s437 + $0x20] sm:$0xff]
        %v615 = vld [vmem:[%s437 + $0x28] sm:$0xff]
        %v616 = vld [vmem:[%s437 + $0x30] sm:$0xff]
        %v617 = vld [vmem:[%s437 + $0x38] sm:$0xff]
        %v618 = vld [vmem:[%s437 + $0x40] sm:$0xff]
        %v619 = vld [vmem:[%s437 + $0x48] sm:$0xff]
        %v620 = vld [vmem:[%s437 + $0x50] sm:$0xff]
        %v621 = vld [vmem:[%s437 + $0x58] sm:$0xff]
        %v622 = vld [vmem:[%s437 + $0x60] sm:$0xff]
        %v623 = vld [vmem:[%s437 + $0x68] sm:$0xff]
        %v624 = vld [vmem:[%s437 + $0x70] sm:$0xff]
        %v625 = vld [vmem:[%s437 + $0x78] sm:$0xff]
        %v626 = vld [vmem:[%s437 + $0x80] sm:$0xff]
        %v627 = vld [vmem:[%s437 + $0x88] sm:$0xff]
        %v628 = vld [vmem:[%s437 + $0x90] sm:$0xff]
        %v629 = vld [vmem:[%s437 + $0x98] sm:$0xff]
        %v630 = vld [vmem:[%s437 + $0xa0] sm:$0xff]
        %v631 = vld [vmem:[%s437 + $0xa8] sm:$0xff]
        %v632 = vld [vmem:[%s437 + $0xb0] sm:$0xff]
        %v633 = vld [vmem:[%s437 + $0xb8] sm:$0xff]
        %v634 = vld [vmem:[%s437 + $0xc0] sm:$0xff]
        %v635 = vld [vmem:[%s437 + $0xc8] sm:$0xff]
        %v636 = vld [vmem:[%s437 + $0xd0] sm:$0xff]
        %v637 = vld [vmem:[%s437 + $0xd8] sm:$0xff]
        %v638 = vld [vmem:[%s437 + $0xe0] sm:$0xff]
        %v639 = vld [vmem:[%s437 + $0xe8] sm:$0xff]
        %v640 = vld [vmem:[%s437 + $0xf0] sm:$0xff]
        %v641 = vld [vmem:[%s437 + $0xf8] sm:$0xff]
        %v642 = vld [vmem:[%s437 + $0x100] sm:$0xff]
        %v643 = vld [vmem:[%s437 + $0x108] sm:$0xff]
        %v644 = vld [vmem:[%s437 + $0x110] sm:$0xff]
        %v645 = vld [vmem:[%s437 + $0x118] sm:$0xff]
        %v646 = vld [vmem:[%s437 + $0x120] sm:$0xff]
        %v647 = vld [vmem:[%s437 + $0x128] sm:$0xff]
        %v648 = vld [vmem:[%s437 + $0x130] sm:$0xff]
        %v649 = vld [vmem:[%s437 + $0x138] sm:$0xff]
        %v650 = vld [vmem:[%s437 + $0x140] sm:$0xff]
        %v651 = vld [vmem:[%s437 + $0x148] sm:$0xff]
        %v652 = vld [vmem:[%s437 + $0x150] sm:$0xff]
        %v653 = vld [vmem:[%s437 + $0x158] sm:$0xff]
        %v654 = vld [vmem:[%s437 + $0x160] sm:$0xff]
        %v655 = vld [vmem:[%s437 + $0x168] sm:$0xff]
        %v656 = vld [vmem:[%s437 + $0x170] sm:$0xff]
        %v657 = vld [vmem:[%s437 + $0x178] sm:$0xff]
        %v658 = vld [vmem:[%s437 + $0x180] sm:$0xff]
        %v659 = vld [vmem:[%s437 + $0x188] sm:$0xff]
        %v660 = vld [vmem:[%s437 + $0x190] sm:$0xff]
        %v661 = vld [vmem:[%s437 + $0x198] sm:$0xff]
        %v662 = vld [vmem:[%s437 + $0x1a0] sm:$0xff]
        %v663 = vld [vmem:[%s437 + $0x1a8] sm:$0xff]
        %v664 = vld [vmem:[%s437 + $0x1b0] sm:$0xff]
        %v665 = vld [vmem:[%s437 + $0x1b8] sm:$0xff]
        %v666 = vld [vmem:[%s437 + $0x1c0] sm:$0xff]
        %v667 = vld [vmem:[%s437 + $0x1c8] sm:$0xff]
        %v668 = vld [vmem:[%s437 + $0x1d0] sm:$0xff]
        %v669 = vld [vmem:[%s437 + $0x1d8] sm:$0xff]
        %v670 = vld [vmem:[%s437 + $0x1e0] sm:$0xff]
        %v671 = vld [vmem:[%s437 + $0x1e8] sm:$0xff]
        %v672 = vld [vmem:[%s437 + $0x1f0] sm:$0xff]
        %v673 = vld [vmem:[%s437 + $0x1f8] sm:$0xff]
        %v674 = vld [vmem:[%s494] sm:$0xf]
        %v675 = vunpack.c.l.bf16 %v674
        %v677 = vlaneseq
        %v678 = vshrl.u32 %v677, 7
        %v679 = vsub.s32 0, %v678
        %v680 = vrot.slane %v675, %v679
        %v681 = vlaneseq
        %v682 = vshrl.u32 %v681, 7
        %v683 = vsub.s32 2, %v682
        %v684 = vrot.slane %v675, %v683
        %v685 = vlaneseq
        %v686 = vshrl.u32 %v685, 7
        %v687 = vsub.s32 4, %v686
        %v688 = vrot.slane %v675, %v687
        %v689 = vlaneseq
        %v690 = vshrl.u32 %v689, 7
        %v691 = vsub.s32 6, %v690
        %v692 = vrot.slane %v675, %v691
        %v697 = vlaneseq
        %v698 = vshrl.u32 %v697, 7
        %v699 = vsub.s32 0, %v698
        %v700 = vrot.slane %v680, %v699
        %v701 = vlaneseq
        %v702 = vshrl.u32 %v701, 7
        %v703 = vsub.s32 0, %v702
        %v704 = vrot.slane %v684, %v703
        %v705 = vlaneseq
        %v706 = vshrl.u32 %v705, 7
        %v707 = vsub.s32 0, %v706
        %v708 = vrot.slane %v688, %v707
        %v709 = vlaneseq
        %v710 = vshrl.u32 %v709, 7
        %v711 = vsub.s32 0, %v710
        %v712 = vrot.slane %v692, %v711
        %v715 = vunpack.c.l.b16 %v608
        %v716 = vunpack.c.h.b16 %v608
        %v717 = vunpack.c.l.b16 %v609
        %v718 = vunpack.c.h.b16 %v609
        %v719 = vpack.c.b16 %v717, %v715
        %v720 = vpack.c.b16 %v718, %v716
        %v787 = vunpack.c.l.b16 %v610
        %v788 = vunpack.c.h.b16 %v610
        %v789 = vunpack.c.l.b16 %v611
        %v790 = vunpack.c.h.b16 %v611
        %v791 = vunpack.c.l.b16 %v612
        %v792 = vunpack.c.h.b16 %v612
        %v793 = vunpack.c.l.b16 %v613
        %v794 = vunpack.c.h.b16 %v613
        %v795 = vunpack.c.l.b16 %v614
        %v796 = vunpack.c.h.b16 %v614
        %v797 = vunpack.c.l.b16 %v615
        %v798 = vunpack.c.h.b16 %v615
        %v799 = vunpack.c.l.b16 %v616
        %v800 = vunpack.c.h.b16 %v616
        %v801 = vunpack.c.l.b16 %v617
        %v802 = vunpack.c.h.b16 %v617
        %v803 = vunpack.c.l.b16 %v618
        %v804 = vunpack.c.h.b16 %v618
        %v805 = vunpack.c.l.b16 %v619
        %v806 = vunpack.c.h.b16 %v619
        %v807 = vunpack.c.l.b16 %v620
        %v808 = vunpack.c.h.b16 %v620
        %v809 = vunpack.c.l.b16 %v621
        %v810 = vunpack.c.h.b16 %v621
        %v811 = vunpack.c.l.b16 %v622
        %v812 = vunpack.c.h.b16 %v622
        %v813 = vunpack.c.l.b16 %v623
        %v814 = vunpack.c.h.b16 %v623
        %v815 = vunpack.c.l.b16 %v624
        %v816 = vunpack.c.h.b16 %v624
        %v817 = vunpack.c.l.b16 %v625
        %v818 = vunpack.c.h.b16 %v625
        %v819 = vunpack.c.l.b16 %v626
        %v820 = vunpack.c.h.b16 %v626
        %v821 = vunpack.c.l.b16 %v627
        %v822 = vunpack.c.h.b16 %v627
        %v823 = vunpack.c.l.b16 %v628
        %v824 = vunpack.c.h.b16 %v628
        %v825 = vunpack.c.l.b16 %v629
        %v826 = vunpack.c.h.b16 %v629
        %v827 = vunpack.c.l.b16 %v630
        %v828 = vunpack.c.h.b16 %v630
        %v829 = vunpack.c.l.b16 %v631
        %v830 = vunpack.c.h.b16 %v631
        %v831 = vunpack.c.l.b16 %v632
        %v832 = vunpack.c.h.b16 %v632
        %v833 = vunpack.c.l.b16 %v633
        %v834 = vunpack.c.h.b16 %v633
        %v835 = vunpack.c.l.b16 %v634
        %v836 = vunpack.c.h.b16 %v634
        %v837 = vunpack.c.l.b16 %v635
        %v838 = vunpack.c.h.b16 %v635
        %v839 = vunpack.c.l.b16 %v636
        %v840 = vunpack.c.h.b16 %v636
        %v841 = vunpack.c.l.b16 %v637
        %v842 = vunpack.c.h.b16 %v637
        %v843 = vunpack.c.l.b16 %v638
        %v844 = vunpack.c.h.b16 %v638
        %v845 = vunpack.c.l.b16 %v639
        %v846 = vunpack.c.h.b16 %v639
        %v847 = vunpack.c.l.b16 %v640
        %v848 = vunpack.c.h.b16 %v640
        %v849 = vunpack.c.l.b16 %v641
        %v850 = vunpack.c.h.b16 %v641
        %v851 = vunpack.c.l.b16 %v642
        %v852 = vunpack.c.h.b16 %v642
        %v853 = vunpack.c.l.b16 %v643
        %v854 = vunpack.c.h.b16 %v643
        %v855 = vunpack.c.l.b16 %v644
        %v856 = vunpack.c.h.b16 %v644
        %v857 = vunpack.c.l.b16 %v645
        %v858 = vunpack.c.h.b16 %v645
        %v859 = vunpack.c.l.b16 %v646
        %v860 = vunpack.c.h.b16 %v646
        %v861 = vunpack.c.l.b16 %v647
        %v862 = vunpack.c.h.b16 %v647
        %v863 = vunpack.c.l.b16 %v648
        %v864 = vunpack.c.h.b16 %v648
        %v865 = vunpack.c.l.b16 %v649
        %v866 = vunpack.c.h.b16 %v649
        %v867 = vunpack.c.l.b16 %v650
        %v868 = vunpack.c.h.b16 %v650
        %v869 = vunpack.c.l.b16 %v651
        %v870 = vunpack.c.h.b16 %v651
        %v871 = vunpack.c.l.b16 %v652
        %v872 = vunpack.c.h.b16 %v652
        %v873 = vunpack.c.l.b16 %v653
        %v874 = vunpack.c.h.b16 %v653
        %v875 = vunpack.c.l.b16 %v654
        %v876 = vunpack.c.h.b16 %v654
        %v877 = vunpack.c.l.b16 %v655
        %v878 = vunpack.c.h.b16 %v655
        %v879 = vunpack.c.l.b16 %v656
        %v880 = vunpack.c.h.b16 %v656
        %v881 = vunpack.c.l.b16 %v657
        %v882 = vunpack.c.h.b16 %v657
        %v883 = vunpack.c.l.b16 %v658
        %v884 = vunpack.c.h.b16 %v658
        %v885 = vunpack.c.l.b16 %v659
        %v886 = vunpack.c.h.b16 %v659
        %v887 = vunpack.c.l.b16 %v660
        %v888 = vunpack.c.h.b16 %v660
        %v889 = vunpack.c.l.b16 %v661
        %v890 = vunpack.c.h.b16 %v661
        %v891 = vunpack.c.l.b16 %v662
        %v892 = vunpack.c.h.b16 %v662
        %v893 = vunpack.c.l.b16 %v663
        %v894 = vunpack.c.h.b16 %v663
        %v895 = vunpack.c.l.b16 %v664
        %v896 = vunpack.c.h.b16 %v664
        %v897 = vunpack.c.l.b16 %v665
        %v898 = vunpack.c.h.b16 %v665
        %v899 = vunpack.c.l.b16 %v666
        %v900 = vunpack.c.h.b16 %v666
        %v901 = vunpack.c.l.b16 %v667
        %v902 = vunpack.c.h.b16 %v667
        %v903 = vunpack.c.l.b16 %v668
        %v904 = vunpack.c.h.b16 %v668
        %v905 = vunpack.c.l.b16 %v669
        %v906 = vunpack.c.h.b16 %v669
        %v907 = vunpack.c.l.b16 %v670
        %v908 = vunpack.c.h.b16 %v670
        %v909 = vunpack.c.l.b16 %v671
        %v910 = vunpack.c.h.b16 %v671
        %v911 = vunpack.c.l.b16 %v672
        %v912 = vunpack.c.h.b16 %v672
        %v913 = vunpack.c.l.b16 %v673
        %v914 = vunpack.c.h.b16 %v673
        %v915 = vpack.c.b16 %v791, %v787
        %v916 = vpack.c.b16 %v792, %v788
        %v917 = vpack.c.b16 %v793, %v789
        %v918 = vpack.c.b16 %v794, %v790
        %v919 = vpack.c.b16 %v799, %v795
        %v920 = vpack.c.b16 %v800, %v796
        %v921 = vpack.c.b16 %v801, %v797
        %v922 = vpack.c.b16 %v802, %v798
        %v923 = vpack.c.b16 %v807, %v803
        %v924 = vpack.c.b16 %v808, %v804
        %v925 = vpack.c.b16 %v809, %v805
        %v926 = vpack.c.b16 %v810, %v806
        %v927 = vpack.c.b16 %v815, %v811
        %v928 = vpack.c.b16 %v816, %v812
        %v929 = vpack.c.b16 %v817, %v813
        %v930 = vpack.c.b16 %v818, %v814
        %v931 = vpack.c.b16 %v823, %v819
        %v932 = vpack.c.b16 %v824, %v820
        %v933 = vpack.c.b16 %v825, %v821
        %v934 = vpack.c.b16 %v826, %v822
        %v935 = vpack.c.b16 %v831, %v827
        %v936 = vpack.c.b16 %v832, %v828
        %v937 = vpack.c.b16 %v833, %v829
        %v938 = vpack.c.b16 %v834, %v830
        %v939 = vpack.c.b16 %v839, %v835
        %v940 = vpack.c.b16 %v840, %v836
        %v941 = vpack.c.b16 %v841, %v837
        %v942 = vpack.c.b16 %v842, %v838
        %v943 = vpack.c.b16 %v847, %v843
        %v944 = vpack.c.b16 %v848, %v844
        %v945 = vpack.c.b16 %v849, %v845
        %v946 = vpack.c.b16 %v850, %v846
        %v947 = vpack.c.b16 %v855, %v851
        %v948 = vpack.c.b16 %v856, %v852
        %v949 = vpack.c.b16 %v857, %v853
        %v950 = vpack.c.b16 %v858, %v854
        %v951 = vpack.c.b16 %v863, %v859
        %v952 = vpack.c.b16 %v864, %v860
        %v953 = vpack.c.b16 %v865, %v861
        %v954 = vpack.c.b16 %v866, %v862
        %v955 = vpack.c.b16 %v871, %v867
        %v956 = vpack.c.b16 %v872, %v868
        %v957 = vpack.c.b16 %v873, %v869
        %v958 = vpack.c.b16 %v874, %v870
        %v959 = vpack.c.b16 %v879, %v875
        %v960 = vpack.c.b16 %v880, %v876
        %v961 = vpack.c.b16 %v881, %v877
        %v962 = vpack.c.b16 %v882, %v878
        %v963 = vpack.c.b16 %v887, %v883
        %v964 = vpack.c.b16 %v888, %v884
        %v965 = vpack.c.b16 %v889, %v885
        %v966 = vpack.c.b16 %v890, %v886
        %v967 = vpack.c.b16 %v895, %v891
        %v968 = vpack.c.b16 %v896, %v892
        %v969 = vpack.c.b16 %v897, %v893
        %v970 = vpack.c.b16 %v898, %v894
        %v971 = vpack.c.b16 %v903, %v899
        %v972 = vpack.c.b16 %v904, %v900
        %v973 = vpack.c.b16 %v905, %v901
        %v974 = vpack.c.b16 %v906, %v902
        %v975 = vpack.c.b16 %v911, %v907
        %v976 = vpack.c.b16 %v912, %v908
        %v977 = vpack.c.b16 %v913, %v909
        %v978 = vpack.c.b16 %v914, %v910
        %1043 = vmatprep.subr.bf16.mxu0 %v944
        %1044 = vmatpush1.bf16.msra.mxu0 %v943
        %1045 = vmatprep.subr.bf16.mxu0 %v940
        %1046 = vmatpush1.bf16.msra.mxu0 %v939
        %1047 = vmatprep.subr.bf16.mxu0 %v936
        %1048 = vmatpush1.bf16.msra.mxu0 %v935
        %1049 = vmatprep.subr.bf16.mxu0 %v932
        %1050 = vmatpush1.bf16.msra.mxu0 %v931
        %1051 = vmatprep.subr.bf16.mxu0 %v928
        %1052 = vmatpush1.bf16.msra.mxu0 %v927
        %1053 = vmatprep.subr.bf16.mxu0 %v924
        %1054 = vmatpush1.bf16.msra.mxu0 %v923
        %1055 = vmatprep.subr.bf16.mxu0 %v920
        %1056 = vmatpush1.bf16.msra.mxu0 %v919
        %1057 = vmatprep.subr.bf16.mxu0 %v916
        %1058 = vmatpush1.bf16.msra.mxu0 %v915
        %1059 = vmatprep.subr.bf16.mxu0 %v976
        %1060 = vmatpush2.bf16.msra.mxu0 %v975
        %1061 = vmatprep.subr.bf16.mxu0 %v972
        %1062 = vmatpush2.bf16.msra.mxu0 %v971
        %1063 = vmatprep.subr.bf16.mxu0 %v968
        %1064 = vmatpush2.bf16.msra.mxu0 %v967
        %1065 = vmatprep.subr.bf16.mxu0 %v964
        %1066 = vmatpush2.bf16.msra.mxu0 %v963
        %1067 = vmatprep.subr.bf16.mxu0 %v960
        %1068 = vmatpush2.bf16.msra.mxu0 %v959
        %1069 = vmatprep.subr.bf16.mxu0 %v956
        %1070 = vmatpush2.bf16.msra.mxu0 %v955
        %1071 = vmatprep.subr.bf16.mxu0 %v952
        %1072 = vmatpush2.bf16.msra.mxu0 %v951
        %1073 = vmatprep.subr.bf16.mxu0 %v948
        %1074 = vmatpush2.bf16.msra.mxu0 %v947
        %1075 = vmatprep.mubr.bf16.mxu0 %v720
        %1076 = vmatmul.mubr.bf16.gmra.mxu0 %v719
        %v1077 = vpop.f32.mrf.mxu0
        %v1078 = vadd.f32 %v700, %v1077
        %v1079 = vpop.f32.mrf.mxu0
        %v1080 = vadd.f32 %v704, %v1079
        %v1081 = vpop.f32.mrf.mxu0
        %v1082 = vadd.f32 %v700, %v1081
        %v1083 = vpop.f32.mrf.mxu0
        %v1084 = vadd.f32 %v704, %v1083
        %1085 = vdwg.mxu0
        %1086 = vmatprep.subr.bf16.mxu0 %v946
        %1087 = vmatpush1.bf16.msra.mxu0 %v945
        %1088 = vmatprep.subr.bf16.mxu0 %v942
        %1089 = vmatpush1.bf16.msra.mxu0 %v941
        %1090 = vmatprep.subr.bf16.mxu0 %v938
        %1091 = vmatpush1.bf16.msra.mxu0 %v937
        %1092 = vmatprep.subr.bf16.mxu0 %v934
        %1093 = vmatpush1.bf16.msra.mxu0 %v933
        %1094 = vmatprep.subr.bf16.mxu0 %v930
        %1095 = vmatpush1.bf16.msra.mxu0 %v929
        %1096 = vmatprep.subr.bf16.mxu0 %v926
        %1097 = vmatpush1.bf16.msra.mxu0 %v925
        %1098 = vmatprep.subr.bf16.mxu0 %v922
        %1099 = vmatpush1.bf16.msra.mxu0 %v921
        %1100 = vmatprep.subr.bf16.mxu0 %v918
        %1101 = vmatpush1.bf16.msra.mxu0 %v917
        %1102 = vmatprep.subr.bf16.mxu0 %v978
        %1103 = vmatpush2.bf16.msra.mxu0 %v977
        %1104 = vmatprep.subr.bf16.mxu0 %v974
        %1105 = vmatpush2.bf16.msra.mxu0 %v973
        %1106 = vmatprep.subr.bf16.mxu0 %v970
        %1107 = vmatpush2.bf16.msra.mxu0 %v969
        %1108 = vmatprep.subr.bf16.mxu0 %v966
        %1109 = vmatpush2.bf16.msra.mxu0 %v965
        %1110 = vmatprep.subr.bf16.mxu0 %v962
        %1111 = vmatpush2.bf16.msra.mxu0 %v961
        %1112 = vmatprep.subr.bf16.mxu0 %v958
        %1113 = vmatpush2.bf16.msra.mxu0 %v957
        %1114 = vmatprep.subr.bf16.mxu0 %v954
        %1115 = vmatpush2.bf16.msra.mxu0 %v953
        %1116 = vmatprep.subr.bf16.mxu0 %v950
        %1117 = vmatpush2.bf16.msra.mxu0 %v949
        %1118 = vmatprep.mubr.bf16.mxu0 %v720
        %1119 = vmatmul.mubr.bf16.gmra.mxu0 %v719
        %v1120 = vpop.f32.mrf.mxu0
        %v1121 = vadd.f32 %v708, %v1120
        %v1122 = vpop.f32.mrf.mxu0
        %v1123 = vadd.f32 %v712, %v1122
        %v1124 = vpop.f32.mrf.mxu0
        %v1125 = vadd.f32 %v708, %v1124
        %v1126 = vpop.f32.mrf.mxu0
        %v1127 = vadd.f32 %v712, %v1126
        %1128 = vdwg.mxu0
        %v1129 = vmul.f32 %v1078, 1.702
        %v1130 = vmul.f32 %v1080, 1.702
        %v1131 = vmul.f32 %v1121, 1.702
        %v1132 = vmul.f32 %v1123, 1.702
        %v1133 = vmul.f32 %v1082, 1.702
        %v1134 = vmul.f32 %v1084, 1.702
        %v1135 = vmul.f32 %v1125, 1.702
        %v1136 = vmul.f32 %v1127, 1.702
        %v1137 = vxor.u32 %v1129, 2147483648
        %v1138 = vxor.u32 %v1130, 2147483648
        %v1139 = vxor.u32 %v1131, 2147483648
        %v1140 = vxor.u32 %v1132, 2147483648
        %v1141 = vxor.u32 %v1133, 2147483648
        %v1142 = vxor.u32 %v1134, 2147483648
        %v1143 = vxor.u32 %v1135, 2147483648
        %v1144 = vxor.u32 %v1136, 2147483648
        %v1145 = vmul.f32 %v1137, 1.442695
        %v1146 = vpow.pop %v1145
        %v1147 = vmul.f32 %v1138, 1.442695
        %v1148 = vpow.pop %v1147
        %v1149 = vmul.f32 %v1139, 1.442695
        %v1150 = vpow.pop %v1149
        %v1151 = vmul.f32 %v1140, 1.442695
        %v1152 = vpow.pop %v1151
        %v1153 = vmul.f32 %v1141, 1.442695
        %v1154 = vpow.pop %v1153
        %v1155 = vmul.f32 %v1142, 1.442695
        %v1156 = vpow.pop %v1155
        %v1157 = vmul.f32 %v1143, 1.442695
        %v1158 = vpow.pop %v1157
        %v1159 = vmul.f32 %v1144, 1.442695
        %v1160 = vpow.pop %v1159
        %v1161 = vadd.f32 %v1146, 1.0
        %v1162 = vadd.f32 %v1148, 1.0
        %v1163 = vadd.f32 %v1150, 1.0
        %v1164 = vadd.f32 %v1152, 1.0
        %v1165 = vadd.f32 %v1154, 1.0
        %v1166 = vadd.f32 %v1156, 1.0
        %v1167 = vadd.f32 %v1158, 1.0
        %v1168 = vadd.f32 %v1160, 1.0
        %v1169 = vrcp.pop %v1161
        %v1170 = vmul.f32 1.0, %v1169
        %v1171 = vrcp.pop %v1162
        %v1172 = vmul.f32 1.0, %v1171
        %v1173 = vrcp.pop %v1163
        %v1174 = vmul.f32 1.0, %v1173
        %v1175 = vrcp.pop %v1164
        %v1176 = vmul.f32 1.0, %v1175
        %v1177 = vrcp.pop %v1165
        %v1178 = vmul.f32 1.0, %v1177
        %v1179 = vrcp.pop %v1166
        %v1180 = vmul.f32 1.0, %v1179
        %v1181 = vrcp.pop %v1167
        %v1182 = vmul.f32 1.0, %v1181
        %v1183 = vrcp.pop %v1168
        %v1184 = vmul.f32 1.0, %v1183
        %v1185 = vmul.f32 %v1078, %v1170
        %v1186 = vmul.f32 %v1080, %v1172
        %v1187 = vmul.f32 %v1121, %v1174
        %v1188 = vmul.f32 %v1123, %v1176
        %v1189 = vmul.f32 %v1082, %v1178
        %v1190 = vmul.f32 %v1084, %v1180
        %v1191 = vmul.f32 %v1125, %v1182
        %v1192 = vmul.f32 %v1127, %v1184
        %v1193 = vld [vmem:[#allocation3] sm:$0xff]
        %v1194 = vld [vmem:[#allocation3 + $0x8] sm:$0xff]
        %v1195 = vld [vmem:[#allocation3 + $0x10] sm:$0x3]
        %v1196 = vld [vmem:[#allocation3 + $0x18] sm:$0x3]
        %v1197 = vpack.c.bf16 %v1189, %v1185
        %v1198 = vpack.c.bf16 %v1190, %v1186
        %v1199 = vpack.c.bf16 %v1191, %v1187
        %v1200 = vpack.c.bf16 %v1192, %v1188
        %v1201 = vld [vmem:[%s501] sm:$0xff]
        %v1202 = vld [vmem:[%s501 + $0x8] sm:$0xff]
        %v1203 = vld [vmem:[%s501 + $0x10] sm:$0xff]
        %v1204 = vld [vmem:[%s501 + $0x18] sm:$0xff]
        %v1205 = vld [vmem:[%s501 + $0x20] sm:$0xff]
        %v1206 = vld [vmem:[%s501 + $0x28] sm:$0xff]
        %v1207 = vld [vmem:[%s501 + $0x30] sm:$0xff]
        %v1208 = vld [vmem:[%s501 + $0x38] sm:$0xff]
        %v1209 = vld [vmem:[%s501 + $0x40] sm:$0xff]
        %v1210 = vld [vmem:[%s501 + $0x48] sm:$0xff]
        %v1211 = vld [vmem:[%s501 + $0x50] sm:$0xff]
        %v1212 = vld [vmem:[%s501 + $0x58] sm:$0xff]
        %v1213 = vld [vmem:[%s501 + $0x60] sm:$0xff]
        %v1214 = vld [vmem:[%s501 + $0x68] sm:$0xff]
        %v1215 = vld [vmem:[%s501 + $0x70] sm:$0xff]
        %v1216 = vld [vmem:[%s501 + $0x78] sm:$0xff]
        %v1217 = vld [vmem:[%s501 + $0x80] sm:$0xff]
        %v1218 = vld [vmem:[%s501 + $0x88] sm:$0xff]
        %v1219 = vld [vmem:[%s501 + $0x90] sm:$0xff]
        %v1220 = vld [vmem:[%s501 + $0x98] sm:$0xff]
        %v1221 = vld [vmem:[%s501 + $0xa0] sm:$0xff]
        %v1222 = vld [vmem:[%s501 + $0xa8] sm:$0xff]
        %v1223 = vld [vmem:[%s501 + $0xb0] sm:$0xff]
        %v1224 = vld [vmem:[%s501 + $0xb8] sm:$0xff]
        %v1225 = vld [vmem:[%s501 + $0xc0] sm:$0xff]
        %v1226 = vld [vmem:[%s501 + $0xc8] sm:$0xff]
        %v1227 = vld [vmem:[%s501 + $0xd0] sm:$0xff]
        %v1228 = vld [vmem:[%s501 + $0xd8] sm:$0xff]
        %v1229 = vld [vmem:[%s501 + $0xe0] sm:$0xff]
        %v1230 = vld [vmem:[%s501 + $0xe8] sm:$0xff]
        %v1231 = vld [vmem:[%s501 + $0xf0] sm:$0xff]
        %v1232 = vld [vmem:[%s501 + $0xf8] sm:$0xff]
        %v1233 = vld [vmem:[%s501 + $0x100] sm:$0xff]
        %v1234 = vld [vmem:[%s501 + $0x108] sm:$0xff]
        %v1235 = vld [vmem:[%s501 + $0x110] sm:$0xff]
        %v1236 = vld [vmem:[%s501 + $0x118] sm:$0xff]
        %v1237 = vld [vmem:[%s501 + $0x120] sm:$0xff]
        %v1238 = vld [vmem:[%s501 + $0x128] sm:$0xff]
        %v1239 = vld [vmem:[%s501 + $0x130] sm:$0xff]
        %v1240 = vld [vmem:[%s501 + $0x138] sm:$0xff]
        %v1241 = vld [vmem:[%s501 + $0x140] sm:$0xff]
        %v1242 = vld [vmem:[%s501 + $0x148] sm:$0xff]
        %v1243 = vld [vmem:[%s501 + $0x150] sm:$0xff]
        %v1244 = vld [vmem:[%s501 + $0x158] sm:$0xff]
        %v1245 = vld [vmem:[%s501 + $0x160] sm:$0xff]
        %v1246 = vld [vmem:[%s501 + $0x168] sm:$0xff]
        %v1247 = vld [vmem:[%s501 + $0x170] sm:$0xff]
        %v1248 = vld [vmem:[%s501 + $0x178] sm:$0xff]
        %v1249 = vld [vmem:[%s501 + $0x180] sm:$0xff]
        %v1250 = vld [vmem:[%s501 + $0x188] sm:$0xff]
        %v1251 = vld [vmem:[%s501 + $0x190] sm:$0xff]
        %v1252 = vld [vmem:[%s501 + $0x198] sm:$0xff]
        %v1253 = vld [vmem:[%s501 + $0x1a0] sm:$0xff]
        %v1254 = vld [vmem:[%s501 + $0x1a8] sm:$0xff]
        %v1255 = vld [vmem:[%s501 + $0x1b0] sm:$0xff]
        %v1256 = vld [vmem:[%s501 + $0x1b8] sm:$0xff]
        %v1257 = vld [vmem:[%s501 + $0x1c0] sm:$0xff]
        %v1258 = vld [vmem:[%s501 + $0x1c8] sm:$0xff]
        %v1259 = vld [vmem:[%s501 + $0x1d0] sm:$0xff]
        %v1260 = vld [vmem:[%s501 + $0x1d8] sm:$0xff]
        %v1261 = vld [vmem:[%s501 + $0x1e0] sm:$0xff]
        %v1262 = vld [vmem:[%s501 + $0x1e8] sm:$0xff]
        %v1263 = vld [vmem:[%s501 + $0x1f0] sm:$0xff]
        %v1264 = vld [vmem:[%s501 + $0x1f8] sm:$0xff]
        %v1329 = vunpack.c.l.b16 %v1201
        %v1330 = vunpack.c.h.b16 %v1201
        %v1331 = vunpack.c.l.b16 %v1202
        %v1332 = vunpack.c.h.b16 %v1202
        %v1333 = vunpack.c.l.b16 %v1203
        %v1334 = vunpack.c.h.b16 %v1203
        %v1335 = vunpack.c.l.b16 %v1204
        %v1336 = vunpack.c.h.b16 %v1204
        %v1337 = vunpack.c.l.b16 %v1205
        %v1338 = vunpack.c.h.b16 %v1205
        %v1339 = vunpack.c.l.b16 %v1206
        %v1340 = vunpack.c.h.b16 %v1206
        %v1341 = vunpack.c.l.b16 %v1207
        %v1342 = vunpack.c.h.b16 %v1207
        %v1343 = vunpack.c.l.b16 %v1208
        %v1344 = vunpack.c.h.b16 %v1208
        %v1345 = vunpack.c.l.b16 %v1209
        %v1346 = vunpack.c.h.b16 %v1209
        %v1347 = vunpack.c.l.b16 %v1210
        %v1348 = vunpack.c.h.b16 %v1210
        %v1349 = vunpack.c.l.b16 %v1211
        %v1350 = vunpack.c.h.b16 %v1211
        %v1351 = vunpack.c.l.b16 %v1212
        %v1352 = vunpack.c.h.b16 %v1212
        %v1353 = vunpack.c.l.b16 %v1213
        %v1354 = vunpack.c.h.b16 %v1213
        %v1355 = vunpack.c.l.b16 %v1214
        %v1356 = vunpack.c.h.b16 %v1214
        %v1357 = vunpack.c.l.b16 %v1215
        %v1358 = vunpack.c.h.b16 %v1215
        %v1359 = vunpack.c.l.b16 %v1216
        %v1360 = vunpack.c.h.b16 %v1216
        %v1361 = vunpack.c.l.b16 %v1217
        %v1362 = vunpack.c.h.b16 %v1217
        %v1363 = vunpack.c.l.b16 %v1218
        %v1364 = vunpack.c.h.b16 %v1218
        %v1365 = vunpack.c.l.b16 %v1219
        %v1366 = vunpack.c.h.b16 %v1219
        %v1367 = vunpack.c.l.b16 %v1220
        %v1368 = vunpack.c.h.b16 %v1220
        %v1369 = vunpack.c.l.b16 %v1221
        %v1370 = vunpack.c.h.b16 %v1221
        %v1371 = vunpack.c.l.b16 %v1222
        %v1372 = vunpack.c.h.b16 %v1222
        %v1373 = vunpack.c.l.b16 %v1223
        %v1374 = vunpack.c.h.b16 %v1223
        %v1375 = vunpack.c.l.b16 %v1224
        %v1376 = vunpack.c.h.b16 %v1224
        %v1377 = vunpack.c.l.b16 %v1225
        %v1378 = vunpack.c.h.b16 %v1225
        %v1379 = vunpack.c.l.b16 %v1226
        %v1380 = vunpack.c.h.b16 %v1226
        %v1381 = vunpack.c.l.b16 %v1227
        %v1382 = vunpack.c.h.b16 %v1227
        %v1383 = vunpack.c.l.b16 %v1228
        %v1384 = vunpack.c.h.b16 %v1228
        %v1385 = vunpack.c.l.b16 %v1229
        %v1386 = vunpack.c.h.b16 %v1229
        %v1387 = vunpack.c.l.b16 %v1230
        %v1388 = vunpack.c.h.b16 %v1230
        %v1389 = vunpack.c.l.b16 %v1231
        %v1390 = vunpack.c.h.b16 %v1231
        %v1391 = vunpack.c.l.b16 %v1232
        %v1392 = vunpack.c.h.b16 %v1232
        %v1393 = vunpack.c.l.b16 %v1233
        %v1394 = vunpack.c.h.b16 %v1233
        %v1395 = vunpack.c.l.b16 %v1234
        %v1396 = vunpack.c.h.b16 %v1234
        %v1397 = vunpack.c.l.b16 %v1235
        %v1398 = vunpack.c.h.b16 %v1235
        %v1399 = vunpack.c.l.b16 %v1236
        %v1400 = vunpack.c.h.b16 %v1236
        %v1401 = vunpack.c.l.b16 %v1237
        %v1402 = vunpack.c.h.b16 %v1237
        %v1403 = vunpack.c.l.b16 %v1238
        %v1404 = vunpack.c.h.b16 %v1238
        %v1405 = vunpack.c.l.b16 %v1239
        %v1406 = vunpack.c.h.b16 %v1239
        %v1407 = vunpack.c.l.b16 %v1240
        %v1408 = vunpack.c.h.b16 %v1240
        %v1409 = vunpack.c.l.b16 %v1241
        %v1410 = vunpack.c.h.b16 %v1241
        %v1411 = vunpack.c.l.b16 %v1242
        %v1412 = vunpack.c.h.b16 %v1242
        %v1413 = vunpack.c.l.b16 %v1243
        %v1414 = vunpack.c.h.b16 %v1243
        %v1415 = vunpack.c.l.b16 %v1244
        %v1416 = vunpack.c.h.b16 %v1244
        %v1417 = vunpack.c.l.b16 %v1245
        %v1418 = vunpack.c.h.b16 %v1245
        %v1419 = vunpack.c.l.b16 %v1246
        %v1420 = vunpack.c.h.b16 %v1246
        %v1421 = vunpack.c.l.b16 %v1247
        %v1422 = vunpack.c.h.b16 %v1247
        %v1423 = vunpack.c.l.b16 %v1248
        %v1424 = vunpack.c.h.b16 %v1248
        %v1425 = vunpack.c.l.b16 %v1249
        %v1426 = vunpack.c.h.b16 %v1249
        %v1427 = vunpack.c.l.b16 %v1250
        %v1428 = vunpack.c.h.b16 %v1250
        %v1429 = vunpack.c.l.b16 %v1251
        %v1430 = vunpack.c.h.b16 %v1251
        %v1431 = vunpack.c.l.b16 %v1252
        %v1432 = vunpack.c.h.b16 %v1252
        %v1433 = vunpack.c.l.b16 %v1253
        %v1434 = vunpack.c.h.b16 %v1253
        %v1435 = vunpack.c.l.b16 %v1254
        %v1436 = vunpack.c.h.b16 %v1254
        %v1437 = vunpack.c.l.b16 %v1255
        %v1438 = vunpack.c.h.b16 %v1255
        %v1439 = vunpack.c.l.b16 %v1256
        %v1440 = vunpack.c.h.b16 %v1256
        %v1441 = vunpack.c.l.b16 %v1257
        %v1442 = vunpack.c.h.b16 %v1257
        %v1443 = vunpack.c.l.b16 %v1258
        %v1444 = vunpack.c.h.b16 %v1258
        %v1445 = vunpack.c.l.b16 %v1259
        %v1446 = vunpack.c.h.b16 %v1259
        %v1447 = vunpack.c.l.b16 %v1260
        %v1448 = vunpack.c.h.b16 %v1260
        %v1449 = vunpack.c.l.b16 %v1261
        %v1450 = vunpack.c.h.b16 %v1261
        %v1451 = vunpack.c.l.b16 %v1262
        %v1452 = vunpack.c.h.b16 %v1262
        %v1453 = vunpack.c.l.b16 %v1263
        %v1454 = vunpack.c.h.b16 %v1263
        %v1455 = vunpack.c.l.b16 %v1264
        %v1456 = vunpack.c.h.b16 %v1264
        %v1457 = vpack.c.b16 %v1331, %v1329
        %v1458 = vpack.c.b16 %v1332, %v1330
        %v1459 = vpack.c.b16 %v1335, %v1333
        %v1460 = vpack.c.b16 %v1336, %v1334
        %v1461 = vpack.c.b16 %v1339, %v1337
        %v1462 = vpack.c.b16 %v1340, %v1338
        %v1463 = vpack.c.b16 %v1343, %v1341
        %v1464 = vpack.c.b16 %v1344, %v1342
        %v1465 = vpack.c.b16 %v1347, %v1345
        %v1466 = vpack.c.b16 %v1348, %v1346
        %v1467 = vpack.c.b16 %v1351, %v1349
        %v1468 = vpack.c.b16 %v1352, %v1350
        %v1469 = vpack.c.b16 %v1355, %v1353
        %v1470 = vpack.c.b16 %v1356, %v1354
        %v1471 = vpack.c.b16 %v1359, %v1357
        %v1472 = vpack.c.b16 %v1360, %v1358
        %v1473 = vpack.c.b16 %v1363, %v1361
        %v1474 = vpack.c.b16 %v1364, %v1362
        %v1475 = vpack.c.b16 %v1367, %v1365
        %v1476 = vpack.c.b16 %v1368, %v1366
        %v1477 = vpack.c.b16 %v1371, %v1369
        %v1478 = vpack.c.b16 %v1372, %v1370
        %v1479 = vpack.c.b16 %v1375, %v1373
        %v1480 = vpack.c.b16 %v1376, %v1374
        %v1481 = vpack.c.b16 %v1379, %v1377
        %v1482 = vpack.c.b16 %v1380, %v1378
        %v1483 = vpack.c.b16 %v1383, %v1381
        %v1484 = vpack.c.b16 %v1384, %v1382
        %v1485 = vpack.c.b16 %v1387, %v1385
        %v1486 = vpack.c.b16 %v1388, %v1386
        %v1487 = vpack.c.b16 %v1391, %v1389
        %v1488 = vpack.c.b16 %v1392, %v1390
        %v1489 = vpack.c.b16 %v1395, %v1393
        %v1490 = vpack.c.b16 %v1396, %v1394
        %v1491 = vpack.c.b16 %v1399, %v1397
        %v1492 = vpack.c.b16 %v1400, %v1398
        %v1493 = vpack.c.b16 %v1403, %v1401
        %v1494 = vpack.c.b16 %v1404, %v1402
        %v1495 = vpack.c.b16 %v1407, %v1405
        %v1496 = vpack.c.b16 %v1408, %v1406
        %v1497 = vpack.c.b16 %v1411, %v1409
        %v1498 = vpack.c.b16 %v1412, %v1410
        %v1499 = vpack.c.b16 %v1415, %v1413
        %v1500 = vpack.c.b16 %v1416, %v1414
        %v1501 = vpack.c.b16 %v1419, %v1417
        %v1502 = vpack.c.b16 %v1420, %v1418
        %v1503 = vpack.c.b16 %v1423, %v1421
        %v1504 = vpack.c.b16 %v1424, %v1422
        %v1505 = vpack.c.b16 %v1427, %v1425
        %v1506 = vpack.c.b16 %v1428, %v1426
        %v1507 = vpack.c.b16 %v1431, %v1429
        %v1508 = vpack.c.b16 %v1432, %v1430
        %v1509 = vpack.c.b16 %v1435, %v1433
        %v1510 = vpack.c.b16 %v1436, %v1434
        %v1511 = vpack.c.b16 %v1439, %v1437
        %v1512 = vpack.c.b16 %v1440, %v1438
        %v1513 = vpack.c.b16 %v1443, %v1441
        %v1514 = vpack.c.b16 %v1444, %v1442
        %v1515 = vpack.c.b16 %v1447, %v1445
        %v1516 = vpack.c.b16 %v1448, %v1446
        %v1517 = vpack.c.b16 %v1451, %v1449
        %v1518 = vpack.c.b16 %v1452, %v1450
        %v1519 = vpack.c.b16 %v1455, %v1453
        %v1520 = vpack.c.b16 %v1456, %v1454
        %1585 = vmatprep.subr.bf16.mxu0 %v1472
        %1586 = vmatpush1.bf16.msra.mxu0 %v1471
        %1587 = vmatprep.subr.bf16.mxu0 %v1470
        %1588 = vmatpush1.bf16.msra.mxu0 %v1469
        %1589 = vmatprep.subr.bf16.mxu0 %v1468
        %1590 = vmatpush1.bf16.msra.mxu0 %v1467
        %1591 = vmatprep.subr.bf16.mxu0 %v1466
        %1592 = vmatpush1.bf16.msra.mxu0 %v1465
        %1593 = vmatprep.subr.bf16.mxu0 %v1464
        %1594 = vmatpush1.bf16.msra.mxu0 %v1463
        %1595 = vmatprep.subr.bf16.mxu0 %v1462
        %1596 = vmatpush1.bf16.msra.mxu0 %v1461
        %1597 = vmatprep.subr.bf16.mxu0 %v1460
        %1598 = vmatpush1.bf16.msra.mxu0 %v1459
        %1599 = vmatprep.subr.bf16.mxu0 %v1458
        %1600 = vmatpush1.bf16.msra.mxu0 %v1457
        %1601 = vmatprep.subr.bf16.mxu0 %v1488
        %1602 = vmatpush2.bf16.msra.mxu0 %v1487
        %1603 = vmatprep.subr.bf16.mxu0 %v1486
        %1604 = vmatpush2.bf16.msra.mxu0 %v1485
        %1605 = vmatprep.subr.bf16.mxu0 %v1484
        %1606 = vmatpush2.bf16.msra.mxu0 %v1483
        %1607 = vmatprep.subr.bf16.mxu0 %v1482
        %1608 = vmatpush2.bf16.msra.mxu0 %v1481
        %1609 = vmatprep.subr.bf16.mxu0 %v1480
        %1610 = vmatpush2.bf16.msra.mxu0 %v1479
        %1611 = vmatprep.subr.bf16.mxu0 %v1478
        %1612 = vmatpush2.bf16.msra.mxu0 %v1477
        %1613 = vmatprep.subr.bf16.mxu0 %v1476
        %1614 = vmatpush2.bf16.msra.mxu0 %v1475
        %1615 = vmatprep.subr.bf16.mxu0 %v1474
        %1616 = vmatpush2.bf16.msra.mxu0 %v1473
        %1617 = vmatprep.mubr.bf16.mxu0 %v1198
        %1618 = vmatmul.mubr.bf16.gmra.mxu0 %v1197
        %v1619 = vpop.f32.mrf.mxu0
        %v1620 = vadd.f32 0.0, %v1619
        %v1621 = vpop.f32.mrf.mxu0
        %v1622 = vadd.f32 0.0, %v1621
        %v1623 = vpop.f32.mrf.mxu0
        %v1624 = vadd.f32 0.0, %v1623
        %v1625 = vpop.f32.mrf.mxu0
        %v1626 = vadd.f32 0.0, %v1625
        %1627 = vdwg.mxu0
        %1628 = vmatprep.subr.bf16.mxu0 %v1504
        %1629 = vmatpush1.bf16.msra.mxu0 %v1503
        %1630 = vmatprep.subr.bf16.mxu0 %v1502
        %1631 = vmatpush1.bf16.msra.mxu0 %v1501
        %1632 = vmatprep.subr.bf16.mxu0 %v1500
        %1633 = vmatpush1.bf16.msra.mxu0 %v1499
        %1634 = vmatprep.subr.bf16.mxu0 %v1498
        %1635 = vmatpush1.bf16.msra.mxu0 %v1497
        %1636 = vmatprep.subr.bf16.mxu0 %v1496
        %1637 = vmatpush1.bf16.msra.mxu0 %v1495
        %1638 = vmatprep.subr.bf16.mxu0 %v1494
        %1639 = vmatpush1.bf16.msra.mxu0 %v1493
        %1640 = vmatprep.subr.bf16.mxu0 %v1492
        %1641 = vmatpush1.bf16.msra.mxu0 %v1491
        %1642 = vmatprep.subr.bf16.mxu0 %v1490
        %1643 = vmatpush1.bf16.msra.mxu0 %v1489
        %1644 = vmatprep.subr.bf16.mxu0 %v1520
        %1645 = vmatpush2.bf16.msra.mxu0 %v1519
        %1646 = vmatprep.subr.bf16.mxu0 %v1518
        %1647 = vmatpush2.bf16.msra.mxu0 %v1517
        %1648 = vmatprep.subr.bf16.mxu0 %v1516
        %1649 = vmatpush2.bf16.msra.mxu0 %v1515
        %1650 = vmatprep.subr.bf16.mxu0 %v1514
        %1651 = vmatpush2.bf16.msra.mxu0 %v1513
        %1652 = vmatprep.subr.bf16.mxu0 %v1512
        %1653 = vmatpush2.bf16.msra.mxu0 %v1511
        %1654 = vmatprep.subr.bf16.mxu0 %v1510
        %1655 = vmatpush2.bf16.msra.mxu0 %v1509
        %1656 = vmatprep.subr.bf16.mxu0 %v1508
        %1657 = vmatpush2.bf16.msra.mxu0 %v1507
        %1658 = vmatprep.subr.bf16.mxu0 %v1506
        %1659 = vmatpush2.bf16.msra.mxu0 %v1505
        %1660 = vmatprep.mubr.bf16.mxu0 %v1200
        %1661 = vmatmul.mubr.bf16.gmra.mxu0 %v1199
        %v1662 = vpop.f32.mrf.mxu0
        %v1663 = vadd.f32 %v1620, %v1662
        %v1664 = vpop.f32.mrf.mxu0
        %v1665 = vadd.f32 %v1622, %v1664
        %v1666 = vpop.f32.mrf.mxu0
        %v1667 = vadd.f32 %v1624, %v1666
        %v1668 = vpop.f32.mrf.mxu0
        %v1669 = vadd.f32 %v1626, %v1668
        %1670 = vdwg.mxu0
        %v1671 = vadd.f32 %v1193, %v1663
        %v1672 = vadd.f32 %v1194, %v1665
        %v1673 = vadd.f32 %v1195, %v1667
        %v1674 = vadd.f32 %v1196, %v1669
        %1675 = vst [vmem:[#allocation3] sm:$0xff] %v1671
        %1676 = vst [vmem:[#allocation3 + $0x8] sm:$0xff] %v1672
        %1677 = vst [vmem:[#allocation3 + $0x10] sm:$0x3] %v1673
        %1678 = vst [vmem:[#allocation3 + $0x18] sm:$0x3] %v1674
        %p1679 = scmp.eq.s32.totalorder %s23, 1
        // Predicated region
        $region76: #{encode_image.16} parent=66 // pred_check
          %p1680 = pneg %p1679
        $region77: #{encode_image.16} parent=66 // pred_check_branch
          %1682 = sbr.rel (%p1680) target = $region79
        $region78: #{encode_image.16} parent=66 // pred_region
          %v1683 = vld [vmem:[#allocation3] sm:$0xff]
          %v1684 = vld [vmem:[#allocation3 + $0x8] sm:$0xff]
          %v1685 = vld [vmem:[#allocation3 + $0x10] sm:$0x3]
          %v1686 = vld [vmem:[#allocation3 + $0x18] sm:$0x3]
          %v1687 = vld [vmem:[%s6] sm:$0x3]
          %v1688 = vunpack.c.l.bf16 %v1687
          %v1690 = vlaneseq
          %v1691 = vshrl.u32 %v1690, 7
          %v1692 = vsub.s32 0, %v1691
          %v1693 = vrot.slane %v1688, %v1692
          %v1694 = vlaneseq
          %v1695 = vshrl.u32 %v1694, 7
          %v1696 = vsub.s32 2, %v1695
          %v1697 = vrot.slane %v1688, %v1696
          %v1700 = vlaneseq
          %v1701 = vshrl.u32 %v1700, 7
          %v1702 = vsub.s32 0, %v1701
          %v1703 = vrot.slane %v1693, %v1702
          %v1704 = vlaneseq
          %v1705 = vshrl.u32 %v1704, 7
          %v1706 = vsub.s32 0, %v1705
          %v1707 = vrot.slane %v1697, %v1706
          %v1708 = vadd.f32 %v1683, %v1703
          %v1709 = vadd.f32 %v1684, %v1707
          %v1710 = vadd.f32 %v1685, %v1703
          %v1711 = vadd.f32 %v1686, %v1707
          %v1712 = vld [vmem:[%s488] sm:$0xff]
          %v1713 = vld [vmem:[%s488 + $0x8] sm:$0x11]
          %v1714 = vunpack.c.l.bf16 %v1712
          %v1715 = vunpack.c.h.bf16 %v1712
          %v1716 = vunpack.c.l.bf16 %v1713
          %v1717 = vunpack.c.h.bf16 %v1713
          %v1718 = vadd.f32 %v1708, %v1714
          %v1719 = vadd.f32 %v1709, %v1715
          %v1720 = vadd.f32 %v1710, %v1716
          %v1721 = vadd.f32 %v1711, %v1717
          %v1722 = vpack.c.bf16 %v1720, %v1718
          %v1723 = vpack.c.bf16 %v1721, %v1719
          %v1726 = vunpack.c.l.b16 %v1722
          %v1727 = vunpack.c.l.b16 %v1723
          %v1728 = vunpack.c.h.b16 %v1722
          %v1729 = vunpack.c.h.b16 %v1723
          %v1730 = vpack.c.b16 %v1727, %v1726
          %v1731 = vpack.c.b16 %v1729, %v1728
          %1734 = vst [vmem:[%s508] sm:$0xff] %v1730
          %1735 = vst [vmem:[%s508 + $0x8] sm:$0x11] %v1731
        $region79: #{encode_image.16} parent=66 // pred_fallthru
          _
        %s1736 = smul.u32 2, %s22
        %p1737 = scmp.lt.s32.totalorder %s1736, 1
        %s1738 = scalar_select %p1737, %s1736, 1
        %s1739 = smul.addr %s1738, 2
        %s1740 = smul.addr %s1739, 4
        %s1741 = scalar_lea.vmem %s7, %s1740
        // Predicated region
        $region80: #{encode_image.16} parent=66 // pred_check
          %p1742 = pneg %p215
        $region81: #{encode_image.16} parent=66 // pred_check_branch
          %1744 = sbr.rel (%p1742) target = $region83
        $region82: #{encode_image.16} parent=66 // pred_region
          %s1745 = smul.u32 2, %s22
        $region83: #{encode_image.16} parent=66 // pred_fallthru
          _
        // Predicated region
        $region84: #{encode_image.16} parent=66 // pred_check
          %p1746 = pneg %p215
        $region85: #{encode_image.16} parent=66 // pred_check_branch
          %1748 = sbr.rel (%p1746) target = $region87
        $region86: #{encode_image.16} parent=66 // pred_region
          %s1749 = smul.u32 2, %s22
          %p1750 = scmp.lt.s32.totalorder %s1749, 1
          %s1751 = scalar_select %p1750, %s1749, 1
          %s1752 = smul.addr %s1751, 2
          %s1753 = smul.addr %s1752, 4
          %s1754 = scalar_lea.vmem %s7, %s1753
        $region87: #{encode_image.16} parent=66 // pred_fallthru
          _
      $region67: #{encode_image.16} parent=5 // pred_fallthru
        _
      %p1755 = scmp.le.s32.totalorder 2, %s13
      // Predicated region
      $region88: #{encode_image.16} parent=5 // pred_check
        %p1756 = pneg %p1755
      $region89: #{encode_image.16} parent=5 // pred_check_branch
        %1758 = sbr.rel (%p1756) target = $region91
      $region90: #{encode_image.16} parent=5 // pred_region
        %s1759 = ssub.s32 %s13, 2
      $region91: #{encode_image.16} parent=5 // pred_fallthru
        _
    $region6: #{encode_image.16} parent=1 // loop_footer
      %s17 = sadd.s32 1, %s13
    $region7: #{encode_image.16} parent=1 // loop_footer_branch
      %12 = sbr.rel target = $region3
    $region8: #{encode_image.16} parent=1 // loop_exit
      _

// kernel: encode_image.21
$region0: #{encode_image.21}
  #allocation0 [shape = 'u32[]', space=smem, size = 0x4, offset = 0x4, fixed_abs, tag = 'smem constant byte address 0x4 - core index']
  #allocation1 [shape = 'u32[144,128]{1,0:T(1,128)}', space=vmem, size = 0x12000, scoped, tag = 'internal scratch']
  %s0 = inlined_call_operand.vmem [shape: bf16[2,256], index: 0, kind: input, shape index: {}]
  %s1 = inlined_call_operand.vmem [shape: f32[1,256], index: 1, kind: input, shape index: {}]
  %s2 = inlined_call_operand.vmem [shape: f32[1,256], index: 2, kind: input, shape index: {}]
  %s3 = inlined_call_operand.vmem [shape: bf16[256,128], index: 3, kind: input, shape index: {}]
  %s4 = inlined_call_operand.vmem [shape: f32[1,128], index: 4, kind: input, shape index: {}]
  %s5 = inlined_call_operand.hbm [shape: f32[2,128], index: 5, kind: output, shape index: {}]
  %s6 = sld [smem:[#allocation0]]
  $region30: #{encode_image.21} parent=0
    _
  %s8 = ssub.s32 1, %s6
  %s9 = scalar_select 0, %s8, %s6
  $region1: #{encode_image.21} parent=0
    #allocation2 [shape = 'u8[1024]{0}', space=vmem, size = 0x400, scoped, tag = 'output window, operand 0, single buffered']
    #allocation3 [shape = 's32[1]{0}', space=sflag, size = 0x4, scoped, tag = 'scoped memory for encode_image.21']
    %10 = vsyncpa [#allocation3], 0
    // Predicated region
    $region2: #{encode_image.21} parent=1 // pred_check
      _
    $region3: #{encode_image.21} parent=1 // pred_check_branch
      %12 = sbr.rel (0) target = $region5
    $region4: #{encode_image.21} parent=1 // pred_region
      _
    $region5: #{encode_image.21} parent=1 // pred_fallthru
      _
    // Predicated region
    $region6: #{encode_image.21} parent=1 // pred_check
      _
    $region7: #{encode_image.21} parent=1 // pred_check_branch
      %14 = sbr.rel (0) target = $region9
    $region8: #{encode_image.21} parent=1 // pred_region
      _
    $region9: #{encode_image.21} parent=1 // pred_fallthru
      _
    // Predicated region
    $region10: #{encode_image.21} parent=1 // pred_check
      _
    $region11: #{encode_image.21} parent=1 // pred_check_branch
      %16 = sbr.rel (0) target = $region13
    $region12: #{encode_image.21} parent=1 // pred_region
      _
    $region13: #{encode_image.21} parent=1 // pred_fallthru
      _
    // Predicated region
    $region14: #{encode_image.21} parent=1 // pred_check
      _
    $region15: #{encode_image.21} parent=1 // pred_check_branch
      %18 = sbr.rel (0) target = $region17
    $region16: #{encode_image.21} parent=1 // pred_region
      _
    $region17: #{encode_image.21} parent=1 // pred_fallthru
      _
    // Predicated region
    $region18: #{encode_image.21} parent=1 // pred_check
      _
    $region19: #{encode_image.21} parent=1 // pred_check_branch
      %20 = sbr.rel (0) target = $region21
    $region20: #{encode_image.21} parent=1 // pred_region
      _
    $region21: #{encode_image.21} parent=1 // pred_fallthru
      _
    %v22 = vld [vmem:[%s0] sm:$0x3]
    %v23 = vunpack.c.l.bf16 %v22
    %v26 = vunpack.c.l.s4 1983009808
    %v27 = vunpack.c.0.s8 %v26
    %v28 = vlaneseq
    %v29 = vshrl.u32 %v28, 7
    %v30 = vsub.s32 %v27, %v29
    %v31 = vrot.slane %v23, %v30
    %v32 = vcombine.high %v31, %v31
    %vm35 = vcmask 1041408
    %v36 = vsel %vm35, %v31, 0.0
    %v37 = vsel %vm35, %v32, 0.0
    %v38 = vadd.f32 %v36, %v37
    %39 = vadd.xlane.f32.xlu0 %v38
    %v40 = vpop.xlane.xlu0 %39
    %v41 = vrcp.pop 256.0
    %v42 = vmul.f32 %v40, %v41
    %v45 = vunpack.c.l.s4 269488144
    %v46 = vunpack.c.0.s8 %v45
    %v47 = vlaneseq
    %v48 = vshrl.u32 %v47, 7
    %v49 = vsub.s32 %v46, %v48
    %v50 = vrot.slane %v42, %v49
    %v52 = vsub.f32 %v23, %v50
    %v53 = vmul.f32 %v52, %v52
    %v56 = vunpack.c.l.s4 1983009808
    %v57 = vunpack.c.0.s8 %v56
    %v58 = vlaneseq
    %v59 = vshrl.u32 %v58, 7
    %v60 = vsub.s32 %v57, %v59
    %v61 = vrot.slane %v53, %v60
    %v62 = vcombine.high %v61, %v61
    %v65 = vsel %vm35, %v61, 0.0
    %v66 = vsel %vm35, %v62, 0.0
    %v67 = vadd.f32 %v65, %v66
    %68 = vadd.xlane.f32.xlu0 %v67
    %v69 = vpop.xlane.xlu0 %68
    %v70 = vmul.f32 %v69, %v41
    %v71 = vadd.f32 %v70, 1e-05
    %v72 = vrsqrt.pop %v71
    %v75 = vunpack.c.l.s4 269488144
    %v76 = vunpack.c.0.s8 %v75
    %v77 = vlaneseq
    %v78 = vshrl.u32 %v77, 7
    %v79 = vsub.s32 %v76, %v78
    %v80 = vrot.slane %v72, %v79
    %v82 = vmul.f32 %v52, %v80
    %v83 = vld [vmem:[%s1] sm:$0x3]
    %v85 = vlaneseq
    %v86 = vshrl.u32 %v85, 7
    %v87 = vsub.s32 0, %v86
    %v88 = vrot.slane %v83, %v87
    %v89 = vlaneseq
    %v90 = vshrl.u32 %v89, 7
    %v91 = vsub.s32 1, %v90
    %v92 = vrot.slane %v83, %v91
    %v93 = vcombine.low %v88, %v92
    %v95 = vunpack.c.l.s4 1983009808
    %v96 = vunpack.c.0.s8 %v95
    %v97 = vlaneseq
    %v98 = vshrl.u32 %v97, 7
    %v99 = vsub.s32 %v96, %v98
    %v100 = vrot.slane %v93, %v99
    %v102 = vmul.f32 %v82, %v100
    %v103 = vld [vmem:[%s2] sm:$0x3]
    %v105 = vlaneseq
    %v106 = vshrl.u32 %v105, 7
    %v107 = vsub.s32 0, %v106
    %v108 = vrot.slane %v103, %v107
    %v109 = vlaneseq
    %v110 = vshrl.u32 %v109, 7
    %v111 = vsub.s32 1, %v110
    %v112 = vrot.slane %v103, %v111
    %v113 = vcombine.low %v108, %v112
    %v115 = vunpack.c.l.s4 1983009808
    %v116 = vunpack.c.0.s8 %v115
    %v117 = vlaneseq
    %v118 = vshrl.u32 %v117, 7
    %v119 = vsub.s32 %v116, %v118
    %v120 = vrot.slane %v113, %v119
    %v122 = vadd.f32 %v102, %v120
    %v125 = vunpack.c.l.s4 1983009808
    %v126 = vunpack.c.0.s8 %v125
    %v127 = vlaneseq
    %v128 = vshrl.u32 %v127, 7
    %v129 = vsub.s32 %v126, %v128
    %v130 = vrot.slane %v122, %v129
    %v131 = vcombine.high %v130, %v130
    %v134 = vpack.c.bf16 %v130, %v130
    %v135 = vpack.c.bf16 %v131, %v131
    %v136 = vld [vmem:[%s3] sm:$0xf]
    %v137 = vld [vmem:[%s3 + $0x4] sm:$0xf]
    %v138 = vld [vmem:[%s3 + $0x8] sm:$0xf]
    %v139 = vld [vmem:[%s3 + $0xc] sm:$0xf]
    %v140 = vld [vmem:[%s3 + $0x10] sm:$0xf]
    %v141 = vld [vmem:[%s3 + $0x14] sm:$0xf]
    %v142 = vld [vmem:[%s3 + $0x18] sm:$0xf]
    %v143 = vld [vmem:[%s3 + $0x1c] sm:$0xf]
    %v144 = vld [vmem:[%s3 + $0x20] sm:$0xf]
    %v145 = vld [vmem:[%s3 + $0x24] sm:$0xf]
    %v146 = vld [vmem:[%s3 + $0x28] sm:$0xf]
    %v147 = vld [vmem:[%s3 + $0x2c] sm:$0xf]
    %v148 = vld [vmem:[%s3 + $0x30] sm:$0xf]
    %v149 = vld [vmem:[%s3 + $0x34] sm:$0xf]
    %v150 = vld [vmem:[%s3 + $0x38] sm:$0xf]
    %v151 = vld [vmem:[%s3 + $0x3c] sm:$0xf]
    %v152 = vld [vmem:[%s3 + $0x40] sm:$0xf]
    %v153 = vld [vmem:[%s3 + $0x44] sm:$0xf]
    %v154 = vld [vmem:[%s3 + $0x48] sm:$0xf]
    %v155 = vld [vmem:[%s3 + $0x4c] sm:$0xf]
    %v156 = vld [vmem:[%s3 + $0x50] sm:$0xf]
    %v157 = vld [vmem:[%s3 + $0x54] sm:$0xf]
    %v158 = vld [vmem:[%s3 + $0x58] sm:$0xf]
    %v159 = vld [vmem:[%s3 + $0x5c] sm:$0xf]
    %v160 = vld [vmem:[%s3 + $0x60] sm:$0xf]
    %v161 = vld [vmem:[%s3 + $0x64] sm:$0xf]
    %v162 = vld [vmem:[%s3 + $0x68] sm:$0xf]
    %v163 = vld [vmem:[%s3 + $0x6c] sm:$0xf]
    %v164 = vld [vmem:[%s3 + $0x70] sm:$0xf]
    %v165 = vld [vmem:[%s3 + $0x74] sm:$0xf]
    %v166 = vld [vmem:[%s3 + $0x78] sm:$0xf]
    %v167 = vld [vmem:[%s3 + $0x7c] sm:$0xf]
    %v168 = vld [vmem:[%s4] sm:$0x1]
    %v170 = vlaneseq
    %v171 = vshrl.u32 %v170, 7
    %v172 = vsub.s32 0, %v171
    %v173 = vrot.slane %v168, %v172
    %v207 = vunpack.c.l.b16 %v136
    %v208 = vunpack.c.l.b16 %v137
    %v209 = vunpack.c.l.b16 %v138
    %v210 = vunpack.c.l.b16 %v139
    %v211 = vunpack.c.l.b16 %v140
    %v212 = vunpack.c.l.b16 %v141
    %v213 = vunpack.c.l.b16 %v142
    %v214 = vunpack.c.l.b16 %v143
    %v215 = vunpack.c.l.b16 %v144
    %v216 = vunpack.c.l.b16 %v145
    %v217 = vunpack.c.l.b16 %v146
    %v218 = vunpack.c.l.b16 %v147
    %v219 = vunpack.c.l.b16 %v148
    %v220 = vunpack.c.l.b16 %v149
    %v221 = vunpack.c.l.b16 %v150
    %v222 = vunpack.c.l.b16 %v151
    %v223 = vunpack.c.l.b16 %v152
    %v224 = vunpack.c.l.b16 %v153
    %v225 = vunpack.c.l.b16 %v154
    %v226 = vunpack.c.l.b16 %v155
    %v227 = vunpack.c.l.b16 %v156
    %v228 = vunpack.c.l.b16 %v157
    %v229 = vunpack.c.l.b16 %v158
    %v230 = vunpack.c.l.b16 %v159
    %v231 = vunpack.c.l.b16 %v160
    %v232 = vunpack.c.l.b16 %v161
    %v233 = vunpack.c.l.b16 %v162
    %v234 = vunpack.c.l.b16 %v163
    %v235 = vunpack.c.l.b16 %v164
    %v236 = vunpack.c.l.b16 %v165
    %v237 = vunpack.c.l.b16 %v166
    %v238 = vunpack.c.l.b16 %v167
    %v239 = vpack.c.b16 %v208, %v207
    %v240 = vpack.c.b16 %v210, %v209
    %v241 = vpack.c.b16 %v212, %v211
    %v242 = vpack.c.b16 %v214, %v213
    %v243 = vpack.c.b16 %v216, %v215
    %v244 = vpack.c.b16 %v218, %v217
    %v245 = vpack.c.b16 %v220, %v219
    %v246 = vpack.c.b16 %v222, %v221
    %v247 = vpack.c.b16 %v224, %v223
    %v248 = vpack.c.b16 %v226, %v225
    %v249 = vpack.c.b16 %v228, %v227
    %v250 = vpack.c.b16 %v230, %v229
    %v251 = vpack.c.b16 %v232, %v231
    %v252 = vpack.c.b16 %v234, %v233
    %v253 = vpack.c.b16 %v236, %v235
    %v254 = vpack.c.b16 %v238, %v237
    %271 = vmatprep.subr.bf16.mxu0 0
    %272 = vmatpush1.bf16.msra.mxu0 %v246
    %273 = vmatprep.subr.bf16.mxu0 0
    %274 = vmatpush1.bf16.msra.mxu0 %v245
    %275 = vmatprep.subr.bf16.mxu0 0
    %276 = vmatpush1.bf16.msra.mxu0 %v244
    %277 = vmatprep.subr.bf16.mxu0 0
    %278 = vmatpush1.bf16.msra.mxu0 %v243
    %279 = vmatprep.subr.bf16.mxu0 0
    %280 = vmatpush1.bf16.msra.mxu0 %v242
    %281 = vmatprep.subr.bf16.mxu0 0
    %282 = vmatpush1.bf16.msra.mxu0 %v241
    %283 = vmatprep.subr.bf16.mxu0 0
    %284 = vmatpush1.bf16.msra.mxu0 %v240
    %285 = vmatprep.subr.bf16.mxu0 0
    %286 = vmatpush1.bf16.msra.mxu0 %v239
    %287 = vmatprep.subr.bf16.mxu0 0
    %288 = vmatpush2.bf16.msra.mxu0 %v254
    %289 = vmatprep.subr.bf16.mxu0 0
    %290 = vmatpush2.bf16.msra.mxu0 %v253
    %291 = vmatprep.subr.bf16.mxu0 0
    %292 = vmatpush2.bf16.msra.mxu0 %v252
    %293 = vmatprep.subr.bf16.mxu0 0
    %294 = vmatpush2.bf16.msra.mxu0 %v251
    %295 = vmatprep.subr.bf16.mxu0 0
    %296 = vmatpush2.bf16.msra.mxu0 %v250
    %297 = vmatprep.subr.bf16.mxu0 0
    %298 = vmatpush2.bf16.msra.mxu0 %v249
    %299 = vmatprep.subr.bf16.mxu0 0
    %300 = vmatpush2.bf16.msra.mxu0 %v248
    %301 = vmatprep.subr.bf16.mxu0 0
    %302 = vmatpush2.bf16.msra.mxu0 %v247
    %303 = vmatprep.mubr.bf16.mxu0 %v135
    %304 = vmatmul.mubr.bf16.gmra.mxu0 %v134
    %v305 = vpop.f32.mrf.mxu0
    %v306 = vadd.f32 %v173, %v305
    %v307 = vpop.f32.mrf.mxu0
    %v308 = vpop.f32.mrf.mxu0
    %v309 = vpop.f32.mrf.mxu0
    %310 = vdwg.mxu0
    %311 = vst [vmem:[#allocation2] sm:$0x3] %v306
    // Predicated region
    $region22: #{encode_image.21} parent=1 // pred_check
      _
    $region23: #{encode_image.21} parent=1 // pred_check_branch
      %313 = sbr.rel (0) target = $region25
    $region24: #{encode_image.21} parent=1 // pred_region
      %s315 = ssub.s32 32, 32
      %316 = vsyncadd [#allocation3], %s315
      %s318 = sshll.u32 [#allocation2], 4
      %s319 = int_to_ptr.vmem [resolvable:$true] %s318
      %321 = dma.vmem_to_hbm [thread:$0]  %s319, 32, %s5, [#allocation3]
    $region25: #{encode_image.21} parent=1 // pred_fallthru
      _
    // Predicated region
    $region26: #{encode_image.21} parent=1 // pred_check
      _
    $region27: #{encode_image.21} parent=1 // pred_check_branch
      %323 = sbr.rel (0) target = $region29
    $region28: #{encode_image.21} parent=1 // pred_region
      %324 = dma.done [#allocation3], 32
    $region29: #{encode_image.21} parent=1 // pred_fallthru
      _
    %325 = vsyncpa [#allocation3], 1

</llo_original>
